<compile_context>
chip_gen: v7x
topology: tpu7x:2x2x1
jax: 0.10.0
libtpu: 0.0.40
codegen_flags: <defaults>
</compile_context>

<pallas_src>
import jax
import jax.numpy as jnp
import numpy as np
from jax.experimental import pallas as pl
from jax.experimental.pallas import tpu as pltpu

H = W = 4            # spatial size implied by fc1 fan-in: 64 ch * 4 * 4 = 1024
P = H * W            # 16 spatial positions
TAPS = 9             # 3x3 kernel taps, t = (dy+1)*3 + (dx+1)
MAX_SHIFT = W + 1    # largest |row shift| per spatial position for a 3x3 tap


# ----------------------------- fused Pallas kernel ---------------------------

def fused_net_kernel(p1_ref, mask_ref, w1_ref, b1_ref, w2_ref, b2_ref,
                     w3_ref, b3_ref, w4_ref, b4_ref, wh_ref, bh_ref,
                     q_ref, pad_ref, p2_ref, h2_ref, flat_ref):
    f32 = jnp.float32
    bf16 = jnp.bfloat16
    rows = p1_ref.shape[0]          # 16 * B   (row index = p * B + b, position-major)
    batch = q_ref.shape[0]          # B
    oc1 = w1_ref.shape[1]           # 32
    oc2 = b2_ref.shape[1]           # 64
    padb = MAX_SHIFT * batch        # pad rows on each side of h1

    # ---- conv1: 1 -> 32 ch, 3x3 "same".  One im2col dot (K=9), f32.
    h1 = jnp.maximum(
        jnp.dot(p1_ref[...], w1_ref[...], preferred_element_type=f32) + b1_ref[...],
        0.0)                                                        # (16B, 32)

    # ---- conv2: 32 -> 64 ch, 3x3 "same".  Build the (16B, 288) im2col of h1 with plain
    #      loads from a zero-padded scratch (shifted views) + a per-tap validity mask,
    #      then ONE MXU dot with K=288 (bf16 operands, f32 accumulate).
    pad_ref[0:padb, :] = jnp.zeros((padb, oc1), f32)
    pad_ref[padb + rows:rows + 2 * padb, :] = jnp.zeros((padb, oc1), f32)
    pad_ref[padb:padb + rows, :] = h1
    for t in range(TAPS):
        dy, dx = t // 3 - 1, t % 3 - 1
        start = padb + (dy * W + dx) * batch                        # shifted view start row
        piece = pad_ref[start:start + rows, :] * mask_ref[t]        # (16B, 32)
        p2_ref[:, t * oc1:(t + 1) * oc1] = piece
    h2 = jnp.maximum(
        jnp.dot(p2_ref[...].astype(bf16), w2_ref[...],
                preferred_element_type=f32) + b2_ref[...],
        0.0)                                                        # (16B, 64)

    # ---- fc1 (1024 -> 512): fold torch's NCHW x.view(B,-1) via 16 contiguous VMEM copies
    #      into a (B, 1024) scratch (flat[b, p*64+oc] = h2[p*B+b, oc]); w3 was pre-permuted
    #      to match, so fc1 is ONE dot with a fully utilized K=1024 contraction.
    h2_ref[...] = h2
    for p in range(P):
        flat_ref[:, p * oc2:(p + 1) * oc2] = h2_ref[p * batch:(p + 1) * batch, :]
    h3 = jnp.maximum(
        jnp.dot(flat_ref[...].astype(bf16), w3_ref[...],
                preferred_element_type=f32) + b3_ref[...],
        0.0)                                                        # (B, 512)

    # ---- fc2 (512 -> 128): bf16 weights, f32 accumulate.
    h4 = jnp.maximum(
        jnp.dot(h3.astype(bf16), w4_ref[...],
                preferred_element_type=f32) + b4_ref[...],
        0.0)                                                        # (B, 128)

    # ---- dueling head: single fused [value | adv] dot, then Q = value + adv - mean(adv).
    head = jnp.dot(h4, wh_ref[...], preferred_element_type=f32) + bh_ref[...]  # (B, 1+A)
    value = head[:, :1]
    adv = head[:, 1:]
    q_ref[...] = value + adv - jnp.mean(adv, axis=1, keepdims=True)


# ----------------------------- one-time weight / geometry prep ---------------

def prepare_params(params, batch, *, mxu_dtype=jnp.bfloat16):
    """Re-layout PyTorch-style weights ONCE (outside the jitted hot path).

    The only batch-dependent piece is the per-tap validity mask, (9, 16B, 1) f32 — O(B).
    """
    oc1 = params["conv1_w"].shape[0]           # 32
    oc2 = params["conv2_w"].shape[0]           # 64

    # mask[t, p*B+b] = 1 iff the 3x3 neighbor of position p for tap t is inside the 4x4 grid
    mask = np.zeros((TAPS, P * batch, 1), np.float32)
    for t in range(TAPS):
        dy, dx = t // 3 - 1, t % 3 - 1
        for p in range(P):
            h, w = p // W, p % W
            if 0 <= h + dy < H and 0 <= w + dx < W:
                mask[t, p * batch:(p + 1) * batch, 0] = 1.0

    # fc1 weight with the NCHW flatten folded in: w3[p*64 + oc, j] = fc1_w[j, oc*16 + p]
    w3 = jnp.transpose(params["fc1_w"].reshape(-1, oc2, P), (2, 1, 0)).reshape(P * oc2, -1)

    return dict(
        mask=jnp.asarray(mask),
        # conv1 taps as (9, 32): w1[t, oc] = conv1_w[oc, 0, t//3, t%3]
        w1=params["conv1_w"].reshape(oc1, TAPS).T,
        b1=params["conv1_b"].reshape(1, oc1),
        # conv2 stacked im2col weight (288, 64): row t*32+ic = conv2_w[:, ic, t//3, t%3]
        w2=jnp.transpose(params["conv2_w"], (2, 3, 1, 0)).reshape(TAPS * oc1, oc2).astype(mxu_dtype),
        b2=params["conv2_b"].reshape(1, oc2),
        w3=w3.astype(mxu_dtype),
        b3=params["fc1_b"].reshape(1, -1),
        w4=params["fc2_w"].T.astype(mxu_dtype),
        b4=params["fc2_b"].reshape(1, -1),
        # fused dueling head weight (128, 1+A): column 0 = value, columns 1.. = adv
        wh=jnp.concatenate([params["value_w"].T, params["adv_w"].T], axis=1),
        bh=jnp.concatenate([params["value_b"], params["adv_b"]]).reshape(1, -1),
    )


# ----------------------------- forward ---------------------------------------

def net_forward(prep, x):
    # x: (B, 1, 4, 4) float32 NCHW.
    batch = x.shape[0]
    assert batch * P == prep["mask"].shape[1], \
        "prepare_params() was built for a different batch size"
    num_actions = prep["wh"].shape[1] - 1
    oc1 = prep["w1"].shape[1]
    oc2 = prep["b2"].shape[1]
    rows = P * batch
    padb = MAX_SHIFT * batch

    # conv1 im2col patches (tiny; one fused XLA op before the kernel).
    # Rows are position-major: row index = p*B + b, columns = tap t.
    xp = jnp.pad(x.reshape(batch, H, W), ((0, 0), (1, 1), (1, 1)))
    cols = [xp[:, ky:ky + H, kx:kx + W] for ky in range(3) for kx in range(3)]
    patches1 = jnp.stack(cols, axis=-1).reshape(batch, P, TAPS)
    patches1 = jnp.transpose(patches1, (1, 0, 2)).reshape(rows, TAPS)

    vmem = pl.BlockSpec(memory_space=pltpu.MemorySpace.VMEM)
    return pl.pallas_call(
        fused_net_kernel,
        out_shape=jax.ShapeDtypeStruct((batch, num_actions), jnp.float32),
        in_specs=[vmem] * 12,
        out_specs=vmem,
        scratch_shapes=[
            pltpu.VMEM((rows + 2 * padb, oc1), jnp.float32),   # zero-padded h1
            pltpu.VMEM((rows, TAPS * oc1), jnp.float32),       # conv2 im2col patches
            pltpu.VMEM((rows, oc2), jnp.float32),              # h2
            pltpu.VMEM((batch, P * oc2), jnp.float32),         # flattened fc1 input
        ],
    )(patches1, prep["mask"], prep["w1"], prep["b1"], prep["w2"], prep["b2"],
      prep["w3"], prep["b3"], prep["w4"], prep["b4"], prep["wh"], prep["bh"])


# ----------------------------- init + pure-JAX reference -----------------------

def init_params(key, output_size):
    ks = jax.random.split(key, 12)

    def u(k, shape, fan_in):
        bound = 1.0 / np.sqrt(fan_in)
        return jax.random.uniform(k, shape, jnp.float32, -bound, bound)

    return dict(
        conv1_w=u(ks[0], (32, 1, 3, 3), 1 * 9),
        conv1_b=u(ks[1], (32,), 1 * 9),
        conv2_w=u(ks[2], (64, 32, 3, 3), 32 * 9),
        conv2_b=u(ks[3], (64,), 32 * 9),
        fc1_w=u(ks[4], (512, 1024), 1024),
        fc1_b=u(ks[5], (512,), 1024),
        fc2_w=u(ks[6], (128, 512), 512),
        fc2_b=u(ks[7], (128,), 512),
        value_w=u(ks[8], (1, 128), 128),
        value_b=u(ks[9], (1,), 128),
        adv_w=u(ks[10], (output_size, 128), 128),
        adv_b=u(ks[11], (output_size,), 128),
    )


def net_forward_ref(params, x):
    # Pure-JAX reference with PyTorch semantics (correctness check).
    dn = ("NCHW", "OIHW", "NCHW")
    with jax.default_matmul_precision("highest"):
        h = jax.lax.conv_general_dilated(x, params["conv1_w"], (1, 1),
                                         ((1, 1), (1, 1)), dimension_numbers=dn)
        h = jnp.maximum(h + params["conv1_b"][None, :, None, None], 0.0)
        h = jax.lax.conv_general_dilated(h, params["conv2_w"], (1, 1),
                                         ((1, 1), (1, 1)), dimension_numbers=dn)
        h = jnp.maximum(h + params["conv2_b"][None, :, None, None], 0.0)
        h = h.reshape(h.shape[0], -1)
        h = jnp.maximum(h @ params["fc1_w"].T + params["fc1_b"], 0.0)
        h = jnp.maximum(h @ params["fc2_w"].T + params["fc2_b"], 0.0)
        value = h @ params["value_w"].T + params["value_b"]
        adv = h @ params["adv_w"].T + params["adv_b"]
    return value + adv - adv.mean(axis=1, keepdims=True)


if __name__ == "__main__":
    key = jax.random.PRNGKey(0)
    kx, kp = jax.random.split(key)

    B, OUTPUT_SIZE = 2, 6
    x = jax.random.uniform(kx, (B, 1, H, W), jnp.float32)   # NCHW, 64*16 = 1024 fc1 fan-in
    params = init_params(kp, OUTPUT_SIZE)

    prep = prepare_params(params, B)          # weight re-layout done once, outside the jit
    fwd = jax.jit(net_forward)
    q = jax.block_until_ready(fwd(prep, x))

    q_ref = net_forward_ref(params, x)
    if not np.allclose(np.asarray(q), np.asarray(q_ref), rtol=2e-2, atol=2e-2):
        raise AssertionError("Pallas kernel output mismatch vs JAX reference")

    print("KERNEL_OK")
</pallas_src>

<mosaic_0001>
module attributes {stable_mosaic.version = 11 : i64} {
  func.func @fused_net_kernel(%arg0: memref<32x9xf32, #tpu.memory_space<vmem>>, %arg1: memref<9x32x1xf32, #tpu.memory_space<vmem>>, %arg2: memref<9x32xf32, #tpu.memory_space<vmem>>, %arg3: memref<1x32xf32, #tpu.memory_space<vmem>>, %arg4: memref<288x64xbf16, #tpu.memory_space<vmem>>, %arg5: memref<1x64xf32, #tpu.memory_space<vmem>>, %arg6: memref<1024x512xbf16, #tpu.memory_space<vmem>>, %arg7: memref<1x512xf32, #tpu.memory_space<vmem>>, %arg8: memref<512x128xbf16, #tpu.memory_space<vmem>>, %arg9: memref<1x128xf32, #tpu.memory_space<vmem>>, %arg10: memref<128x7xf32, #tpu.memory_space<vmem>>, %arg11: memref<1x7xf32, #tpu.memory_space<vmem>>, %arg12: memref<2x6xf32, #tpu.memory_space<vmem>>, %arg13: memref<52x32xf32, #tpu.memory_space<vmem>>, %arg14: memref<32x288xf32, #tpu.memory_space<vmem>>, %arg15: memref<32x64xf32, #tpu.memory_space<vmem>>, %arg16: memref<2x1024xf32, #tpu.memory_space<vmem>>) attributes {dimension_semantics = [], scalar_prefetch = 0 : i64, scratch_operands = 4 : i64, tpu.core_type = #tpu.core_type<tc>} {
    %c0 = arith.constant 0 : index
    %c0_0 = arith.constant 0 : index
    %0 = vector.load %arg0[%c0, %c0_0] : memref<32x9xf32, #tpu.memory_space<vmem>>, vector<32x9xf32>
    %c0_1 = arith.constant 0 : index
    %c0_2 = arith.constant 0 : index
    %1 = vector.load %arg2[%c0_1, %c0_2] : memref<9x32xf32, #tpu.memory_space<vmem>>, vector<9x32xf32>
    %cst = arith.constant dense<0.000000e+00> : vector<32x32xf32>
    %2 = tpu.matmul %0, %1, %cst {dimension_numbers = #tpu.dot_dimension_numbers<[1], [0], [0], [1], [0, 0, 1, 1], [], []>} : vector<32x9xf32>, vector<9x32xf32>, vector<32x32xf32> -> vector<32x32xf32>
    %c0_3 = arith.constant 0 : index
    %c0_4 = arith.constant 0 : index
    %3 = vector.load %arg3[%c0_3, %c0_4] : memref<1x32xf32, #tpu.memory_space<vmem>>, vector<1x32xf32>
    %4 = vector.broadcast %3 : vector<1x32xf32> to vector<32x32xf32>
    %5 = arith.addf %2, %4 : vector<32x32xf32>
    %cst_5 = arith.constant 0.000000e+00 : f32
    %6 = vector.broadcast %cst_5 : f32 to vector<32x32xf32>
    %7 = arith.maximumf %5, %6 : vector<32x32xf32>
    %cst_6 = arith.constant 0.000000e+00 : f32
    %8 = vector.broadcast %cst_6 : f32 to vector<10x32xf32>
    %c0_7 = arith.constant 0 : index
    %c0_8 = arith.constant 0 : index
    %9 = vector.load %arg13[%c0_7, %c0_8] : memref<52x32xf32, #tpu.memory_space<vmem>>, vector<10x32xf32>
    tpu.vector_store %arg13[%c0_7, %c0_8], %8 {strides = array<i32>} : memref<52x32xf32, #tpu.memory_space<vmem>>, vector<10x32xf32>,
    %cst_9 = arith.constant 0.000000e+00 : f32
    %10 = vector.broadcast %cst_9 : f32 to vector<10x32xf32>
    %c42 = arith.constant 42 : index
    %c0_10 = arith.constant 0 : index
    %11 = vector.load %arg13[%c42, %c0_10] : memref<52x32xf32, #tpu.memory_space<vmem>>, vector<10x32xf32>
    tpu.vector_store %arg13[%c42, %c0_10], %10 {strides = array<i32>} : memref<52x32xf32, #tpu.memory_space<vmem>>, vector<10x32xf32>,
    %c10 = arith.constant 10 : index
    %c0_11 = arith.constant 0 : index
    %12 = vector.load %arg13[%c10, %c0_11] : memref<52x32xf32, #tpu.memory_space<vmem>>, vector<32x32xf32>
    tpu.vector_store %arg13[%c10, %c0_11], %7 {strides = array<i32>} : memref<52x32xf32, #tpu.memory_space<vmem>>, vector<32x32xf32>,
    %c0_12 = arith.constant 0 : index
    %c0_13 = arith.constant 0 : index
    %13 = vector.load %arg13[%c0_12, %c0_13] : memref<52x32xf32, #tpu.memory_space<vmem>>, vector<32x32xf32>
    %c0_14 = arith.constant 0 : index
    %c0_15 = arith.constant 0 : index
    %c0_16 = arith.constant 0 : index
    %14 = vector.load %arg1[%c0_14, %c0_15, %c0_16] : memref<9x32x1xf32, #tpu.memory_space<vmem>>, vector<1x32x1xf32>
    %15 = vector.shape_cast %14 : vector<1x32x1xf32> to vector<32x1xf32>
    %16 = vector.broadcast %15 : vector<32x1xf32> to vector<32x32xf32>
    %17 = arith.mulf %13, %16 : vector<32x32xf32>
    %c0_17 = arith.constant 0 : index
    %c0_18 = arith.constant 0 : index
    %18 = vector.load %arg14[%c0_17, %c0_18] : memref<32x288xf32, #tpu.memory_space<vmem>>, vector<32x32xf32>
    tpu.vector_store %arg14[%c0_17, %c0_18], %17 {strides = array<i32>} : memref<32x288xf32, #tpu.memory_space<vmem>>, vector<32x32xf32>,
    %c2 = arith.constant 2 : index
    %c0_19 = arith.constant 0 : index
    %19 = vector.load %arg13[%c2, %c0_19] : memref<52x32xf32, #tpu.memory_space<vmem>>, vector<32x32xf32>
    %c1 = arith.constant 1 : index
    %c0_20 = arith.constant 0 : index
    %c0_21 = arith.constant 0 : index
    %20 = vector.load %arg1[%c1, %c0_20, %c0_21] : memref<9x32x1xf32, #tpu.memory_space<vmem>>, vector<1x32x1xf32>
    %21 = vector.shape_cast %20 : vector<1x32x1xf32> to vector<32x1xf32>
    %22 = vector.broadcast %21 : vector<32x1xf32> to vector<32x32xf32>
    %23 = arith.mulf %19, %22 : vector<32x32xf32>
    %c0_22 = arith.constant 0 : index
    %c32 = arith.constant 32 : index
    %24 = vector.load %arg14[%c0_22, %c32] : memref<32x288xf32, #tpu.memory_space<vmem>>, vector<32x32xf32>
    tpu.vector_store %arg14[%c0_22, %c32], %23 {strides = array<i32>} : memref<32x288xf32, #tpu.memory_space<vmem>>, vector<32x32xf32>,
    %c4 = arith.constant 4 : index
    %c0_23 = arith.constant 0 : index
    %25 = vector.load %arg13[%c4, %c0_23] : memref<52x32xf32, #tpu.memory_space<vmem>>, vector<32x32xf32>
    %c2_24 = arith.constant 2 : index
    %c0_25 = arith.constant 0 : index
    %c0_26 = arith.constant 0 : index
    %26 = vector.load %arg1[%c2_24, %c0_25, %c0_26] : memref<9x32x1xf32, #tpu.memory_space<vmem>>, vector<1x32x1xf32>
    %27 = vector.shape_cast %26 : vector<1x32x1xf32> to vector<32x1xf32>
    %28 = vector.broadcast %27 : vector<32x1xf32> to vector<32x32xf32>
    %29 = arith.mulf %25, %28 : vector<32x32xf32>
    %c0_27 = arith.constant 0 : index
    %c64 = arith.constant 64 : index
    %30 = vector.load %arg14[%c0_27, %c64] : memref<32x288xf32, #tpu.memory_space<vmem>>, vector<32x32xf32>
    tpu.vector_store %arg14[%c0_27, %c64], %29 {strides = array<i32>} : memref<32x288xf32, #tpu.memory_space<vmem>>, vector<32x32xf32>,
    %c8 = arith.constant 8 : index
    %c0_28 = arith.constant 0 : index
    %31 = vector.load %arg13[%c8, %c0_28] : memref<52x32xf32, #tpu.memory_space<vmem>>, vector<32x32xf32>
    %c3 = arith.constant 3 : index
    %c0_29 = arith.constant 0 : index
    %c0_30 = arith.constant 0 : index
    %32 = vector.load %arg1[%c3, %c0_29, %c0_30] : memref<9x32x1xf32, #tpu.memory_space<vmem>>, vector<1x32x1xf32>
    %33 = vector.shape_cast %32 : vector<1x32x1xf32> to vector<32x1xf32>
    %34 = vector.broadcast %33 : vector<32x1xf32> to vector<32x32xf32>
    %35 = arith.mulf %31, %34 : vector<32x32xf32>
    %c0_31 = arith.constant 0 : index
    %c96 = arith.constant 96 : index
    %36 = vector.load %arg14[%c0_31, %c96] : memref<32x288xf32, #tpu.memory_space<vmem>>, vector<32x32xf32>
    tpu.vector_store %arg14[%c0_31, %c96], %35 {strides = array<i32>} : memref<32x288xf32, #tpu.memory_space<vmem>>, vector<32x32xf32>,
    %c10_32 = arith.constant 10 : index
    %c0_33 = arith.constant 0 : index
    %37 = vector.load %arg13[%c10_32, %c0_33] : memref<52x32xf32, #tpu.memory_space<vmem>>, vector<32x32xf32>
    %c4_34 = arith.constant 4 : index
    %c0_35 = arith.constant 0 : index
    %c0_36 = arith.constant 0 : index
    %38 = vector.load %arg1[%c4_34, %c0_35, %c0_36] : memref<9x32x1xf32, #tpu.memory_space<vmem>>, vector<1x32x1xf32>
    %39 = vector.shape_cast %38 : vector<1x32x1xf32> to vector<32x1xf32>
    %40 = vector.broadcast %39 : vector<32x1xf32> to vector<32x32xf32>
    %41 = arith.mulf %37, %40 : vector<32x32xf32>
    %c0_37 = arith.constant 0 : index
    %c128 = arith.constant 128 : index
    %42 = vector.load %arg14[%c0_37, %c128] : memref<32x288xf32, #tpu.memory_space<vmem>>, vector<32x32xf32>
    tpu.vector_store %arg14[%c0_37, %c128], %41 {strides = array<i32>} : memref<32x288xf32, #tpu.memory_space<vmem>>, vector<32x32xf32>,
    %c12 = arith.constant 12 : index
    %c0_38 = arith.constant 0 : index
    %43 = vector.load %arg13[%c12, %c0_38] : memref<52x32xf32, #tpu.memory_space<vmem>>, vector<32x32xf32>
    %c5 = arith.constant 5 : index
    %c0_39 = arith.constant 0 : index
    %c0_40 = arith.constant 0 : index
    %44 = vector.load %arg1[%c5, %c0_39, %c0_40] : memref<9x32x1xf32, #tpu.memory_space<vmem>>, vector<1x32x1xf32>
    %45 = vector.shape_cast %44 : vector<1x32x1xf32> to vector<32x1xf32>
    %46 = vector.broadcast %45 : vector<32x1xf32> to vector<32x32xf32>
    %47 = arith.mulf %43, %46 : vector<32x32xf32>
    %c0_41 = arith.constant 0 : index
    %c160 = arith.constant 160 : index
    %48 = vector.load %arg14[%c0_41, %c160] : memref<32x288xf32, #tpu.memory_space<vmem>>, vector<32x32xf32>
    tpu.vector_store %arg14[%c0_41, %c160], %47 {strides = array<i32>} : memref<32x288xf32, #tpu.memory_space<vmem>>, vector<32x32xf32>,
    %c16 = arith.constant 16 : index
    %c0_42 = arith.constant 0 : index
    %49 = vector.load %arg13[%c16, %c0_42] : memref<52x32xf32, #tpu.memory_space<vmem>>, vector<32x32xf32>
    %c6 = arith.constant 6 : index
    %c0_43 = arith.constant 0 : index
    %c0_44 = arith.constant 0 : index
    %50 = vector.load %arg1[%c6, %c0_43, %c0_44] : memref<9x32x1xf32, #tpu.memory_space<vmem>>, vector<1x32x1xf32>
    %51 = vector.shape_cast %50 : vector<1x32x1xf32> to vector<32x1xf32>
    %52 = vector.broadcast %51 : vector<32x1xf32> to vector<32x32xf32>
    %53 = arith.mulf %49, %52 : vector<32x32xf32>
    %c0_45 = arith.constant 0 : index
    %c192 = arith.constant 192 : index
    %54 = vector.load %arg14[%c0_45, %c192] : memref<32x288xf32, #tpu.memory_space<vmem>>, vector<32x32xf32>
    tpu.vector_store %arg14[%c0_45, %c192], %53 {strides = array<i32>} : memref<32x288xf32, #tpu.memory_space<vmem>>, vector<32x32xf32>,
    %c18 = arith.constant 18 : index
    %c0_46 = arith.constant 0 : index
    %55 = vector.load %arg13[%c18, %c0_46] : memref<52x32xf32, #tpu.memory_space<vmem>>, vector<32x32xf32>
    %c7 = arith.constant 7 : index
    %c0_47 = arith.constant 0 : index
    %c0_48 = arith.constant 0 : index
    %56 = vector.load %arg1[%c7, %c0_47, %c0_48] : memref<9x32x1xf32, #tpu.memory_space<vmem>>, vector<1x32x1xf32>
    %57 = vector.shape_cast %56 : vector<1x32x1xf32> to vector<32x1xf32>
    %58 = vector.broadcast %57 : vector<32x1xf32> to vector<32x32xf32>
    %59 = arith.mulf %55, %58 : vector<32x32xf32>
    %c0_49 = arith.constant 0 : index
    %c224 = arith.constant 224 : index
    %60 = vector.load %arg14[%c0_49, %c224] : memref<32x288xf32, #tpu.memory_space<vmem>>, vector<32x32xf32>
    tpu.vector_store %arg14[%c0_49, %c224], %59 {strides = array<i32>} : memref<32x288xf32, #tpu.memory_space<vmem>>, vector<32x32xf32>,
    %c20 = arith.constant 20 : index
    %c0_50 = arith.constant 0 : index
    %61 = vector.load %arg13[%c20, %c0_50] : memref<52x32xf32, #tpu.memory_space<vmem>>, vector<32x32xf32>
    %c8_51 = arith.constant 8 : index
    %c0_52 = arith.constant 0 : index
    %c0_53 = arith.constant 0 : index
    %62 = vector.load %arg1[%c8_51, %c0_52, %c0_53] : memref<9x32x1xf32, #tpu.memory_space<vmem>>, vector<1x32x1xf32>
    %63 = vector.shape_cast %62 : vector<1x32x1xf32> to vector<32x1xf32>
    %64 = vector.broadcast %63 : vector<32x1xf32> to vector<32x32xf32>
    %65 = arith.mulf %61, %64 : vector<32x32xf32>
    %c0_54 = arith.constant 0 : index
    %c256 = arith.constant 256 : index
    %66 = vector.load %arg14[%c0_54, %c256] : memref<32x288xf32, #tpu.memory_space<vmem>>, vector<32x32xf32>
    tpu.vector_store %arg14[%c0_54, %c256], %65 {strides = array<i32>} : memref<32x288xf32, #tpu.memory_space<vmem>>, vector<32x32xf32>,
    %c0_55 = arith.constant 0 : index
    %c0_56 = arith.constant 0 : index
    %67 = vector.load %arg14[%c0_55, %c0_56] : memref<32x288xf32, #tpu.memory_space<vmem>>, vector<32x288xf32>
    %68 = arith.truncf %67 : vector<32x288xf32> to vector<32x288xbf16>
    %c0_57 = arith.constant 0 : index
    %c0_58 = arith.constant 0 : index
    %69 = vector.load %arg4[%c0_57, %c0_58] : memref<288x64xbf16, #tpu.memory_space<vmem>>, vector<288x64xbf16>
    %cst_59 = arith.constant dense<0.000000e+00> : vector<32x64xf32>
    %70 = tpu.matmul %68, %69, %cst_59 {dimension_numbers = #tpu.dot_dimension_numbers<[1], [0], [0], [1], [0, 0, 1, 1], [], []>} : vector<32x288xbf16>, vector<288x64xbf16>, vector<32x64xf32> -> vector<32x64xf32>
    %c0_60 = arith.constant 0 : index
    %c0_61 = arith.constant 0 : index
    %71 = vector.load %arg5[%c0_60, %c0_61] : memref<1x64xf32, #tpu.memory_space<vmem>>, vector<1x64xf32>
    %72 = vector.broadcast %71 : vector<1x64xf32> to vector<32x64xf32>
    %73 = arith.addf %70, %72 : vector<32x64xf32>
    %cst_62 = arith.constant 0.000000e+00 : f32
    %74 = vector.broadcast %cst_62 : f32 to vector<32x64xf32>
    %75 = arith.maximumf %73, %74 : vector<32x64xf32>
    %c0_63 = arith.constant 0 : index
    %c0_64 = arith.constant 0 : index
    %76 = vector.load %arg15[%c0_63, %c0_64] : memref<32x64xf32, #tpu.memory_space<vmem>>, vector<32x64xf32>
    tpu.vector_store %arg15[%c0_63, %c0_64], %75 {strides = array<i32>} : memref<32x64xf32, #tpu.memory_space<vmem>>, vector<32x64xf32>,
    %c0_65 = arith.constant 0 : index
    %c0_66 = arith.constant 0 : index
    %77 = vector.load %arg15[%c0_65, %c0_66] : memref<32x64xf32, #tpu.memory_space<vmem>>, vector<2x64xf32>
    %c0_67 = arith.constant 0 : index
    %c0_68 = arith.constant 0 : index
    %78 = vector.load %arg16[%c0_67, %c0_68] : memref<2x1024xf32, #tpu.memory_space<vmem>>, vector<2x64xf32>
    tpu.vector_store %arg16[%c0_67, %c0_68], %77 {strides = array<i32>} : memref<2x1024xf32, #tpu.memory_space<vmem>>, vector<2x64xf32>,
    %c2_69 = arith.constant 2 : index
    %c0_70 = arith.constant 0 : index
    %79 = vector.load %arg15[%c2_69, %c0_70] : memref<32x64xf32, #tpu.memory_space<vmem>>, vector<2x64xf32>
    %c0_71 = arith.constant 0 : index
    %c64_72 = arith.constant 64 : index
    %80 = vector.load %arg16[%c0_71, %c64_72] : memref<2x1024xf32, #tpu.memory_space<vmem>>, vector<2x64xf32>
    tpu.vector_store %arg16[%c0_71, %c64_72], %79 {strides = array<i32>} : memref<2x1024xf32, #tpu.memory_space<vmem>>, vector<2x64xf32>,
    %c4_73 = arith.constant 4 : index
    %c0_74 = arith.constant 0 : index
    %81 = vector.load %arg15[%c4_73, %c0_74] : memref<32x64xf32, #tpu.memory_space<vmem>>, vector<2x64xf32>
    %c0_75 = arith.constant 0 : index
    %c128_76 = arith.constant 128 : index
    %82 = vector.load %arg16[%c0_75, %c128_76] : memref<2x1024xf32, #tpu.memory_space<vmem>>, vector<2x64xf32>
    tpu.vector_store %arg16[%c0_75, %c128_76], %81 {strides = array<i32>} : memref<2x1024xf32, #tpu.memory_space<vmem>>, vector<2x64xf32>,
    %c6_77 = arith.constant 6 : index
    %c0_78 = arith.constant 0 : index
    %83 = vector.load %arg15[%c6_77, %c0_78] : memref<32x64xf32, #tpu.memory_space<vmem>>, vector<2x64xf32>
    %c0_79 = arith.constant 0 : index
    %c192_80 = arith.constant 192 : index
    %84 = vector.load %arg16[%c0_79, %c192_80] : memref<2x1024xf32, #tpu.memory_space<vmem>>, vector<2x64xf32>
    tpu.vector_store %arg16[%c0_79, %c192_80], %83 {strides = array<i32>} : memref<2x1024xf32, #tpu.memory_space<vmem>>, vector<2x64xf32>,
    %c8_81 = arith.constant 8 : index
    %c0_82 = arith.constant 0 : index
    %85 = vector.load %arg15[%c8_81, %c0_82] : memref<32x64xf32, #tpu.memory_space<vmem>>, vector<2x64xf32>
    %c0_83 = arith.constant 0 : index
    %c256_84 = arith.constant 256 : index
    %86 = vector.load %arg16[%c0_83, %c256_84] : memref<2x1024xf32, #tpu.memory_space<vmem>>, vector<2x64xf32>
    tpu.vector_store %arg16[%c0_83, %c256_84], %85 {strides = array<i32>} : memref<2x1024xf32, #tpu.memory_space<vmem>>, vector<2x64xf32>,
    %c10_85 = arith.constant 10 : index
    %c0_86 = arith.constant 0 : index
    %87 = vector.load %arg15[%c10_85, %c0_86] : memref<32x64xf32, #tpu.memory_space<vmem>>, vector<2x64xf32>
    %c0_87 = arith.constant 0 : index
    %c320 = arith.constant 320 : index
    %88 = vector.load %arg16[%c0_87, %c320] : memref<2x1024xf32, #tpu.memory_space<vmem>>, vector<2x64xf32>
    tpu.vector_store %arg16[%c0_87, %c320], %87 {strides = array<i32>} : memref<2x1024xf32, #tpu.memory_space<vmem>>, vector<2x64xf32>,
    %c12_88 = arith.constant 12 : index
    %c0_89 = arith.constant 0 : index
    %89 = vector.load %arg15[%c12_88, %c0_89] : memref<32x64xf32, #tpu.memory_space<vmem>>, vector<2x64xf32>
    %c0_90 = arith.constant 0 : index
    %c384 = arith.constant 384 : index
    %90 = vector.load %arg16[%c0_90, %c384] : memref<2x1024xf32, #tpu.memory_space<vmem>>, vector<2x64xf32>
    tpu.vector_store %arg16[%c0_90, %c384], %89 {strides = array<i32>} : memref<2x1024xf32, #tpu.memory_space<vmem>>, vector<2x64xf32>,
    %c14 = arith.constant 14 : index
    %c0_91 = arith.constant 0 : index
    %91 = vector.load %arg15[%c14, %c0_91] : memref<32x64xf32, #tpu.memory_space<vmem>>, vector<2x64xf32>
    %c0_92 = arith.constant 0 : index
    %c448 = arith.constant 448 : index
    %92 = vector.load %arg16[%c0_92, %c448] : memref<2x1024xf32, #tpu.memory_space<vmem>>, vector<2x64xf32>
    tpu.vector_store %arg16[%c0_92, %c448], %91 {strides = array<i32>} : memref<2x1024xf32, #tpu.memory_space<vmem>>, vector<2x64xf32>,
    %c16_93 = arith.constant 16 : index
    %c0_94 = arith.constant 0 : index
    %93 = vector.load %arg15[%c16_93, %c0_94] : memref<32x64xf32, #tpu.memory_space<vmem>>, vector<2x64xf32>
    %c0_95 = arith.constant 0 : index
    %c512 = arith.constant 512 : index
    %94 = vector.load %arg16[%c0_95, %c512] : memref<2x1024xf32, #tpu.memory_space<vmem>>, vector<2x64xf32>
    tpu.vector_store %arg16[%c0_95, %c512], %93 {strides = array<i32>} : memref<2x1024xf32, #tpu.memory_space<vmem>>, vector<2x64xf32>,
    %c18_96 = arith.constant 18 : index
    %c0_97 = arith.constant 0 : index
    %95 = vector.load %arg15[%c18_96, %c0_97] : memref<32x64xf32, #tpu.memory_space<vmem>>, vector<2x64xf32>
    %c0_98 = arith.constant 0 : index
    %c576 = arith.constant 576 : index
    %96 = vector.load %arg16[%c0_98, %c576] : memref<2x1024xf32, #tpu.memory_space<vmem>>, vector<2x64xf32>
    tpu.vector_store %arg16[%c0_98, %c576], %95 {strides = array<i32>} : memref<2x1024xf32, #tpu.memory_space<vmem>>, vector<2x64xf32>,
    %c20_99 = arith.constant 20 : index
    %c0_100 = arith.constant 0 : index
    %97 = vector.load %arg15[%c20_99, %c0_100] : memref<32x64xf32, #tpu.memory_space<vmem>>, vector<2x64xf32>
    %c0_101 = arith.constant 0 : index
    %c640 = arith.constant 640 : index
    %98 = vector.load %arg16[%c0_101, %c640] : memref<2x1024xf32, #tpu.memory_space<vmem>>, vector<2x64xf32>
    tpu.vector_store %arg16[%c0_101, %c640], %97 {strides = array<i32>} : memref<2x1024xf32, #tpu.memory_space<vmem>>, vector<2x64xf32>,
    %c22 = arith.constant 22 : index
    %c0_102 = arith.constant 0 : index
    %99 = vector.load %arg15[%c22, %c0_102] : memref<32x64xf32, #tpu.memory_space<vmem>>, vector<2x64xf32>
    %c0_103 = arith.constant 0 : index
    %c704 = arith.constant 704 : index
    %100 = vector.load %arg16[%c0_103, %c704] : memref<2x1024xf32, #tpu.memory_space<vmem>>, vector<2x64xf32>
    tpu.vector_store %arg16[%c0_103, %c704], %99 {strides = array<i32>} : memref<2x1024xf32, #tpu.memory_space<vmem>>, vector<2x64xf32>,
    %c24 = arith.constant 24 : index
    %c0_104 = arith.constant 0 : index
    %101 = vector.load %arg15[%c24, %c0_104] : memref<32x64xf32, #tpu.memory_space<vmem>>, vector<2x64xf32>
    %c0_105 = arith.constant 0 : index
    %c768 = arith.constant 768 : index
    %102 = vector.load %arg16[%c0_105, %c768] : memref<2x1024xf32, #tpu.memory_space<vmem>>, vector<2x64xf32>
    tpu.vector_store %arg16[%c0_105, %c768], %101 {strides = array<i32>} : memref<2x1024xf32, #tpu.memory_space<vmem>>, vector<2x64xf32>,
    %c26 = arith.constant 26 : index
    %c0_106 = arith.constant 0 : index
    %103 = vector.load %arg15[%c26, %c0_106] : memref<32x64xf32, #tpu.memory_space<vmem>>, vector<2x64xf32>
    %c0_107 = arith.constant 0 : index
    %c832 = arith.constant 832 : index
    %104 = vector.load %arg16[%c0_107, %c832] : memref<2x1024xf32, #tpu.memory_space<vmem>>, vector<2x64xf32>
    tpu.vector_store %arg16[%c0_107, %c832], %103 {strides = array<i32>} : memref<2x1024xf32, #tpu.memory_space<vmem>>, vector<2x64xf32>,
    %c28 = arith.constant 28 : index
    %c0_108 = arith.constant 0 : index
    %105 = vector.load %arg15[%c28, %c0_108] : memref<32x64xf32, #tpu.memory_space<vmem>>, vector<2x64xf32>
    %c0_109 = arith.constant 0 : index
    %c896 = arith.constant 896 : index
    %106 = vector.load %arg16[%c0_109, %c896] : memref<2x1024xf32, #tpu.memory_space<vmem>>, vector<2x64xf32>
    tpu.vector_store %arg16[%c0_109, %c896], %105 {strides = array<i32>} : memref<2x1024xf32, #tpu.memory_space<vmem>>, vector<2x64xf32>,
    %c30 = arith.constant 30 : index
    %c0_110 = arith.constant 0 : index
    %107 = vector.load %arg15[%c30, %c0_110] : memref<32x64xf32, #tpu.memory_space<vmem>>, vector<2x64xf32>
    %c0_111 = arith.constant 0 : index
    %c960 = arith.constant 960 : index
    %108 = vector.load %arg16[%c0_111, %c960] : memref<2x1024xf32, #tpu.memory_space<vmem>>, vector<2x64xf32>
    tpu.vector_store %arg16[%c0_111, %c960], %107 {strides = array<i32>} : memref<2x1024xf32, #tpu.memory_space<vmem>>, vector<2x64xf32>,
    %c0_112 = arith.constant 0 : index
    %c0_113 = arith.constant 0 : index
    %109 = vector.load %arg16[%c0_112, %c0_113] : memref<2x1024xf32, #tpu.memory_space<vmem>>, vector<2x1024xf32>
    %110 = arith.truncf %109 : vector<2x1024xf32> to vector<2x1024xbf16>
    %c0_114 = arith.constant 0 : index
    %c0_115 = arith.constant 0 : index
    %111 = vector.load %arg6[%c0_114, %c0_115] : memref<1024x512xbf16, #tpu.memory_space<vmem>>, vector<1024x512xbf16>
    %cst_116 = arith.constant dense<0.000000e+00> : vector<2x512xf32>
    %112 = tpu.matmul %110, %111, %cst_116 {dimension_numbers = #tpu.dot_dimension_numbers<[1], [0], [0], [1], [0, 0, 1, 1], [], []>} : vector<2x1024xbf16>, vector<1024x512xbf16>, vector<2x512xf32> -> vector<2x512xf32>
    %c0_117 = arith.constant 0 : index
    %c0_118 = arith.constant 0 : index
    %113 = vector.load %arg7[%c0_117, %c0_118] : memref<1x512xf32, #tpu.memory_space<vmem>>, vector<1x512xf32>
    %114 = vector.broadcast %113 : vector<1x512xf32> to vector<2x512xf32>
    %115 = arith.addf %112, %114 : vector<2x512xf32>
    %cst_119 = arith.constant 0.000000e+00 : f32
    %116 = vector.broadcast %cst_119 : f32 to vector<2x512xf32>
    %117 = arith.maximumf %115, %116 : vector<2x512xf32>
    %118 = arith.truncf %117 : vector<2x512xf32> to vector<2x512xbf16>
    %c0_120 = arith.constant 0 : index
    %c0_121 = arith.constant 0 : index
    %119 = vector.load %arg8[%c0_120, %c0_121] : memref<512x128xbf16, #tpu.memory_space<vmem>>, vector<512x128xbf16>
    %cst_122 = arith.constant dense<0.000000e+00> : vector<2x128xf32>
    %120 = tpu.matmul %118, %119, %cst_122 {dimension_numbers = #tpu.dot_dimension_numbers<[1], [0], [0], [1], [0, 0, 1, 1], [], []>} : vector<2x512xbf16>, vector<512x128xbf16>, vector<2x128xf32> -> vector<2x128xf32>
    %c0_123 = arith.constant 0 : index
    %c0_124 = arith.constant 0 : index
    %121 = vector.load %arg9[%c0_123, %c0_124] : memref<1x128xf32, #tpu.memory_space<vmem>>, vector<1x128xf32>
    %122 = vector.broadcast %121 : vector<1x128xf32> to vector<2x128xf32>
    %123 = arith.addf %120, %122 : vector<2x128xf32>
    %cst_125 = arith.constant 0.000000e+00 : f32
    %124 = vector.broadcast %cst_125 : f32 to vector<2x128xf32>
    %125 = arith.maximumf %123, %124 : vector<2x128xf32>
    %c0_126 = arith.constant 0 : index
    %c0_127 = arith.constant 0 : index
    %126 = vector.load %arg10[%c0_126, %c0_127] : memref<128x7xf32, #tpu.memory_space<vmem>>, vector<128x7xf32>
    %cst_128 = arith.constant dense<0.000000e+00> : vector<2x7xf32>
    %127 = tpu.matmul %125, %126, %cst_128 {dimension_numbers = #tpu.dot_dimension_numbers<[1], [0], [0], [1], [0, 0, 1, 1], [], []>} : vector<2x128xf32>, vector<128x7xf32>, vector<2x7xf32> -> vector<2x7xf32>
    %c0_129 = arith.constant 0 : index
    %c0_130 = arith.constant 0 : index
    %128 = vector.load %arg11[%c0_129, %c0_130] : memref<1x7xf32, #tpu.memory_space<vmem>>, vector<1x7xf32>
    %129 = vector.broadcast %128 : vector<1x7xf32> to vector<2x7xf32>
    %130 = arith.addf %127, %129 : vector<2x7xf32>
    %131 = vector.extract_strided_slice %130 {offsets = [0, 0], sizes = [2, 1], strides = [1, 1]} : vector<2x7xf32> to vector<2x1xf32>
    %132 = vector.extract_strided_slice %130 {offsets = [0, 1], sizes = [2, 6], strides = [1, 1]} : vector<2x7xf32> to vector<2x6xf32>
    %133 = vector.broadcast %131 : vector<2x1xf32> to vector<2x6xf32>
    %134 = arith.addf %133, %132 : vector<2x6xf32>
    %cst_131 = arith.constant dense<0.000000e+00> : vector<2xf32>
    %135 = vector.multi_reduction <add>, %132, %cst_131 [1] : vector<2x6xf32> to vector<2xf32>
    %136 = vector.shape_cast %135 : vector<2xf32> to vector<2x1xf32>
    %cst_132 = arith.constant 6.000000e+00 : f32
    %137 = vector.broadcast %cst_132 : f32 to vector<2x1xf32>
    %138 = arith.divf %136, %137 : vector<2x1xf32>
    %139 = vector.broadcast %138 : vector<2x1xf32> to vector<2x6xf32>
    %140 = arith.subf %134, %139 : vector<2x6xf32>
    %c0_133 = arith.constant 0 : index
    %c0_134 = arith.constant 0 : index
    %141 = vector.load %arg12[%c0_133, %c0_134] : memref<2x6xf32, #tpu.memory_space<vmem>>, vector<2x6xf32>
    tpu.vector_store %arg12[%c0_133, %c0_134], %140 {strides = array<i32>} : memref<2x6xf32, #tpu.memory_space<vmem>>, vector<2x6xf32>,
    return
  }
}

</mosaic_0001>

<llo_original>
// kernel: net_forward.1
$region0: #{net_forward.1}
  #allocation0 [shape = 'u32[]', space=smem, size = 0x4, offset = 0x4, fixed_abs, tag = 'smem constant byte address 0x4 - core index']
  #allocation1 [shape = 'u32[144,128]{1,0:T(1,128)}', space=vmem, size = 0x12000, scoped, tag = 'internal scratch']
  #allocation2 [shape = 'f32[52,32]{1,0:T(8,128)}', space=vmem, size = 0x7000, scoped, tag = 'scratch operand']
  #allocation3 [shape = 'f32[32,288]{1,0:T(8,128)}', space=vmem, size = 0xc000, scoped, tag = 'scratch operand']
  #allocation4 [shape = 'f32[32,64]{1,0:T(8,128)}', space=vmem, size = 0x4000, scoped, tag = 'scratch operand']
  #allocation5 [shape = 'f32[2,1024]{1,0:T(2,128)}', space=vmem, size = 0x2000, scoped, tag = 'scratch operand']
  %s0 = inlined_call_operand.vmem [shape: f32[32,9], index: 0, kind: input, shape index: {}]
  %s1 = inlined_call_operand.vmem [shape: f32[9,32,1], index: 1, kind: input, shape index: {}]
  %s2 = inlined_call_operand.vmem [shape: f32[9,32], index: 2, kind: input, shape index: {}]
  %s3 = inlined_call_operand.vmem [shape: f32[1,32], index: 3, kind: input, shape index: {}]
  %s4 = inlined_call_operand.vmem [shape: bf16[288,64], index: 4, kind: input, shape index: {}]
  %s5 = inlined_call_operand.vmem [shape: f32[1,64], index: 5, kind: input, shape index: {}]
  %s6 = inlined_call_operand.hbm [shape: bf16[1024,512], index: 6, kind: input, shape index: {}]
  %s7 = inlined_call_operand.vmem [shape: f32[1,512], index: 7, kind: input, shape index: {}]
  %s8 = inlined_call_operand.vmem [shape: bf16[512,128], index: 8, kind: input, shape index: {}]
  %s9 = inlined_call_operand.vmem [shape: f32[1,128], index: 9, kind: input, shape index: {}]
  %s10 = inlined_call_operand.vmem [shape: f32[128,7], index: 10, kind: input, shape index: {}]
  %s11 = inlined_call_operand.vmem [shape: f32[1,7], index: 11, kind: input, shape index: {}]
  %s12 = inlined_call_operand.hbm [shape: f32[2,6], index: 12, kind: output, shape index: {}]
  %s13 = sld [smem:[#allocation0]]
  $region62: #{net_forward.1} parent=0
    _
  %s15 = ssub.s32 1, %s13
  %s16 = scalar_select 0, %s15, %s13
  $region1: #{net_forward.1} parent=0
    #allocation6 [shape = 'u8[1048576]{0}', space=vmem, size = 0x100000, scoped, tag = 'input window, operand 6, single buffered']
    #allocation7 [shape = 's32[1]{0}', space=sflag, size = 0x4, scoped, tag = 'scoped memory for net_forward.1']
    #allocation8 [shape = 's32[1]{0}', space=sflag, size = 0x4, scoped, tag = 'scoped memory for net_forward.1']
    #allocation9 [shape = 'u8[1024]{0}', space=vmem, size = 0x400, scoped, tag = 'output window, operand 0, single buffered']
    %17 = vsyncpa [#allocation7], 0
    %18 = vsyncpa [#allocation8], 0
    // Predicated region
    $region2: #{net_forward.1} parent=1 // pred_check
      _
    $region3: #{net_forward.1} parent=1 // pred_check_branch
      %20 = sbr.rel (0) target = $region5
    $region4: #{net_forward.1} parent=1 // pred_region
      _
    $region5: #{net_forward.1} parent=1 // pred_fallthru
      _
    // Predicated region
    $region6: #{net_forward.1} parent=1 // pred_check
      _
    $region7: #{net_forward.1} parent=1 // pred_check_branch
      %22 = sbr.rel (0) target = $region9
    $region8: #{net_forward.1} parent=1 // pred_region
      _
    $region9: #{net_forward.1} parent=1 // pred_fallthru
      _
    // Predicated region
    $region10: #{net_forward.1} parent=1 // pred_check
      _
    $region11: #{net_forward.1} parent=1 // pred_check_branch
      %24 = sbr.rel (0) target = $region13
    $region12: #{net_forward.1} parent=1 // pred_region
      _
    $region13: #{net_forward.1} parent=1 // pred_fallthru
      _
    // Predicated region
    $region14: #{net_forward.1} parent=1 // pred_check
      _
    $region15: #{net_forward.1} parent=1 // pred_check_branch
      %26 = sbr.rel (0) target = $region17
    $region16: #{net_forward.1} parent=1 // pred_region
      _
    $region17: #{net_forward.1} parent=1 // pred_fallthru
      _
    // Predicated region
    $region18: #{net_forward.1} parent=1 // pred_check
      _
    $region19: #{net_forward.1} parent=1 // pred_check_branch
      %28 = sbr.rel (0) target = $region21
    $region20: #{net_forward.1} parent=1 // pred_region
      _
    $region21: #{net_forward.1} parent=1 // pred_fallthru
      _
    // Predicated region
    $region22: #{net_forward.1} parent=1 // pred_check
      _
    $region23: #{net_forward.1} parent=1 // pred_check_branch
      %30 = sbr.rel (0) target = $region25
    $region24: #{net_forward.1} parent=1 // pred_region
      _
    $region25: #{net_forward.1} parent=1 // pred_fallthru
      _
    // Predicated region
    $region26: #{net_forward.1} parent=1 // pred_check
      _
    $region27: #{net_forward.1} parent=1 // pred_check_branch
      %32 = sbr.rel (0) target = $region29
    $region28: #{net_forward.1} parent=1 // pred_region
      %s34 = ssub.s32 32768, 32768
      %35 = vsyncadd [#allocation7], %s34
      %s36 = sshll.u32 [#allocation6], 4
      %s37 = int_to_ptr.vmem [resolvable:$true] %s36
      %42 = dma.hbm_to_vmem [thread:$0]  %s6, 32768, %s37, [#allocation7], 256, 256, 16
    $region29: #{net_forward.1} parent=1 // pred_fallthru
      _
    // Predicated region
    $region30: #{net_forward.1} parent=1 // pred_check
      _
    $region31: #{net_forward.1} parent=1 // pred_check_branch
      %44 = sbr.rel (0) target = $region33
    $region32: #{net_forward.1} parent=1 // pred_region
      _
    $region33: #{net_forward.1} parent=1 // pred_fallthru
      _
    // Predicated region
    $region34: #{net_forward.1} parent=1 // pred_check
      _
    $region35: #{net_forward.1} parent=1 // pred_check_branch
      %46 = sbr.rel (0) target = $region37
    $region36: #{net_forward.1} parent=1 // pred_region
      _
    $region37: #{net_forward.1} parent=1 // pred_fallthru
      _
    // Predicated region
    $region38: #{net_forward.1} parent=1 // pred_check
      _
    $region39: #{net_forward.1} parent=1 // pred_check_branch
      %48 = sbr.rel (0) target = $region41
    $region40: #{net_forward.1} parent=1 // pred_region
      _
    $region41: #{net_forward.1} parent=1 // pred_fallthru
      _
    // Predicated region
    $region42: #{net_forward.1} parent=1 // pred_check
      _
    $region43: #{net_forward.1} parent=1 // pred_check_branch
      %50 = sbr.rel (0) target = $region45
    $region44: #{net_forward.1} parent=1 // pred_region
      _
    $region45: #{net_forward.1} parent=1 // pred_fallthru
      _
    // Predicated region
    $region46: #{net_forward.1} parent=1 // pred_check
      _
    $region47: #{net_forward.1} parent=1 // pred_check_branch
      %52 = sbr.rel (0) target = $region49
    $region48: #{net_forward.1} parent=1 // pred_region
      _
    $region49: #{net_forward.1} parent=1 // pred_fallthru
      _
    // Predicated region
    $region50: #{net_forward.1} parent=1 // pred_check
      _
    $region51: #{net_forward.1} parent=1 // pred_check_branch
      %54 = sbr.rel (0) target = $region53
    $region52: #{net_forward.1} parent=1 // pred_region
      %55 = dma.done [#allocation7], 32768
    $region53: #{net_forward.1} parent=1 // pred_fallthru
      _
    %v57 = vld [vmem:[%s0] sm:$0xff]
    %v58 = vld [vmem:[%s0 + $0x8] sm:$0xff]
    %v59 = vld [vmem:[%s0 + $0x10] sm:$0xff]
    %v60 = vld [vmem:[%s0 + $0x18] sm:$0xff]
    %v61 = vld [vmem:[%s2] sm:$0xff]
    %v62 = vld [vmem:[%s2 + $0x8] sm:$0x1]
    %v63 = vld [vmem:[%s3] sm:$0x1]
    %v65 = vlaneseq
    %v66 = vshrl.u32 %v65, 7
    %v67 = vsub.s32 0, %v66
    %v68 = vrot.slane %v63, %v67
    %vm70 = vcmask 72704
    %v72 = vsel %vm70, %v57, 0
    %v75 = vsel %vm70, %v58, 0
    %v78 = vsel %vm70, %v59, 0
    %v81 = vsel %vm70, %v60, 0
    %vm83 = vcmask 1040384
    %v85 = vsel %vm83, %v62, 0
    %87 = vmatprep.subr.mxu0 0.0
    %88 = vmatpush1.msra.mxu0 %v61
    %89 = vmatprep.subr.mxu0 0.0
    %90 = vmatpush1.msra.mxu0 %v85
    %91 = vmatprep.subr.mxu0 0.0
    %92 = vmatpush1.msra.mxu0 0.0
    %93 = vmatprep.subr.mxu0 0.0
    %94 = vmatpush1.msra.mxu0 0.0
    %95 = vmatprep.subr.mxu0 0.0
    %96 = vmatpush1.msra.mxu0 0.0
    %97 = vmatprep.subr.mxu0 0.0
    %98 = vmatpush1.msra.mxu0 0.0
    %99 = vmatprep.subr.mxu0 0.0
    %100 = vmatpush1.msra.mxu0 0.0
    %101 = vmatprep.subr.mxu0 0.0
    %102 = vmatpush1.msra.mxu0 0.0
    %103 = vmatprep.subr.mxu0 0.0
    %104 = vmatpush1.msra.mxu0 0.0
    %105 = vmatprep.subr.mxu0 0.0
    %106 = vmatpush1.msra.mxu0 0.0
    %107 = vmatprep.subr.mxu0 0.0
    %108 = vmatpush1.msra.mxu0 0.0
    %109 = vmatprep.subr.mxu0 0.0
    %110 = vmatpush1.msra.mxu0 0.0
    %111 = vmatprep.subr.mxu0 0.0
    %112 = vmatpush1.msra.mxu0 0.0
    %113 = vmatprep.subr.mxu0 0.0
    %114 = vmatpush1.msra.mxu0 0.0
    %115 = vmatprep.subr.mxu0 0.0
    %116 = vmatpush1.msra.mxu0 0.0
    %117 = vmatprep.subr.mxu0 0.0
    %118 = vmatpush1.msra.mxu0 0.0
    %119 = vmatprep.subr.mxu0 0.0
    %120 = vmatpush1.msra.mxu0 0.0
    %121 = vmatprep.subr.mxu0 0.0
    %122 = vmatpush1.msra.mxu0 0.0
    %123 = vmatprep.subr.mxu0 0.0
    %124 = vmatpush1.msra.mxu0 0.0
    %125 = vmatprep.subr.mxu0 0.0
    %126 = vmatpush1.msra.mxu0 0.0
    %127 = vmatprep.subr.mxu0 0.0
    %128 = vmatpush1.msra.mxu0 0.0
    %129 = vmatprep.subr.mxu0 0.0
    %130 = vmatpush1.msra.mxu0 0.0
    %131 = vmatprep.subr.mxu0 0.0
    %132 = vmatpush1.msra.mxu0 0.0
    %133 = vmatprep.subr.mxu0 0.0
    %134 = vmatpush1.msra.mxu0 0.0
    %135 = vmatprep.subr.mxu0 0.0
    %136 = vmatpush1.msra.mxu0 0.0
    %137 = vmatprep.subr.mxu0 0.0
    %138 = vmatpush1.msra.mxu0 0.0
    %139 = vmatprep.subr.mxu0 0.0
    %140 = vmatpush1.msra.mxu0 0.0
    %141 = vmatprep.subr.mxu0 0.0
    %142 = vmatpush1.msra.mxu0 0.0
    %143 = vmatprep.subr.mxu0 0.0
    %144 = vmatpush1.msra.mxu0 0.0
    %145 = vmatprep.subr.mxu0 0.0
    %146 = vmatpush1.msra.mxu0 0.0
    %147 = vmatprep.subr.mxu0 0.0
    %148 = vmatpush1.msra.mxu0 0.0
    %149 = vmatprep.subr.mxu0 0.0
    %150 = vmatpush1.msra.mxu0 0.0
    %151 = vmatprep.mubr.f32.mxu0 0.0
    %152 = vmatmul.mubr.f32.gmra.mrb[0].mxu0 %v72
    %v153 = vpop.f32.mrb[0].mxu0
    %v154 = vadd.f32 %v68, %v153
    %v155 = vpop.f32.mrb[0].mxu0
    %156 = vmatprep.mubr.f32.mxu0 0.0
    %157 = vmatmul.mubr.f32.gmra.mrb[0].mxu0 %v75
    %v158 = vpop.f32.mrb[0].mxu0
    %v159 = vadd.f32 %v68, %v158
    %v160 = vpop.f32.mrb[0].mxu0
    %161 = vmatprep.mubr.f32.mxu0 0.0
    %162 = vmatmul.mubr.f32.gmra.mrb[0].mxu0 %v78
    %v163 = vpop.f32.mrb[0].mxu0
    %v164 = vadd.f32 %v68, %v163
    %v165 = vpop.f32.mrb[0].mxu0
    %166 = vmatprep.mubr.f32.mxu0 0.0
    %167 = vmatmul.mubr.f32.gmra.mrb[0].mxu0 %v81
    %v168 = vpop.f32.mrb[0].mxu0
    %v169 = vadd.f32 %v68, %v168
    %v170 = vpop.f32.mrb[0].mxu0
    %171 = vdwg.mxu0
    %v172 = vmax.f32 %v154, 0.0
    %v173 = vmax.f32 %v159, 0.0
    %v174 = vmax.f32 %v164, 0.0
    %v175 = vmax.f32 %v169, 0.0
    %vm176 = vcmask 261120
    %177 = vst.msk [vmem:[#allocation2] sm:$0xff] %vm176, 0.0
    %vm178 = vcmask 254976
    %179 = vst.msk [vmem:[#allocation2 + $0x8] sm:$0x3] %vm178, 0.0
    %180 = vst.msk [vmem:[#allocation2 + $0x2a] sm:$0xff] %vm176, 0.0
    %181 = vst.msk [vmem:[#allocation2 + $0x32] sm:$0x3] %vm178, 0.0
    %182 = vst.msk [vmem:[#allocation2 + $0xa] sm:$0xff] %vm176, %v172
    %183 = vst.msk [vmem:[#allocation2 + $0x12] sm:$0xff] %vm176, %v173
    %184 = vst.msk [vmem:[#allocation2 + $0x1a] sm:$0xff] %vm176, %v174
    %185 = vst.msk [vmem:[#allocation2 + $0x22] sm:$0xff] %vm176, %v175
    %v186 = vld [vmem:[#allocation2] sm:$0xff]
    %v187 = vld [vmem:[#allocation2 + $0x8] sm:$0xff]
    %v188 = vld [vmem:[#allocation2 + $0x10] sm:$0xff]
    %v189 = vld [vmem:[#allocation2 + $0x18] sm:$0xff]
    %v190 = vld [vmem:[%s1] sm:$0xff]
    %v191 = vld [vmem:[%s1 + $0x8] sm:$0xff]
    %v192 = vld [vmem:[%s1 + $0x10] sm:$0xff]
    %v193 = vld [vmem:[%s1 + $0x18] sm:$0xff]
    %195 = vset.pattern.permute.xlu0 0
    %196 = vperm.xlu0 %195, %v190
    %v197 = vpop.permute.xlu0 %196
    %200 = vset.pattern.permute.xlu0 0
    %201 = vperm.xlu0 %200, %v191
    %v202 = vpop.permute.xlu0 %201
    %205 = vset.pattern.permute.xlu0 0
    %206 = vperm.xlu0 %205, %v192
    %v207 = vpop.permute.xlu0 %206
    %210 = vset.pattern.permute.xlu0 0
    %211 = vperm.xlu0 %210, %v193
    %v212 = vpop.permute.xlu0 %211
    %v214 = vmul.f32 %v186, %v197
    %v215 = vmul.f32 %v187, %v202
    %v216 = vmul.f32 %v188, %v207
    %v217 = vmul.f32 %v189, %v212
    %218 = vst.msk [vmem:[#allocation3] sm:$0xff] %vm176, %v214
    %219 = vst.msk [vmem:[#allocation3 + $0x18] sm:$0xff] %vm176, %v215
    %220 = vst.msk [vmem:[#allocation3 + $0x30] sm:$0xff] %vm176, %v216
    %221 = vst.msk [vmem:[#allocation3 + $0x48] sm:$0xff] %vm176, %v217
    %v222 = vld [vmem:[#allocation2 + $0x2] sm:$0xff]
    %v223 = vld [vmem:[#allocation2 + $0xa] sm:$0xff]
    %v224 = vld [vmem:[#allocation2 + $0x12] sm:$0xff]
    %v225 = vld [vmem:[#allocation2 + $0x1a] sm:$0xff]
    %s226 = scalar_lea.vmem %s1, 32
    %v227 = vld [vmem:[%s226] sm:$0xff]
    %v228 = vld [vmem:[%s226 + $0x8] sm:$0xff]
    %v229 = vld [vmem:[%s226 + $0x10] sm:$0xff]
    %v230 = vld [vmem:[%s226 + $0x18] sm:$0xff]
    %232 = vset.pattern.permute.xlu0 0
    %233 = vperm.xlu0 %232, %v227
    %v234 = vpop.permute.xlu0 %233
    %237 = vset.pattern.permute.xlu0 0
    %238 = vperm.xlu0 %237, %v228
    %v239 = vpop.permute.xlu0 %238
    %242 = vset.pattern.permute.xlu0 0
    %243 = vperm.xlu0 %242, %v229
    %v244 = vpop.permute.xlu0 %243
    %247 = vset.pattern.permute.xlu0 0
    %248 = vperm.xlu0 %247, %v230
    %v249 = vpop.permute.xlu0 %248
    %v251 = vmul.f32 %v222, %v234
    %v252 = vmul.f32 %v223, %v239
    %v253 = vmul.f32 %v224, %v244
    %v254 = vmul.f32 %v225, %v249
    %259 = vrot.lane.b32.xlu0 %v251, 32
    %v260 = vpop.permute.xlu0 %259
    %261 = vrot.lane.b32.xlu0 %v252, 32
    %v262 = vpop.permute.xlu0 %261
    %263 = vrot.lane.b32.xlu0 %v253, 32
    %v264 = vpop.permute.xlu0 %263
    %265 = vrot.lane.b32.xlu0 %v254, 32
    %v266 = vpop.permute.xlu0 %265
    %vm271 = vcmask 523520
    %272 = vst.msk [vmem:[#allocation3] sm:$0xff] %vm271, %v260
    %273 = vst.msk [vmem:[#allocation3 + $0x18] sm:$0xff] %vm271, %v262
    %274 = vst.msk [vmem:[#allocation3 + $0x30] sm:$0xff] %vm271, %v264
    %275 = vst.msk [vmem:[#allocation3 + $0x48] sm:$0xff] %vm271, %v266
    %v276 = vld [vmem:[#allocation2 + $0x4] sm:$0xff]
    %v277 = vld [vmem:[#allocation2 + $0xc] sm:$0xff]
    %v278 = vld [vmem:[#allocation2 + $0x14] sm:$0xff]
    %v279 = vld [vmem:[#allocation2 + $0x1c] sm:$0xff]
    %s280 = scalar_lea.vmem %s1, 64
    %v281 = vld [vmem:[%s280] sm:$0xff]
    %v282 = vld [vmem:[%s280 + $0x8] sm:$0xff]
    %v283 = vld [vmem:[%s280 + $0x10] sm:$0xff]
    %v284 = vld [vmem:[%s280 + $0x18] sm:$0xff]
    %286 = vset.pattern.permute.xlu0 0
    %287 = vperm.xlu0 %286, %v281
    %v288 = vpop.permute.xlu0 %287
    %291 = vset.pattern.permute.xlu0 0
    %292 = vperm.xlu0 %291, %v282
    %v293 = vpop.permute.xlu0 %292
    %296 = vset.pattern.permute.xlu0 0
    %297 = vperm.xlu0 %296, %v283
    %v298 = vpop.permute.xlu0 %297
    %301 = vset.pattern.permute.xlu0 0
    %302 = vperm.xlu0 %301, %v284
    %v303 = vpop.permute.xlu0 %302
    %v305 = vmul.f32 %v276, %v288
    %v306 = vmul.f32 %v277, %v293
    %v307 = vmul.f32 %v278, %v298
    %v308 = vmul.f32 %v279, %v303
    %313 = vrot.lane.b32.xlu0 %v305, 64
    %v314 = vpop.permute.xlu0 %313
    %315 = vrot.lane.b32.xlu0 %v306, 64
    %v316 = vpop.permute.xlu0 %315
    %317 = vrot.lane.b32.xlu0 %v307, 64
    %v318 = vpop.permute.xlu0 %317
    %319 = vrot.lane.b32.xlu0 %v308, 64
    %v320 = vpop.permute.xlu0 %319
    %vm325 = vcmask 785920
    %326 = vst.msk [vmem:[#allocation3] sm:$0xff] %vm325, %v314
    %327 = vst.msk [vmem:[#allocation3 + $0x18] sm:$0xff] %vm325, %v316
    %328 = vst.msk [vmem:[#allocation3 + $0x30] sm:$0xff] %vm325, %v318
    %329 = vst.msk [vmem:[#allocation3 + $0x48] sm:$0xff] %vm325, %v320
    %v330 = vld [vmem:[#allocation2 + $0x8] sm:$0xff]
    %v331 = vld [vmem:[#allocation2 + $0x10] sm:$0xff]
    %v332 = vld [vmem:[#allocation2 + $0x18] sm:$0xff]
    %v333 = vld [vmem:[#allocation2 + $0x20] sm:$0xff]
    %s334 = scalar_lea.vmem %s1, 96
    %v335 = vld [vmem:[%s334] sm:$0xff]
    %v336 = vld [vmem:[%s334 + $0x8] sm:$0xff]
    %v337 = vld [vmem:[%s334 + $0x10] sm:$0xff]
    %v338 = vld [vmem:[%s334 + $0x18] sm:$0xff]
    %340 = vset.pattern.permute.xlu0 0
    %341 = vperm.xlu0 %340, %v335
    %v342 = vpop.permute.xlu0 %341
    %345 = vset.pattern.permute.xlu0 0
    %346 = vperm.xlu0 %345, %v336
    %v347 = vpop.permute.xlu0 %346
    %350 = vset.pattern.permute.xlu0 0
    %351 = vperm.xlu0 %350, %v337
    %v352 = vpop.permute.xlu0 %351
    %355 = vset.pattern.permute.xlu0 0
    %356 = vperm.xlu0 %355, %v338
    %v357 = vpop.permute.xlu0 %356
    %v359 = vmul.f32 %v330, %v342
    %v360 = vmul.f32 %v331, %v347
    %v361 = vmul.f32 %v332, %v352
    %v362 = vmul.f32 %v333, %v357
    %367 = vrot.lane.b32.xlu0 %v359, 96
    %v368 = vpop.permute.xlu0 %367
    %369 = vrot.lane.b32.xlu0 %v360, 96
    %v370 = vpop.permute.xlu0 %369
    %371 = vrot.lane.b32.xlu0 %v361, 96
    %v372 = vpop.permute.xlu0 %371
    %373 = vrot.lane.b32.xlu0 %v362, 96
    %v374 = vpop.permute.xlu0 %373
    %vm379 = vcmask 1048320
    %380 = vst.msk [vmem:[#allocation3] sm:$0xff] %vm379, %v368
    %381 = vst.msk [vmem:[#allocation3 + $0x18] sm:$0xff] %vm379, %v370
    %382 = vst.msk [vmem:[#allocation3 + $0x30] sm:$0xff] %vm379, %v372
    %383 = vst.msk [vmem:[#allocation3 + $0x48] sm:$0xff] %vm379, %v374
    %v384 = vld [vmem:[#allocation2 + $0xa] sm:$0xff]
    %v385 = vld [vmem:[#allocation2 + $0x12] sm:$0xff]
    %v386 = vld [vmem:[#allocation2 + $0x1a] sm:$0xff]
    %v387 = vld [vmem:[#allocation2 + $0x22] sm:$0xff]
    %s388 = scalar_lea.vmem %s1, 128
    %v389 = vld [vmem:[%s388] sm:$0xff]
    %v390 = vld [vmem:[%s388 + $0x8] sm:$0xff]
    %v391 = vld [vmem:[%s388 + $0x10] sm:$0xff]
    %v392 = vld [vmem:[%s388 + $0x18] sm:$0xff]
    %394 = vset.pattern.permute.xlu0 0
    %395 = vperm.xlu0 %394, %v389
    %v396 = vpop.permute.xlu0 %395
    %399 = vset.pattern.permute.xlu0 0
    %400 = vperm.xlu0 %399, %v390
    %v401 = vpop.permute.xlu0 %400
    %404 = vset.pattern.permute.xlu0 0
    %405 = vperm.xlu0 %404, %v391
    %v406 = vpop.permute.xlu0 %405
    %409 = vset.pattern.permute.xlu0 0
    %410 = vperm.xlu0 %409, %v392
    %v411 = vpop.permute.xlu0 %410
    %v413 = vmul.f32 %v384, %v396
    %v414 = vmul.f32 %v385, %v401
    %v415 = vmul.f32 %v386, %v406
    %v416 = vmul.f32 %v387, %v411
    %417 = vst.msk [vmem:[#allocation3 + $0x8] sm:$0xff] %vm176, %v413
    %418 = vst.msk [vmem:[#allocation3 + $0x20] sm:$0xff] %vm176, %v414
    %419 = vst.msk [vmem:[#allocation3 + $0x38] sm:$0xff] %vm176, %v415
    %420 = vst.msk [vmem:[#allocation3 + $0x50] sm:$0xff] %vm176, %v416
    %v421 = vld [vmem:[#allocation2 + $0xc] sm:$0xff]
    %v422 = vld [vmem:[#allocation2 + $0x14] sm:$0xff]
    %v423 = vld [vmem:[#allocation2 + $0x1c] sm:$0xff]
    %v424 = vld [vmem:[#allocation2 + $0x24] sm:$0xff]
    %s425 = scalar_lea.vmem %s1, 160
    %v426 = vld [vmem:[%s425] sm:$0xff]
    %v427 = vld [vmem:[%s425 + $0x8] sm:$0xff]
    %v428 = vld [vmem:[%s425 + $0x10] sm:$0xff]
    %v429 = vld [vmem:[%s425 + $0x18] sm:$0xff]
    %431 = vset.pattern.permute.xlu0 0
    %432 = vperm.xlu0 %431, %v426
    %v433 = vpop.permute.xlu0 %432
    %436 = vset.pattern.permute.xlu0 0
    %437 = vperm.xlu0 %436, %v427
    %v438 = vpop.permute.xlu0 %437
    %441 = vset.pattern.permute.xlu0 0
    %442 = vperm.xlu0 %441, %v428
    %v443 = vpop.permute.xlu0 %442
    %446 = vset.pattern.permute.xlu0 0
    %447 = vperm.xlu0 %446, %v429
    %v448 = vpop.permute.xlu0 %447
    %v450 = vmul.f32 %v421, %v433
    %v451 = vmul.f32 %v422, %v438
    %v452 = vmul.f32 %v423, %v443
    %v453 = vmul.f32 %v424, %v448
    %458 = vrot.lane.b32.xlu0 %v450, 32
    %v459 = vpop.permute.xlu0 %458
    %460 = vrot.lane.b32.xlu0 %v451, 32
    %v461 = vpop.permute.xlu0 %460
    %462 = vrot.lane.b32.xlu0 %v452, 32
    %v463 = vpop.permute.xlu0 %462
    %464 = vrot.lane.b32.xlu0 %v453, 32
    %v465 = vpop.permute.xlu0 %464
    %470 = vst.msk [vmem:[#allocation3 + $0x8] sm:$0xff] %vm271, %v459
    %471 = vst.msk [vmem:[#allocation3 + $0x20] sm:$0xff] %vm271, %v461
    %472 = vst.msk [vmem:[#allocation3 + $0x38] sm:$0xff] %vm271, %v463
    %473 = vst.msk [vmem:[#allocation3 + $0x50] sm:$0xff] %vm271, %v465
    %v474 = vld [vmem:[#allocation2 + $0x10] sm:$0xff]
    %v475 = vld [vmem:[#allocation2 + $0x18] sm:$0xff]
    %v476 = vld [vmem:[#allocation2 + $0x20] sm:$0xff]
    %v477 = vld [vmem:[#allocation2 + $0x28] sm:$0xff]
    %s478 = scalar_lea.vmem %s1, 192
    %v479 = vld [vmem:[%s478] sm:$0xff]
    %v480 = vld [vmem:[%s478 + $0x8] sm:$0xff]
    %v481 = vld [vmem:[%s478 + $0x10] sm:$0xff]
    %v482 = vld [vmem:[%s478 + $0x18] sm:$0xff]
    %484 = vset.pattern.permute.xlu0 0
    %485 = vperm.xlu0 %484, %v479
    %v486 = vpop.permute.xlu0 %485
    %489 = vset.pattern.permute.xlu0 0
    %490 = vperm.xlu0 %489, %v480
    %v491 = vpop.permute.xlu0 %490
    %494 = vset.pattern.permute.xlu0 0
    %495 = vperm.xlu0 %494, %v481
    %v496 = vpop.permute.xlu0 %495
    %499 = vset.pattern.permute.xlu0 0
    %500 = vperm.xlu0 %499, %v482
    %v501 = vpop.permute.xlu0 %500
    %v503 = vmul.f32 %v474, %v486
    %v504 = vmul.f32 %v475, %v491
    %v505 = vmul.f32 %v476, %v496
    %v506 = vmul.f32 %v477, %v501
    %511 = vrot.lane.b32.xlu0 %v503, 64
    %v512 = vpop.permute.xlu0 %511
    %513 = vrot.lane.b32.xlu0 %v504, 64
    %v514 = vpop.permute.xlu0 %513
    %515 = vrot.lane.b32.xlu0 %v505, 64
    %v516 = vpop.permute.xlu0 %515
    %517 = vrot.lane.b32.xlu0 %v506, 64
    %v518 = vpop.permute.xlu0 %517
    %523 = vst.msk [vmem:[#allocation3 + $0x8] sm:$0xff] %vm325, %v512
    %524 = vst.msk [vmem:[#allocation3 + $0x20] sm:$0xff] %vm325, %v514
    %525 = vst.msk [vmem:[#allocation3 + $0x38] sm:$0xff] %vm325, %v516
    %526 = vst.msk [vmem:[#allocation3 + $0x50] sm:$0xff] %vm325, %v518
    %v527 = vld [vmem:[#allocation2 + $0x12] sm:$0xff]
    %v528 = vld [vmem:[#allocation2 + $0x1a] sm:$0xff]
    %v529 = vld [vmem:[#allocation2 + $0x22] sm:$0xff]
    %v530 = vld [vmem:[#allocation2 + $0x2a] sm:$0xff]
    %s531 = scalar_lea.vmem %s1, 224
    %v532 = vld [vmem:[%s531] sm:$0xff]
    %v533 = vld [vmem:[%s531 + $0x8] sm:$0xff]
    %v534 = vld [vmem:[%s531 + $0x10] sm:$0xff]
    %v535 = vld [vmem:[%s531 + $0x18] sm:$0xff]
    %537 = vset.pattern.permute.xlu0 0
    %538 = vperm.xlu0 %537, %v532
    %v539 = vpop.permute.xlu0 %538
    %542 = vset.pattern.permute.xlu0 0
    %543 = vperm.xlu0 %542, %v533
    %v544 = vpop.permute.xlu0 %543
    %547 = vset.pattern.permute.xlu0 0
    %548 = vperm.xlu0 %547, %v534
    %v549 = vpop.permute.xlu0 %548
    %552 = vset.pattern.permute.xlu0 0
    %553 = vperm.xlu0 %552, %v535
    %v554 = vpop.permute.xlu0 %553
    %v556 = vmul.f32 %v527, %v539
    %v557 = vmul.f32 %v528, %v544
    %v558 = vmul.f32 %v529, %v549
    %v559 = vmul.f32 %v530, %v554
    %564 = vrot.lane.b32.xlu0 %v556, 96
    %v565 = vpop.permute.xlu0 %564
    %566 = vrot.lane.b32.xlu0 %v557, 96
    %v567 = vpop.permute.xlu0 %566
    %568 = vrot.lane.b32.xlu0 %v558, 96
    %v569 = vpop.permute.xlu0 %568
    %570 = vrot.lane.b32.xlu0 %v559, 96
    %v571 = vpop.permute.xlu0 %570
    %576 = vst.msk [vmem:[#allocation3 + $0x8] sm:$0xff] %vm379, %v565
    %577 = vst.msk [vmem:[#allocation3 + $0x20] sm:$0xff] %vm379, %v567
    %578 = vst.msk [vmem:[#allocation3 + $0x38] sm:$0xff] %vm379, %v569
    %579 = vst.msk [vmem:[#allocation3 + $0x50] sm:$0xff] %vm379, %v571
    %v580 = vld [vmem:[#allocation2 + $0x14] sm:$0xff]
    %v581 = vld [vmem:[#allocation2 + $0x1c] sm:$0xff]
    %v582 = vld [vmem:[#allocation2 + $0x24] sm:$0xff]
    %v583 = vld [vmem:[#allocation2 + $0x2c] sm:$0xff]
    %s584 = scalar_lea.vmem %s1, 256
    %v585 = vld [vmem:[%s584] sm:$0xff]
    %v586 = vld [vmem:[%s584 + $0x8] sm:$0xff]
    %v587 = vld [vmem:[%s584 + $0x10] sm:$0xff]
    %v588 = vld [vmem:[%s584 + $0x18] sm:$0xff]
    %590 = vset.pattern.permute.xlu0 0
    %591 = vperm.xlu0 %590, %v585
    %v592 = vpop.permute.xlu0 %591
    %595 = vset.pattern.permute.xlu0 0
    %596 = vperm.xlu0 %595, %v586
    %v597 = vpop.permute.xlu0 %596
    %600 = vset.pattern.permute.xlu0 0
    %601 = vperm.xlu0 %600, %v587
    %v602 = vpop.permute.xlu0 %601
    %605 = vset.pattern.permute.xlu0 0
    %606 = vperm.xlu0 %605, %v588
    %v607 = vpop.permute.xlu0 %606
    %v609 = vmul.f32 %v580, %v592
    %v610 = vmul.f32 %v581, %v597
    %v611 = vmul.f32 %v582, %v602
    %v612 = vmul.f32 %v583, %v607
    %613 = vst.msk [vmem:[#allocation3 + $0x10] sm:$0xff] %vm176, %v609
    %614 = vst.msk [vmem:[#allocation3 + $0x28] sm:$0xff] %vm176, %v610
    %615 = vst.msk [vmem:[#allocation3 + $0x40] sm:$0xff] %vm176, %v611
    %616 = vst.msk [vmem:[#allocation3 + $0x58] sm:$0xff] %vm176, %v612
    %v617 = vld [vmem:[#allocation3] sm:$0xff]
    %v618 = vld [vmem:[#allocation3 + $0x8] sm:$0xff]
    %v619 = vld [vmem:[#allocation3 + $0x10] sm:$0xff]
    %v620 = vld [vmem:[#allocation3 + $0x18] sm:$0xff]
    %v621 = vld [vmem:[#allocation3 + $0x20] sm:$0xff]
    %v622 = vld [vmem:[#allocation3 + $0x28] sm:$0xff]
    %v623 = vld [vmem:[#allocation3 + $0x30] sm:$0xff]
    %v624 = vld [vmem:[#allocation3 + $0x38] sm:$0xff]
    %v625 = vld [vmem:[#allocation3 + $0x40] sm:$0xff]
    %v626 = vld [vmem:[#allocation3 + $0x48] sm:$0xff]
    %v627 = vld [vmem:[#allocation3 + $0x50] sm:$0xff]
    %v628 = vld [vmem:[#allocation3 + $0x58] sm:$0xff]
    %v629 = vpack.c.bf16 %v620, %v617
    %v630 = vpack.c.bf16 %v621, %v618
    %v631 = vpack.c.bf16 %v622, %v619
    %v632 = vpack.c.bf16 %v626, %v623
    %v633 = vpack.c.bf16 %v627, %v624
    %v634 = vpack.c.bf16 %v628, %v625
    %v635 = vld [vmem:[%s4] sm:$0xf]
    %v636 = vld [vmem:[%s4 + $0x4] sm:$0xf]
    %v637 = vld [vmem:[%s4 + $0x8] sm:$0xf]
    %v638 = vld [vmem:[%s4 + $0xc] sm:$0xf]
    %v639 = vld [vmem:[%s4 + $0x10] sm:$0xf]
    %v640 = vld [vmem:[%s4 + $0x14] sm:$0xf]
    %v641 = vld [vmem:[%s4 + $0x18] sm:$0xf]
    %v642 = vld [vmem:[%s4 + $0x1c] sm:$0xf]
    %v643 = vld [vmem:[%s4 + $0x20] sm:$0xf]
    %v644 = vld [vmem:[%s4 + $0x24] sm:$0xf]
    %v645 = vld [vmem:[%s4 + $0x28] sm:$0xf]
    %v646 = vld [vmem:[%s4 + $0x2c] sm:$0xf]
    %v647 = vld [vmem:[%s4 + $0x30] sm:$0xf]
    %v648 = vld [vmem:[%s4 + $0x34] sm:$0xf]
    %v649 = vld [vmem:[%s4 + $0x38] sm:$0xf]
    %v650 = vld [vmem:[%s4 + $0x3c] sm:$0xf]
    %v651 = vld [vmem:[%s4 + $0x40] sm:$0xf]
    %v652 = vld [vmem:[%s4 + $0x44] sm:$0xf]
    %v653 = vld [vmem:[%s4 + $0x48] sm:$0xf]
    %v654 = vld [vmem:[%s4 + $0x4c] sm:$0xf]
    %v655 = vld [vmem:[%s4 + $0x50] sm:$0xf]
    %v656 = vld [vmem:[%s4 + $0x54] sm:$0xf]
    %v657 = vld [vmem:[%s4 + $0x58] sm:$0xf]
    %v658 = vld [vmem:[%s4 + $0x5c] sm:$0xf]
    %v659 = vld [vmem:[%s4 + $0x60] sm:$0xf]
    %v660 = vld [vmem:[%s4 + $0x64] sm:$0xf]
    %v661 = vld [vmem:[%s4 + $0x68] sm:$0xf]
    %v662 = vld [vmem:[%s4 + $0x6c] sm:$0xf]
    %v663 = vld [vmem:[%s4 + $0x70] sm:$0xf]
    %v664 = vld [vmem:[%s4 + $0x74] sm:$0xf]
    %v665 = vld [vmem:[%s4 + $0x78] sm:$0xf]
    %v666 = vld [vmem:[%s4 + $0x7c] sm:$0xf]
    %v667 = vld [vmem:[%s4 + $0x80] sm:$0xf]
    %v668 = vld [vmem:[%s4 + $0x84] sm:$0xf]
    %v669 = vld [vmem:[%s4 + $0x88] sm:$0xf]
    %v670 = vld [vmem:[%s4 + $0x8c] sm:$0xf]
    %v671 = vld [vmem:[%s5] sm:$0x1]
    %v673 = vlaneseq
    %v674 = vshrl.u32 %v673, 7
    %v675 = vsub.s32 0, %v674
    %v676 = vrot.slane %v671, %v675
    %v714 = vunpack.c.l.b16 %v635
    %v715 = vunpack.c.l.b16 %v636
    %v716 = vunpack.c.l.b16 %v637
    %v717 = vunpack.c.l.b16 %v638
    %v718 = vunpack.c.l.b16 %v639
    %v719 = vunpack.c.l.b16 %v640
    %v720 = vunpack.c.l.b16 %v641
    %v721 = vunpack.c.l.b16 %v642
    %v722 = vunpack.c.l.b16 %v643
    %v723 = vunpack.c.l.b16 %v644
    %v724 = vunpack.c.l.b16 %v645
    %v725 = vunpack.c.l.b16 %v646
    %v726 = vunpack.c.l.b16 %v647
    %v727 = vunpack.c.l.b16 %v648
    %v728 = vunpack.c.l.b16 %v649
    %v729 = vunpack.c.l.b16 %v650
    %v730 = vunpack.c.l.b16 %v651
    %v731 = vunpack.c.l.b16 %v652
    %v732 = vunpack.c.l.b16 %v653
    %v733 = vunpack.c.l.b16 %v654
    %v734 = vunpack.c.l.b16 %v655
    %v735 = vunpack.c.l.b16 %v656
    %v736 = vunpack.c.l.b16 %v657
    %v737 = vunpack.c.l.b16 %v658
    %v738 = vunpack.c.l.b16 %v659
    %v739 = vunpack.c.l.b16 %v660
    %v740 = vunpack.c.l.b16 %v661
    %v741 = vunpack.c.l.b16 %v662
    %v742 = vunpack.c.l.b16 %v663
    %v743 = vunpack.c.l.b16 %v664
    %v744 = vunpack.c.l.b16 %v665
    %v745 = vunpack.c.l.b16 %v666
    %v746 = vunpack.c.l.b16 %v667
    %v747 = vunpack.c.l.b16 %v668
    %v748 = vunpack.c.l.b16 %v669
    %v749 = vunpack.c.l.b16 %v670
    %v750 = vpack.c.b16 %v715, %v714
    %v751 = vpack.c.b16 %v717, %v716
    %v752 = vpack.c.b16 %v719, %v718
    %v753 = vpack.c.b16 %v721, %v720
    %v754 = vpack.c.b16 %v723, %v722
    %v755 = vpack.c.b16 %v725, %v724
    %v756 = vpack.c.b16 %v727, %v726
    %v757 = vpack.c.b16 %v729, %v728
    %v758 = vpack.c.b16 %v731, %v730
    %v759 = vpack.c.b16 %v733, %v732
    %v760 = vpack.c.b16 %v735, %v734
    %v761 = vpack.c.b16 %v737, %v736
    %v762 = vpack.c.b16 %v739, %v738
    %v763 = vpack.c.b16 %v741, %v740
    %v764 = vpack.c.b16 %v743, %v742
    %v765 = vpack.c.b16 %v745, %v744
    %v766 = vpack.c.b16 %v747, %v746
    %v767 = vpack.c.b16 %v749, %v748
    %v787 = vsel %vm176, %v631, 0
    %v790 = vsel %vm176, %v634, 0
    %792 = vmatprep.subr.bf16.mxu0 0
    %793 = vmatpush1.bf16.msra.mxu0 %v750
    %794 = vmatprep.subr.bf16.mxu0 0
    %795 = vmatpush1.bf16.msra.mxu0 %v751
    %796 = vmatprep.subr.bf16.mxu0 0
    %797 = vmatpush1.bf16.msra.mxu0 %v752
    %798 = vmatprep.subr.bf16.mxu0 0
    %799 = vmatpush1.bf16.msra.mxu0 %v753
    %800 = vmatprep.subr.bf16.mxu0 0
    %801 = vmatpush1.bf16.msra.mxu0 %v754
    %802 = vmatprep.subr.bf16.mxu0 0
    %803 = vmatpush1.bf16.msra.mxu0 %v755
    %804 = vmatprep.subr.bf16.mxu0 0
    %805 = vmatpush1.bf16.msra.mxu0 %v756
    %806 = vmatprep.subr.bf16.mxu0 0
    %807 = vmatpush1.bf16.msra.mxu0 %v757
    %808 = vmatprep.subr.bf16.mxu0 0
    %809 = vmatpush1.bf16.msra.mxu0 %v758
    %810 = vmatprep.subr.bf16.mxu0 0
    %811 = vmatpush1.bf16.msra.mxu0 %v759
    %812 = vmatprep.subr.bf16.mxu0 0
    %813 = vmatpush1.bf16.msra.mxu0 %v760
    %814 = vmatprep.subr.bf16.mxu0 0
    %815 = vmatpush1.bf16.msra.mxu0 %v761
    %816 = vmatprep.subr.bf16.mxu0 0
    %817 = vmatpush1.bf16.msra.mxu0 %v762
    %818 = vmatprep.subr.bf16.mxu0 0
    %819 = vmatpush1.bf16.msra.mxu0 %v763
    %820 = vmatprep.subr.bf16.mxu0 0
    %821 = vmatpush1.bf16.msra.mxu0 %v764
    %822 = vmatprep.subr.bf16.mxu0 0
    %823 = vmatpush1.bf16.msra.mxu0 %v765
    %824 = vmatprep.mubr.bf16.mxu0 %v630
    %825 = vmatmul.mubr.bf16.gmra.mrb[0].mxu0 %v629
    %v826 = vpop.f32.mrb[0].mxu0
    %v827 = vadd.f32 %v676, %v826
    %v828 = vpop.f32.mrb[0].mxu0
    %v829 = vpop.f32.mrb[0].mxu0
    %v830 = vadd.f32 %v676, %v829
    %v831 = vpop.f32.mrb[0].mxu0
    %832 = vmatprep.mubr.bf16.mxu0 %v633
    %833 = vmatmul.mubr.bf16.gmra.mrb[0].mxu0 %v632
    %v834 = vpop.f32.mrb[0].mxu0
    %v835 = vadd.f32 %v676, %v834
    %v836 = vpop.f32.mrb[0].mxu0
    %v837 = vpop.f32.mrb[0].mxu0
    %v838 = vadd.f32 %v676, %v837
    %v839 = vpop.f32.mrb[0].mxu0
    %840 = vdwg.mxu0
    %841 = vmatprep.subr.bf16.mxu0 0
    %842 = vmatpush1.bf16.msra.mxu0 %v766
    %843 = vmatprep.subr.bf16.mxu0 0
    %844 = vmatpush1.bf16.msra.mxu0 %v767
    %845 = vmatprep.subr.bf16.mxu0 0
    %846 = vmatpush1.bf16.msra.mxu0 0
    %847 = vmatprep.subr.bf16.mxu0 0
    %848 = vmatpush1.bf16.msra.mxu0 0
    %849 = vmatprep.subr.bf16.mxu0 0
    %850 = vmatpush1.bf16.msra.mxu0 0
    %851 = vmatprep.subr.bf16.mxu0 0
    %852 = vmatpush1.bf16.msra.mxu0 0
    %853 = vmatprep.subr.bf16.mxu0 0
    %854 = vmatpush1.bf16.msra.mxu0 0
    %855 = vmatprep.subr.bf16.mxu0 0
    %856 = vmatpush1.bf16.msra.mxu0 0
    %857 = vmatprep.subr.bf16.mxu0 0
    %858 = vmatpush1.bf16.msra.mxu0 0
    %859 = vmatprep.subr.bf16.mxu0 0
    %860 = vmatpush1.bf16.msra.mxu0 0
    %861 = vmatprep.subr.bf16.mxu0 0
    %862 = vmatpush1.bf16.msra.mxu0 0
    %863 = vmatprep.subr.bf16.mxu0 0
    %864 = vmatpush1.bf16.msra.mxu0 0
    %865 = vmatprep.subr.bf16.mxu0 0
    %866 = vmatpush1.bf16.msra.mxu0 0
    %867 = vmatprep.subr.bf16.mxu0 0
    %868 = vmatpush1.bf16.msra.mxu0 0
    %869 = vmatprep.subr.bf16.mxu0 0
    %870 = vmatpush1.bf16.msra.mxu0 0
    %871 = vmatprep.subr.bf16.mxu0 0
    %872 = vmatpush1.bf16.msra.mxu0 0
    %873 = vmatprep.mubr.bf16.mxu0 0
    %874 = vmatmul.mubr.bf16.gmra.mrb[0].mxu0 %v787
    %v875 = vpop.f32.mrb[0].mxu0
    %v876 = vadd.f32 %v827, %v875
    %v877 = vpop.f32.mrb[0].mxu0
    %v878 = vpop.f32.mrb[0].mxu0
    %v879 = vadd.f32 %v830, %v878
    %v880 = vpop.f32.mrb[0].mxu0
    %881 = vmatprep.mubr.bf16.mxu0 0
    %882 = vmatmul.mubr.bf16.gmra.mrb[0].mxu0 %v790
    %v883 = vpop.f32.mrb[0].mxu0
    %v884 = vadd.f32 %v835, %v883
    %v885 = vpop.f32.mrb[0].mxu0
    %v886 = vpop.f32.mrb[0].mxu0
    %v887 = vadd.f32 %v838, %v886
    %v888 = vpop.f32.mrb[0].mxu0
    %889 = vdwg.mxu0
    %v890 = vmax.f32 %v876, 0.0
    %v891 = vmax.f32 %v879, 0.0
    %v892 = vmax.f32 %v884, 0.0
    %v893 = vmax.f32 %v887, 0.0
    %vm894 = vcmask 523264
    %895 = vst.msk [vmem:[#allocation4] sm:$0xff] %vm894, %v890
    %896 = vst.msk [vmem:[#allocation4 + $0x8] sm:$0xff] %vm894, %v891
    %897 = vst.msk [vmem:[#allocation4 + $0x10] sm:$0xff] %vm894, %v892
    %898 = vst.msk [vmem:[#allocation4 + $0x18] sm:$0xff] %vm894, %v893
    %v899 = vld [vmem:[#allocation4] sm:$0x3]
    %vm900 = vcmask 517120
    %901 = vst.msk [vmem:[#allocation5] sm:$0x3] %vm900, %v899
    %v902 = vld [vmem:[#allocation4 + $0x2] sm:$0x3]
    %v905 = vunpack.c.l.s4 1983009808
    %v906 = vunpack.c.0.s8 %v905
    %v907 = vlaneseq
    %v908 = vshrl.u32 %v907, 7
    %v909 = vsub.s32 %v906, %v908
    %v910 = vrot.slane %v902, %v909
    %911 = vrot.lane.b32.xlu0 %v910, 64
    %v912 = vpop.permute.xlu0 %911
    %vm914 = vcmask 1041920
    %915 = vst.msk [vmem:[#allocation5] sm:$0x3] %vm914, %v912
    %v916 = vld [vmem:[#allocation4 + $0x4] sm:$0x3]
    %917 = vst.msk [vmem:[#allocation5 + $0x2] sm:$0x3] %vm900, %v916
    %v918 = vld [vmem:[#allocation4 + $0x6] sm:$0x3]
    %v921 = vunpack.c.l.s4 1983009808
    %v922 = vunpack.c.0.s8 %v921
    %v923 = vlaneseq
    %v924 = vshrl.u32 %v923, 7
    %v925 = vsub.s32 %v922, %v924
    %v926 = vrot.slane %v918, %v925
    %927 = vrot.lane.b32.xlu0 %v926, 64
    %v928 = vpop.permute.xlu0 %927
    %930 = vst.msk [vmem:[#allocation5 + $0x2] sm:$0x3] %vm914, %v928
    %v931 = vld [vmem:[#allocation4 + $0x8] sm:$0x3]
    %932 = vst.msk [vmem:[#allocation5 + $0x4] sm:$0x3] %vm900, %v931
    %v933 = vld [vmem:[#allocation4 + $0xa] sm:$0x3]
    %v936 = vunpack.c.l.s4 1983009808
    %v937 = vunpack.c.0.s8 %v936
    %v938 = vlaneseq
    %v939 = vshrl.u32 %v938, 7
    %v940 = vsub.s32 %v937, %v939
    %v941 = vrot.slane %v933, %v940
    %942 = vrot.lane.b32.xlu0 %v941, 64
    %v943 = vpop.permute.xlu0 %942
    %945 = vst.msk [vmem:[#allocation5 + $0x4] sm:$0x3] %vm914, %v943
    %v946 = vld [vmem:[#allocation4 + $0xc] sm:$0x3]
    %947 = vst.msk [vmem:[#allocation5 + $0x6] sm:$0x3] %vm900, %v946
    %v948 = vld [vmem:[#allocation4 + $0xe] sm:$0x3]
    %v951 = vunpack.c.l.s4 1983009808
    %v952 = vunpack.c.0.s8 %v951
    %v953 = vlaneseq
    %v954 = vshrl.u32 %v953, 7
    %v955 = vsub.s32 %v952, %v954
    %v956 = vrot.slane %v948, %v955
    %957 = vrot.lane.b32.xlu0 %v956, 64
    %v958 = vpop.permute.xlu0 %957
    %960 = vst.msk [vmem:[#allocation5 + $0x6] sm:$0x3] %vm914, %v958
    %v961 = vld [vmem:[#allocation4 + $0x10] sm:$0x3]
    %962 = vst.msk [vmem:[#allocation5 + $0x8] sm:$0x3] %vm900, %v961
    %v963 = vld [vmem:[#allocation4 + $0x12] sm:$0x3]
    %v966 = vunpack.c.l.s4 1983009808
    %v967 = vunpack.c.0.s8 %v966
    %v968 = vlaneseq
    %v969 = vshrl.u32 %v968, 7
    %v970 = vsub.s32 %v967, %v969
    %v971 = vrot.slane %v963, %v970
    %972 = vrot.lane.b32.xlu0 %v971, 64
    %v973 = vpop.permute.xlu0 %972
    %975 = vst.msk [vmem:[#allocation5 + $0x8] sm:$0x3] %vm914, %v973
    %v976 = vld [vmem:[#allocation4 + $0x14] sm:$0x3]
    %977 = vst.msk [vmem:[#allocation5 + $0xa] sm:$0x3] %vm900, %v976
    %v978 = vld [vmem:[#allocation4 + $0x16] sm:$0x3]
    %v981 = vunpack.c.l.s4 1983009808
    %v982 = vunpack.c.0.s8 %v981
    %v983 = vlaneseq
    %v984 = vshrl.u32 %v983, 7
    %v985 = vsub.s32 %v982, %v984
    %v986 = vrot.slane %v978, %v985
    %987 = vrot.lane.b32.xlu0 %v986, 64
    %v988 = vpop.permute.xlu0 %987
    %990 = vst.msk [vmem:[#allocation5 + $0xa] sm:$0x3] %vm914, %v988
    %v991 = vld [vmem:[#allocation4 + $0x18] sm:$0x3]
    %992 = vst.msk [vmem:[#allocation5 + $0xc] sm:$0x3] %vm900, %v991
    %v993 = vld [vmem:[#allocation4 + $0x1a] sm:$0x3]
    %v996 = vunpack.c.l.s4 1983009808
    %v997 = vunpack.c.0.s8 %v996
    %v998 = vlaneseq
    %v999 = vshrl.u32 %v998, 7
    %v1000 = vsub.s32 %v997, %v999
    %v1001 = vrot.slane %v993, %v1000
    %1002 = vrot.lane.b32.xlu0 %v1001, 64
    %v1003 = vpop.permute.xlu0 %1002
    %1005 = vst.msk [vmem:[#allocation5 + $0xc] sm:$0x3] %vm914, %v1003
    %v1006 = vld [vmem:[#allocation4 + $0x1c] sm:$0x3]
    %1007 = vst.msk [vmem:[#allocation5 + $0xe] sm:$0x3] %vm900, %v1006
    %v1008 = vld [vmem:[#allocation4 + $0x1e] sm:$0x3]
    %v1011 = vunpack.c.l.s4 1983009808
    %v1012 = vunpack.c.0.s8 %v1011
    %v1013 = vlaneseq
    %v1014 = vshrl.u32 %v1013, 7
    %v1015 = vsub.s32 %v1012, %v1014
    %v1016 = vrot.slane %v1008, %v1015
    %1017 = vrot.lane.b32.xlu0 %v1016, 64
    %v1018 = vpop.permute.xlu0 %1017
    %1020 = vst.msk [vmem:[#allocation5 + $0xe] sm:$0x3] %vm914, %v1018
    %v1021 = vld [vmem:[#allocation5] sm:$0xff]
    %v1022 = vld [vmem:[#allocation5 + $0x8] sm:$0xff]
    %v1025 = vcombine.high %v1021, %v1021
    %v1027 = vunpack.c.l.s4 1983009808
    %v1028 = vunpack.c.0.s8 %v1027
    %v1029 = vlaneseq
    %v1030 = vshrl.u32 %v1029, 7
    %v1031 = vsub.s32 %v1028, %v1030
    %v1032 = vrot.slane %v1021, %v1031
    %v1034 = vunpack.c.l.s4 1983009808
    %v1035 = vunpack.c.0.s8 %v1034
    %v1036 = vlaneseq
    %v1037 = vshrl.u32 %v1036, 7
    %v1038 = vsub.s32 %v1035, %v1037
    %v1039 = vrot.slane %v1025, %v1038
    %v1040 = vcombine.high %v1032, %v1032
    %v1041 = vcombine.high %v1039, %v1039
    %v1042 = vcombine.high %v1022, %v1022
    %v1044 = vunpack.c.l.s4 1983009808
    %v1045 = vunpack.c.0.s8 %v1044
    %v1046 = vlaneseq
    %v1047 = vshrl.u32 %v1046, 7
    %v1048 = vsub.s32 %v1045, %v1047
    %v1049 = vrot.slane %v1022, %v1048
    %v1051 = vunpack.c.l.s4 1983009808
    %v1052 = vunpack.c.0.s8 %v1051
    %v1053 = vlaneseq
    %v1054 = vshrl.u32 %v1053, 7
    %v1055 = vsub.s32 %v1052, %v1054
    %v1056 = vrot.slane %v1042, %v1055
    %v1057 = vcombine.high %v1049, %v1049
    %v1058 = vcombine.high %v1056, %v1056
    %v1067 = vpack.c.bf16 %v1032, %v1032
    %v1068 = vpack.c.bf16 %v1040, %v1040
    %v1069 = vpack.c.bf16 %v1039, %v1039
    %v1070 = vpack.c.bf16 %v1041, %v1041
    %v1071 = vpack.c.bf16 %v1049, %v1049
    %v1072 = vpack.c.bf16 %v1057, %v1057
    %v1073 = vpack.c.bf16 %v1056, %v1056
    %v1074 = vpack.c.bf16 %v1058, %v1058
    %v1075 = vld [vmem:[#allocation6] sm:$0xff]
    %v1076 = vld [vmem:[#allocation6 + $0x8] sm:$0xff]
    %v1077 = vld [vmem:[#allocation6 + $0x10] sm:$0xff]
    %v1078 = vld [vmem:[#allocation6 + $0x18] sm:$0xff]
    %v1079 = vld [vmem:[#allocation6 + $0x20] sm:$0xff]
    %v1080 = vld [vmem:[#allocation6 + $0x28] sm:$0xff]
    %v1081 = vld [vmem:[#allocation6 + $0x30] sm:$0xff]
    %v1082 = vld [vmem:[#allocation6 + $0x38] sm:$0xff]
    %v1083 = vld [vmem:[#allocation6 + $0x40] sm:$0xff]
    %v1084 = vld [vmem:[#allocation6 + $0x48] sm:$0xff]
    %v1085 = vld [vmem:[#allocation6 + $0x50] sm:$0xff]
    %v1086 = vld [vmem:[#allocation6 + $0x58] sm:$0xff]
    %v1087 = vld [vmem:[#allocation6 + $0x60] sm:$0xff]
    %v1088 = vld [vmem:[#allocation6 + $0x68] sm:$0xff]
    %v1089 = vld [vmem:[#allocation6 + $0x70] sm:$0xff]
    %v1090 = vld [vmem:[#allocation6 + $0x78] sm:$0xff]
    %v1091 = vld [vmem:[#allocation6 + $0x80] sm:$0xff]
    %v1092 = vld [vmem:[#allocation6 + $0x88] sm:$0xff]
    %v1093 = vld [vmem:[#allocation6 + $0x90] sm:$0xff]
    %v1094 = vld [vmem:[#allocation6 + $0x98] sm:$0xff]
    %v1095 = vld [vmem:[#allocation6 + $0xa0] sm:$0xff]
    %v1096 = vld [vmem:[#allocation6 + $0xa8] sm:$0xff]
    %v1097 = vld [vmem:[#allocation6 + $0xb0] sm:$0xff]
    %v1098 = vld [vmem:[#allocation6 + $0xb8] sm:$0xff]
    %v1099 = vld [vmem:[#allocation6 + $0xc0] sm:$0xff]
    %v1100 = vld [vmem:[#allocation6 + $0xc8] sm:$0xff]
    %v1101 = vld [vmem:[#allocation6 + $0xd0] sm:$0xff]
    %v1102 = vld [vmem:[#allocation6 + $0xd8] sm:$0xff]
    %v1103 = vld [vmem:[#allocation6 + $0xe0] sm:$0xff]
    %v1104 = vld [vmem:[#allocation6 + $0xe8] sm:$0xff]
    %v1105 = vld [vmem:[#allocation6 + $0xf0] sm:$0xff]
    %v1106 = vld [vmem:[#allocation6 + $0xf8] sm:$0xff]
    %v1107 = vld [vmem:[#allocation6 + $0x100] sm:$0xff]
    %v1108 = vld [vmem:[#allocation6 + $0x108] sm:$0xff]
    %v1109 = vld [vmem:[#allocation6 + $0x110] sm:$0xff]
    %v1110 = vld [vmem:[#allocation6 + $0x118] sm:$0xff]
    %v1111 = vld [vmem:[#allocation6 + $0x120] sm:$0xff]
    %v1112 = vld [vmem:[#allocation6 + $0x128] sm:$0xff]
    %v1113 = vld [vmem:[#allocation6 + $0x130] sm:$0xff]
    %v1114 = vld [vmem:[#allocation6 + $0x138] sm:$0xff]
    %v1115 = vld [vmem:[#allocation6 + $0x140] sm:$0xff]
    %v1116 = vld [vmem:[#allocation6 + $0x148] sm:$0xff]
    %v1117 = vld [vmem:[#allocation6 + $0x150] sm:$0xff]
    %v1118 = vld [vmem:[#allocation6 + $0x158] sm:$0xff]
    %v1119 = vld [vmem:[#allocation6 + $0x160] sm:$0xff]
    %v1120 = vld [vmem:[#allocation6 + $0x168] sm:$0xff]
    %v1121 = vld [vmem:[#allocation6 + $0x170] sm:$0xff]
    %v1122 = vld [vmem:[#allocation6 + $0x178] sm:$0xff]
    %v1123 = vld [vmem:[#allocation6 + $0x180] sm:$0xff]
    %v1124 = vld [vmem:[#allocation6 + $0x188] sm:$0xff]
    %v1125 = vld [vmem:[#allocation6 + $0x190] sm:$0xff]
    %v1126 = vld [vmem:[#allocation6 + $0x198] sm:$0xff]
    %v1127 = vld [vmem:[#allocation6 + $0x1a0] sm:$0xff]
    %v1128 = vld [vmem:[#allocation6 + $0x1a8] sm:$0xff]
    %v1129 = vld [vmem:[#allocation6 + $0x1b0] sm:$0xff]
    %v1130 = vld [vmem:[#allocation6 + $0x1b8] sm:$0xff]
    %v1131 = vld [vmem:[#allocation6 + $0x1c0] sm:$0xff]
    %v1132 = vld [vmem:[#allocation6 + $0x1c8] sm:$0xff]
    %v1133 = vld [vmem:[#allocation6 + $0x1d0] sm:$0xff]
    %v1134 = vld [vmem:[#allocation6 + $0x1d8] sm:$0xff]
    %v1135 = vld [vmem:[#allocation6 + $0x1e0] sm:$0xff]
    %v1136 = vld [vmem:[#allocation6 + $0x1e8] sm:$0xff]
    %v1137 = vld [vmem:[#allocation6 + $0x1f0] sm:$0xff]
    %v1138 = vld [vmem:[#allocation6 + $0x1f8] sm:$0xff]
    %v1139 = vld [vmem:[#allocation6 + $0x200] sm:$0xff]
    %v1140 = vld [vmem:[#allocation6 + $0x208] sm:$0xff]
    %v1141 = vld [vmem:[#allocation6 + $0x210] sm:$0xff]
    %v1142 = vld [vmem:[#allocation6 + $0x218] sm:$0xff]
    %v1143 = vld [vmem:[#allocation6 + $0x220] sm:$0xff]
    %v1144 = vld [vmem:[#allocation6 + $0x228] sm:$0xff]
    %v1145 = vld [vmem:[#allocation6 + $0x230] sm:$0xff]
    %v1146 = vld [vmem:[#allocation6 + $0x238] sm:$0xff]
    %v1147 = vld [vmem:[#allocation6 + $0x240] sm:$0xff]
    %v1148 = vld [vmem:[#allocation6 + $0x248] sm:$0xff]
    %v1149 = vld [vmem:[#allocation6 + $0x250] sm:$0xff]
    %v1150 = vld [vmem:[#allocation6 + $0x258] sm:$0xff]
    %v1151 = vld [vmem:[#allocation6 + $0x260] sm:$0xff]
    %v1152 = vld [vmem:[#allocation6 + $0x268] sm:$0xff]
    %v1153 = vld [vmem:[#allocation6 + $0x270] sm:$0xff]
    %v1154 = vld [vmem:[#allocation6 + $0x278] sm:$0xff]
    %v1155 = vld [vmem:[#allocation6 + $0x280] sm:$0xff]
    %v1156 = vld [vmem:[#allocation6 + $0x288] sm:$0xff]
    %v1157 = vld [vmem:[#allocation6 + $0x290] sm:$0xff]
    %v1158 = vld [vmem:[#allocation6 + $0x298] sm:$0xff]
    %v1159 = vld [vmem:[#allocation6 + $0x2a0] sm:$0xff]
    %v1160 = vld [vmem:[#allocation6 + $0x2a8] sm:$0xff]
    %v1161 = vld [vmem:[#allocation6 + $0x2b0] sm:$0xff]
    %v1162 = vld [vmem:[#allocation6 + $0x2b8] sm:$0xff]
    %v1163 = vld [vmem:[#allocation6 + $0x2c0] sm:$0xff]
    %v1164 = vld [vmem:[#allocation6 + $0x2c8] sm:$0xff]
    %v1165 = vld [vmem:[#allocation6 + $0x2d0] sm:$0xff]
    %v1166 = vld [vmem:[#allocation6 + $0x2d8] sm:$0xff]
    %v1167 = vld [vmem:[#allocation6 + $0x2e0] sm:$0xff]
    %v1168 = vld [vmem:[#allocation6 + $0x2e8] sm:$0xff]
    %v1169 = vld [vmem:[#allocation6 + $0x2f0] sm:$0xff]
    %v1170 = vld [vmem:[#allocation6 + $0x2f8] sm:$0xff]
    %v1171 = vld [vmem:[#allocation6 + $0x300] sm:$0xff]
    %v1172 = vld [vmem:[#allocation6 + $0x308] sm:$0xff]
    %v1173 = vld [vmem:[#allocation6 + $0x310] sm:$0xff]
    %v1174 = vld [vmem:[#allocation6 + $0x318] sm:$0xff]
    %v1175 = vld [vmem:[#allocation6 + $0x320] sm:$0xff]
    %v1176 = vld [vmem:[#allocation6 + $0x328] sm:$0xff]
    %v1177 = vld [vmem:[#allocation6 + $0x330] sm:$0xff]
    %v1178 = vld [vmem:[#allocation6 + $0x338] sm:$0xff]
    %v1179 = vld [vmem:[#allocation6 + $0x340] sm:$0xff]
    %v1180 = vld [vmem:[#allocation6 + $0x348] sm:$0xff]
    %v1181 = vld [vmem:[#allocation6 + $0x350] sm:$0xff]
    %v1182 = vld [vmem:[#allocation6 + $0x358] sm:$0xff]
    %v1183 = vld [vmem:[#allocation6 + $0x360] sm:$0xff]
    %v1184 = vld [vmem:[#allocation6 + $0x368] sm:$0xff]
    %v1185 = vld [vmem:[#allocation6 + $0x370] sm:$0xff]
    %v1186 = vld [vmem:[#allocation6 + $0x378] sm:$0xff]
    %v1187 = vld [vmem:[#allocation6 + $0x380] sm:$0xff]
    %v1188 = vld [vmem:[#allocation6 + $0x388] sm:$0xff]
    %v1189 = vld [vmem:[#allocation6 + $0x390] sm:$0xff]
    %v1190 = vld [vmem:[#allocation6 + $0x398] sm:$0xff]
    %v1191 = vld [vmem:[#allocation6 + $0x3a0] sm:$0xff]
    %v1192 = vld [vmem:[#allocation6 + $0x3a8] sm:$0xff]
    %v1193 = vld [vmem:[#allocation6 + $0x3b0] sm:$0xff]
    %v1194 = vld [vmem:[#allocation6 + $0x3b8] sm:$0xff]
    %v1195 = vld [vmem:[#allocation6 + $0x3c0] sm:$0xff]
    %v1196 = vld [vmem:[#allocation6 + $0x3c8] sm:$0xff]
    %v1197 = vld [vmem:[#allocation6 + $0x3d0] sm:$0xff]
    %v1198 = vld [vmem:[#allocation6 + $0x3d8] sm:$0xff]
    %v1199 = vld [vmem:[#allocation6 + $0x3e0] sm:$0xff]
    %v1200 = vld [vmem:[#allocation6 + $0x3e8] sm:$0xff]
    %v1201 = vld [vmem:[#allocation6 + $0x3f0] sm:$0xff]
    %v1202 = vld [vmem:[#allocation6 + $0x3f8] sm:$0xff]
    %v1203 = vld [vmem:[#allocation6 + $0x400] sm:$0xff]
    %v1204 = vld [vmem:[#allocation6 + $0x408] sm:$0xff]
    %v1205 = vld [vmem:[#allocation6 + $0x410] sm:$0xff]
    %v1206 = vld [vmem:[#allocation6 + $0x418] sm:$0xff]
    %v1207 = vld [vmem:[#allocation6 + $0x420] sm:$0xff]
    %v1208 = vld [vmem:[#allocation6 + $0x428] sm:$0xff]
    %v1209 = vld [vmem:[#allocation6 + $0x430] sm:$0xff]
    %v1210 = vld [vmem:[#allocation6 + $0x438] sm:$0xff]
    %v1211 = vld [vmem:[#allocation6 + $0x440] sm:$0xff]
    %v1212 = vld [vmem:[#allocation6 + $0x448] sm:$0xff]
    %v1213 = vld [vmem:[#allocation6 + $0x450] sm:$0xff]
    %v1214 = vld [vmem:[#allocation6 + $0x458] sm:$0xff]
    %v1215 = vld [vmem:[#allocation6 + $0x460] sm:$0xff]
    %v1216 = vld [vmem:[#allocation6 + $0x468] sm:$0xff]
    %v1217 = vld [vmem:[#allocation6 + $0x470] sm:$0xff]
    %v1218 = vld [vmem:[#allocation6 + $0x478] sm:$0xff]
    %v1219 = vld [vmem:[#allocation6 + $0x480] sm:$0xff]
    %v1220 = vld [vmem:[#allocation6 + $0x488] sm:$0xff]
    %v1221 = vld [vmem:[#allocation6 + $0x490] sm:$0xff]
    %v1222 = vld [vmem:[#allocation6 + $0x498] sm:$0xff]
    %v1223 = vld [vmem:[#allocation6 + $0x4a0] sm:$0xff]
    %v1224 = vld [vmem:[#allocation6 + $0x4a8] sm:$0xff]
    %v1225 = vld [vmem:[#allocation6 + $0x4b0] sm:$0xff]
    %v1226 = vld [vmem:[#allocation6 + $0x4b8] sm:$0xff]
    %v1227 = vld [vmem:[#allocation6 + $0x4c0] sm:$0xff]
    %v1228 = vld [vmem:[#allocation6 + $0x4c8] sm:$0xff]
    %v1229 = vld [vmem:[#allocation6 + $0x4d0] sm:$0xff]
    %v1230 = vld [vmem:[#allocation6 + $0x4d8] sm:$0xff]
    %v1231 = vld [vmem:[#allocation6 + $0x4e0] sm:$0xff]
    %v1232 = vld [vmem:[#allocation6 + $0x4e8] sm:$0xff]
    %v1233 = vld [vmem:[#allocation6 + $0x4f0] sm:$0xff]
    %v1234 = vld [vmem:[#allocation6 + $0x4f8] sm:$0xff]
    %v1235 = vld [vmem:[#allocation6 + $0x500] sm:$0xff]
    %v1236 = vld [vmem:[#allocation6 + $0x508] sm:$0xff]
    %v1237 = vld [vmem:[#allocation6 + $0x510] sm:$0xff]
    %v1238 = vld [vmem:[#allocation6 + $0x518] sm:$0xff]
    %v1239 = vld [vmem:[#allocation6 + $0x520] sm:$0xff]
    %v1240 = vld [vmem:[#allocation6 + $0x528] sm:$0xff]
    %v1241 = vld [vmem:[#allocation6 + $0x530] sm:$0xff]
    %v1242 = vld [vmem:[#allocation6 + $0x538] sm:$0xff]
    %v1243 = vld [vmem:[#allocation6 + $0x540] sm:$0xff]
    %v1244 = vld [vmem:[#allocation6 + $0x548] sm:$0xff]
    %v1245 = vld [vmem:[#allocation6 + $0x550] sm:$0xff]
    %v1246 = vld [vmem:[#allocation6 + $0x558] sm:$0xff]
    %v1247 = vld [vmem:[#allocation6 + $0x560] sm:$0xff]
    %v1248 = vld [vmem:[#allocation6 + $0x568] sm:$0xff]
    %v1249 = vld [vmem:[#allocation6 + $0x570] sm:$0xff]
    %v1250 = vld [vmem:[#allocation6 + $0x578] sm:$0xff]
    %v1251 = vld [vmem:[#allocation6 + $0x580] sm:$0xff]
    %v1252 = vld [vmem:[#allocation6 + $0x588] sm:$0xff]
    %v1253 = vld [vmem:[#allocation6 + $0x590] sm:$0xff]
    %v1254 = vld [vmem:[#allocation6 + $0x598] sm:$0xff]
    %v1255 = vld [vmem:[#allocation6 + $0x5a0] sm:$0xff]
    %v1256 = vld [vmem:[#allocation6 + $0x5a8] sm:$0xff]
    %v1257 = vld [vmem:[#allocation6 + $0x5b0] sm:$0xff]
    %v1258 = vld [vmem:[#allocation6 + $0x5b8] sm:$0xff]
    %v1259 = vld [vmem:[#allocation6 + $0x5c0] sm:$0xff]
    %v1260 = vld [vmem:[#allocation6 + $0x5c8] sm:$0xff]
    %v1261 = vld [vmem:[#allocation6 + $0x5d0] sm:$0xff]
    %v1262 = vld [vmem:[#allocation6 + $0x5d8] sm:$0xff]
    %v1263 = vld [vmem:[#allocation6 + $0x5e0] sm:$0xff]
    %v1264 = vld [vmem:[#allocation6 + $0x5e8] sm:$0xff]
    %v1265 = vld [vmem:[#allocation6 + $0x5f0] sm:$0xff]
    %v1266 = vld [vmem:[#allocation6 + $0x5f8] sm:$0xff]
    %v1267 = vld [vmem:[#allocation6 + $0x600] sm:$0xff]
    %v1268 = vld [vmem:[#allocation6 + $0x608] sm:$0xff]
    %v1269 = vld [vmem:[#allocation6 + $0x610] sm:$0xff]
    %v1270 = vld [vmem:[#allocation6 + $0x618] sm:$0xff]
    %v1271 = vld [vmem:[#allocation6 + $0x620] sm:$0xff]
    %v1272 = vld [vmem:[#allocation6 + $0x628] sm:$0xff]
    %v1273 = vld [vmem:[#allocation6 + $0x630] sm:$0xff]
    %v1274 = vld [vmem:[#allocation6 + $0x638] sm:$0xff]
    %v1275 = vld [vmem:[#allocation6 + $0x640] sm:$0xff]
    %v1276 = vld [vmem:[#allocation6 + $0x648] sm:$0xff]
    %v1277 = vld [vmem:[#allocation6 + $0x650] sm:$0xff]
    %v1278 = vld [vmem:[#allocation6 + $0x658] sm:$0xff]
    %v1279 = vld [vmem:[#allocation6 + $0x660] sm:$0xff]
    %v1280 = vld [vmem:[#allocation6 + $0x668] sm:$0xff]
    %v1281 = vld [vmem:[#allocation6 + $0x670] sm:$0xff]
    %v1282 = vld [vmem:[#allocation6 + $0x678] sm:$0xff]
    %v1283 = vld [vmem:[#allocation6 + $0x680] sm:$0xff]
    %v1284 = vld [vmem:[#allocation6 + $0x688] sm:$0xff]
    %v1285 = vld [vmem:[#allocation6 + $0x690] sm:$0xff]
    %v1286 = vld [vmem:[#allocation6 + $0x698] sm:$0xff]
    %v1287 = vld [vmem:[#allocation6 + $0x6a0] sm:$0xff]
    %v1288 = vld [vmem:[#allocation6 + $0x6a8] sm:$0xff]
    %v1289 = vld [vmem:[#allocation6 + $0x6b0] sm:$0xff]
    %v1290 = vld [vmem:[#allocation6 + $0x6b8] sm:$0xff]
    %v1291 = vld [vmem:[#allocation6 + $0x6c0] sm:$0xff]
    %v1292 = vld [vmem:[#allocation6 + $0x6c8] sm:$0xff]
    %v1293 = vld [vmem:[#allocation6 + $0x6d0] sm:$0xff]
    %v1294 = vld [vmem:[#allocation6 + $0x6d8] sm:$0xff]
    %v1295 = vld [vmem:[#allocation6 + $0x6e0] sm:$0xff]
    %v1296 = vld [vmem:[#allocation6 + $0x6e8] sm:$0xff]
    %v1297 = vld [vmem:[#allocation6 + $0x6f0] sm:$0xff]
    %v1298 = vld [vmem:[#allocation6 + $0x6f8] sm:$0xff]
    %v1299 = vld [vmem:[#allocation6 + $0x700] sm:$0xff]
    %v1300 = vld [vmem:[#allocation6 + $0x708] sm:$0xff]
    %v1301 = vld [vmem:[#allocation6 + $0x710] sm:$0xff]
    %v1302 = vld [vmem:[#allocation6 + $0x718] sm:$0xff]
    %v1303 = vld [vmem:[#allocation6 + $0x720] sm:$0xff]
    %v1304 = vld [vmem:[#allocation6 + $0x728] sm:$0xff]
    %v1305 = vld [vmem:[#allocation6 + $0x730] sm:$0xff]
    %v1306 = vld [vmem:[#allocation6 + $0x738] sm:$0xff]
    %v1307 = vld [vmem:[#allocation6 + $0x740] sm:$0xff]
    %v1308 = vld [vmem:[#allocation6 + $0x748] sm:$0xff]
    %v1309 = vld [vmem:[#allocation6 + $0x750] sm:$0xff]
    %v1310 = vld [vmem:[#allocation6 + $0x758] sm:$0xff]
    %v1311 = vld [vmem:[#allocation6 + $0x760] sm:$0xff]
    %v1312 = vld [vmem:[#allocation6 + $0x768] sm:$0xff]
    %v1313 = vld [vmem:[#allocation6 + $0x770] sm:$0xff]
    %v1314 = vld [vmem:[#allocation6 + $0x778] sm:$0xff]
    %v1315 = vld [vmem:[#allocation6 + $0x780] sm:$0xff]
    %v1316 = vld [vmem:[#allocation6 + $0x788] sm:$0xff]
    %v1317 = vld [vmem:[#allocation6 + $0x790] sm:$0xff]
    %v1318 = vld [vmem:[#allocation6 + $0x798] sm:$0xff]
    %v1319 = vld [vmem:[#allocation6 + $0x7a0] sm:$0xff]
    %v1320 = vld [vmem:[#allocation6 + $0x7a8] sm:$0xff]
    %v1321 = vld [vmem:[#allocation6 + $0x7b0] sm:$0xff]
    %v1322 = vld [vmem:[#allocation6 + $0x7b8] sm:$0xff]
    %v1323 = vld [vmem:[#allocation6 + $0x7c0] sm:$0xff]
    %v1324 = vld [vmem:[#allocation6 + $0x7c8] sm:$0xff]
    %v1325 = vld [vmem:[#allocation6 + $0x7d0] sm:$0xff]
    %v1326 = vld [vmem:[#allocation6 + $0x7d8] sm:$0xff]
    %v1327 = vld [vmem:[#allocation6 + $0x7e0] sm:$0xff]
    %v1328 = vld [vmem:[#allocation6 + $0x7e8] sm:$0xff]
    %v1329 = vld [vmem:[#allocation6 + $0x7f0] sm:$0xff]
    %v1330 = vld [vmem:[#allocation6 + $0x7f8] sm:$0xff]
    %v1331 = vld [vmem:[%s7] sm:$0xf]
    %v1333 = vlaneseq
    %v1334 = vshrl.u32 %v1333, 7
    %v1335 = vsub.s32 0, %v1334
    %v1336 = vrot.slane %v1331, %v1335
    %v1337 = vlaneseq
    %v1338 = vshrl.u32 %v1337, 7
    %v1339 = vsub.s32 1, %v1338
    %v1340 = vrot.slane %v1331, %v1339
    %v1341 = vlaneseq
    %v1342 = vshrl.u32 %v1341, 7
    %v1343 = vsub.s32 2, %v1342
    %v1344 = vrot.slane %v1331, %v1343
    %v1345 = vlaneseq
    %v1346 = vshrl.u32 %v1345, 7
    %v1347 = vsub.s32 3, %v1346
    %v1348 = vrot.slane %v1331, %v1347
    %v1609 = vunpack.c.l.b16 %v1075
    %v1610 = vunpack.c.h.b16 %v1075
    %v1611 = vunpack.c.l.b16 %v1076
    %v1612 = vunpack.c.h.b16 %v1076
    %v1613 = vunpack.c.l.b16 %v1077
    %v1614 = vunpack.c.h.b16 %v1077
    %v1615 = vunpack.c.l.b16 %v1078
    %v1616 = vunpack.c.h.b16 %v1078
    %v1617 = vunpack.c.l.b16 %v1079
    %v1618 = vunpack.c.h.b16 %v1079
    %v1619 = vunpack.c.l.b16 %v1080
    %v1620 = vunpack.c.h.b16 %v1080
    %v1621 = vunpack.c.l.b16 %v1081
    %v1622 = vunpack.c.h.b16 %v1081
    %v1623 = vunpack.c.l.b16 %v1082
    %v1624 = vunpack.c.h.b16 %v1082
    %v1625 = vunpack.c.l.b16 %v1083
    %v1626 = vunpack.c.h.b16 %v1083
    %v1627 = vunpack.c.l.b16 %v1084
    %v1628 = vunpack.c.h.b16 %v1084
    %v1629 = vunpack.c.l.b16 %v1085
    %v1630 = vunpack.c.h.b16 %v1085
    %v1631 = vunpack.c.l.b16 %v1086
    %v1632 = vunpack.c.h.b16 %v1086
    %v1633 = vunpack.c.l.b16 %v1087
    %v1634 = vunpack.c.h.b16 %v1087
    %v1635 = vunpack.c.l.b16 %v1088
    %v1636 = vunpack.c.h.b16 %v1088
    %v1637 = vunpack.c.l.b16 %v1089
    %v1638 = vunpack.c.h.b16 %v1089
    %v1639 = vunpack.c.l.b16 %v1090
    %v1640 = vunpack.c.h.b16 %v1090
    %v1641 = vunpack.c.l.b16 %v1091
    %v1642 = vunpack.c.h.b16 %v1091
    %v1643 = vunpack.c.l.b16 %v1092
    %v1644 = vunpack.c.h.b16 %v1092
    %v1645 = vunpack.c.l.b16 %v1093
    %v1646 = vunpack.c.h.b16 %v1093
    %v1647 = vunpack.c.l.b16 %v1094
    %v1648 = vunpack.c.h.b16 %v1094
    %v1649 = vunpack.c.l.b16 %v1095
    %v1650 = vunpack.c.h.b16 %v1095
    %v1651 = vunpack.c.l.b16 %v1096
    %v1652 = vunpack.c.h.b16 %v1096
    %v1653 = vunpack.c.l.b16 %v1097
    %v1654 = vunpack.c.h.b16 %v1097
    %v1655 = vunpack.c.l.b16 %v1098
    %v1656 = vunpack.c.h.b16 %v1098
    %v1657 = vunpack.c.l.b16 %v1099
    %v1658 = vunpack.c.h.b16 %v1099
    %v1659 = vunpack.c.l.b16 %v1100
    %v1660 = vunpack.c.h.b16 %v1100
    %v1661 = vunpack.c.l.b16 %v1101
    %v1662 = vunpack.c.h.b16 %v1101
    %v1663 = vunpack.c.l.b16 %v1102
    %v1664 = vunpack.c.h.b16 %v1102
    %v1665 = vunpack.c.l.b16 %v1103
    %v1666 = vunpack.c.h.b16 %v1103
    %v1667 = vunpack.c.l.b16 %v1104
    %v1668 = vunpack.c.h.b16 %v1104
    %v1669 = vunpack.c.l.b16 %v1105
    %v1670 = vunpack.c.h.b16 %v1105
    %v1671 = vunpack.c.l.b16 %v1106
    %v1672 = vunpack.c.h.b16 %v1106
    %v1673 = vunpack.c.l.b16 %v1107
    %v1674 = vunpack.c.h.b16 %v1107
    %v1675 = vunpack.c.l.b16 %v1108
    %v1676 = vunpack.c.h.b16 %v1108
    %v1677 = vunpack.c.l.b16 %v1109
    %v1678 = vunpack.c.h.b16 %v1109
    %v1679 = vunpack.c.l.b16 %v1110
    %v1680 = vunpack.c.h.b16 %v1110
    %v1681 = vunpack.c.l.b16 %v1111
    %v1682 = vunpack.c.h.b16 %v1111
    %v1683 = vunpack.c.l.b16 %v1112
    %v1684 = vunpack.c.h.b16 %v1112
    %v1685 = vunpack.c.l.b16 %v1113
    %v1686 = vunpack.c.h.b16 %v1113
    %v1687 = vunpack.c.l.b16 %v1114
    %v1688 = vunpack.c.h.b16 %v1114
    %v1689 = vunpack.c.l.b16 %v1115
    %v1690 = vunpack.c.h.b16 %v1115
    %v1691 = vunpack.c.l.b16 %v1116
    %v1692 = vunpack.c.h.b16 %v1116
    %v1693 = vunpack.c.l.b16 %v1117
    %v1694 = vunpack.c.h.b16 %v1117
    %v1695 = vunpack.c.l.b16 %v1118
    %v1696 = vunpack.c.h.b16 %v1118
    %v1697 = vunpack.c.l.b16 %v1119
    %v1698 = vunpack.c.h.b16 %v1119
    %v1699 = vunpack.c.l.b16 %v1120
    %v1700 = vunpack.c.h.b16 %v1120
    %v1701 = vunpack.c.l.b16 %v1121
    %v1702 = vunpack.c.h.b16 %v1121
    %v1703 = vunpack.c.l.b16 %v1122
    %v1704 = vunpack.c.h.b16 %v1122
    %v1705 = vunpack.c.l.b16 %v1123
    %v1706 = vunpack.c.h.b16 %v1123
    %v1707 = vunpack.c.l.b16 %v1124
    %v1708 = vunpack.c.h.b16 %v1124
    %v1709 = vunpack.c.l.b16 %v1125
    %v1710 = vunpack.c.h.b16 %v1125
    %v1711 = vunpack.c.l.b16 %v1126
    %v1712 = vunpack.c.h.b16 %v1126
    %v1713 = vunpack.c.l.b16 %v1127
    %v1714 = vunpack.c.h.b16 %v1127
    %v1715 = vunpack.c.l.b16 %v1128
    %v1716 = vunpack.c.h.b16 %v1128
    %v1717 = vunpack.c.l.b16 %v1129
    %v1718 = vunpack.c.h.b16 %v1129
    %v1719 = vunpack.c.l.b16 %v1130
    %v1720 = vunpack.c.h.b16 %v1130
    %v1721 = vunpack.c.l.b16 %v1131
    %v1722 = vunpack.c.h.b16 %v1131
    %v1723 = vunpack.c.l.b16 %v1132
    %v1724 = vunpack.c.h.b16 %v1132
    %v1725 = vunpack.c.l.b16 %v1133
    %v1726 = vunpack.c.h.b16 %v1133
    %v1727 = vunpack.c.l.b16 %v1134
    %v1728 = vunpack.c.h.b16 %v1134
    %v1729 = vunpack.c.l.b16 %v1135
    %v1730 = vunpack.c.h.b16 %v1135
    %v1731 = vunpack.c.l.b16 %v1136
    %v1732 = vunpack.c.h.b16 %v1136
    %v1733 = vunpack.c.l.b16 %v1137
    %v1734 = vunpack.c.h.b16 %v1137
    %v1735 = vunpack.c.l.b16 %v1138
    %v1736 = vunpack.c.h.b16 %v1138
    %v1737 = vunpack.c.l.b16 %v1139
    %v1738 = vunpack.c.h.b16 %v1139
    %v1739 = vunpack.c.l.b16 %v1140
    %v1740 = vunpack.c.h.b16 %v1140
    %v1741 = vunpack.c.l.b16 %v1141
    %v1742 = vunpack.c.h.b16 %v1141
    %v1743 = vunpack.c.l.b16 %v1142
    %v1744 = vunpack.c.h.b16 %v1142
    %v1745 = vunpack.c.l.b16 %v1143
    %v1746 = vunpack.c.h.b16 %v1143
    %v1747 = vunpack.c.l.b16 %v1144
    %v1748 = vunpack.c.h.b16 %v1144
    %v1749 = vunpack.c.l.b16 %v1145
    %v1750 = vunpack.c.h.b16 %v1145
    %v1751 = vunpack.c.l.b16 %v1146
    %v1752 = vunpack.c.h.b16 %v1146
    %v1753 = vunpack.c.l.b16 %v1147
    %v1754 = vunpack.c.h.b16 %v1147
    %v1755 = vunpack.c.l.b16 %v1148
    %v1756 = vunpack.c.h.b16 %v1148
    %v1757 = vunpack.c.l.b16 %v1149
    %v1758 = vunpack.c.h.b16 %v1149
    %v1759 = vunpack.c.l.b16 %v1150
    %v1760 = vunpack.c.h.b16 %v1150
    %v1761 = vunpack.c.l.b16 %v1151
    %v1762 = vunpack.c.h.b16 %v1151
    %v1763 = vunpack.c.l.b16 %v1152
    %v1764 = vunpack.c.h.b16 %v1152
    %v1765 = vunpack.c.l.b16 %v1153
    %v1766 = vunpack.c.h.b16 %v1153
    %v1767 = vunpack.c.l.b16 %v1154
    %v1768 = vunpack.c.h.b16 %v1154
    %v1769 = vunpack.c.l.b16 %v1155
    %v1770 = vunpack.c.h.b16 %v1155
    %v1771 = vunpack.c.l.b16 %v1156
    %v1772 = vunpack.c.h.b16 %v1156
    %v1773 = vunpack.c.l.b16 %v1157
    %v1774 = vunpack.c.h.b16 %v1157
    %v1775 = vunpack.c.l.b16 %v1158
    %v1776 = vunpack.c.h.b16 %v1158
    %v1777 = vunpack.c.l.b16 %v1159
    %v1778 = vunpack.c.h.b16 %v1159
    %v1779 = vunpack.c.l.b16 %v1160
    %v1780 = vunpack.c.h.b16 %v1160
    %v1781 = vunpack.c.l.b16 %v1161
    %v1782 = vunpack.c.h.b16 %v1161
    %v1783 = vunpack.c.l.b16 %v1162
    %v1784 = vunpack.c.h.b16 %v1162
    %v1785 = vunpack.c.l.b16 %v1163
    %v1786 = vunpack.c.h.b16 %v1163
    %v1787 = vunpack.c.l.b16 %v1164
    %v1788 = vunpack.c.h.b16 %v1164
    %v1789 = vunpack.c.l.b16 %v1165
    %v1790 = vunpack.c.h.b16 %v1165
    %v1791 = vunpack.c.l.b16 %v1166
    %v1792 = vunpack.c.h.b16 %v1166
    %v1793 = vunpack.c.l.b16 %v1167
    %v1794 = vunpack.c.h.b16 %v1167
    %v1795 = vunpack.c.l.b16 %v1168
    %v1796 = vunpack.c.h.b16 %v1168
    %v1797 = vunpack.c.l.b16 %v1169
    %v1798 = vunpack.c.h.b16 %v1169
    %v1799 = vunpack.c.l.b16 %v1170
    %v1800 = vunpack.c.h.b16 %v1170
    %v1801 = vunpack.c.l.b16 %v1171
    %v1802 = vunpack.c.h.b16 %v1171
    %v1803 = vunpack.c.l.b16 %v1172
    %v1804 = vunpack.c.h.b16 %v1172
    %v1805 = vunpack.c.l.b16 %v1173
    %v1806 = vunpack.c.h.b16 %v1173
    %v1807 = vunpack.c.l.b16 %v1174
    %v1808 = vunpack.c.h.b16 %v1174
    %v1809 = vunpack.c.l.b16 %v1175
    %v1810 = vunpack.c.h.b16 %v1175
    %v1811 = vunpack.c.l.b16 %v1176
    %v1812 = vunpack.c.h.b16 %v1176
    %v1813 = vunpack.c.l.b16 %v1177
    %v1814 = vunpack.c.h.b16 %v1177
    %v1815 = vunpack.c.l.b16 %v1178
    %v1816 = vunpack.c.h.b16 %v1178
    %v1817 = vunpack.c.l.b16 %v1179
    %v1818 = vunpack.c.h.b16 %v1179
    %v1819 = vunpack.c.l.b16 %v1180
    %v1820 = vunpack.c.h.b16 %v1180
    %v1821 = vunpack.c.l.b16 %v1181
    %v1822 = vunpack.c.h.b16 %v1181
    %v1823 = vunpack.c.l.b16 %v1182
    %v1824 = vunpack.c.h.b16 %v1182
    %v1825 = vunpack.c.l.b16 %v1183
    %v1826 = vunpack.c.h.b16 %v1183
    %v1827 = vunpack.c.l.b16 %v1184
    %v1828 = vunpack.c.h.b16 %v1184
    %v1829 = vunpack.c.l.b16 %v1185
    %v1830 = vunpack.c.h.b16 %v1185
    %v1831 = vunpack.c.l.b16 %v1186
    %v1832 = vunpack.c.h.b16 %v1186
    %v1833 = vunpack.c.l.b16 %v1187
    %v1834 = vunpack.c.h.b16 %v1187
    %v1835 = vunpack.c.l.b16 %v1188
    %v1836 = vunpack.c.h.b16 %v1188
    %v1837 = vunpack.c.l.b16 %v1189
    %v1838 = vunpack.c.h.b16 %v1189
    %v1839 = vunpack.c.l.b16 %v1190
    %v1840 = vunpack.c.h.b16 %v1190
    %v1841 = vunpack.c.l.b16 %v1191
    %v1842 = vunpack.c.h.b16 %v1191
    %v1843 = vunpack.c.l.b16 %v1192
    %v1844 = vunpack.c.h.b16 %v1192
    %v1845 = vunpack.c.l.b16 %v1193
    %v1846 = vunpack.c.h.b16 %v1193
    %v1847 = vunpack.c.l.b16 %v1194
    %v1848 = vunpack.c.h.b16 %v1194
    %v1849 = vunpack.c.l.b16 %v1195
    %v1850 = vunpack.c.h.b16 %v1195
    %v1851 = vunpack.c.l.b16 %v1196
    %v1852 = vunpack.c.h.b16 %v1196
    %v1853 = vunpack.c.l.b16 %v1197
    %v1854 = vunpack.c.h.b16 %v1197
    %v1855 = vunpack.c.l.b16 %v1198
    %v1856 = vunpack.c.h.b16 %v1198
    %v1857 = vunpack.c.l.b16 %v1199
    %v1858 = vunpack.c.h.b16 %v1199
    %v1859 = vunpack.c.l.b16 %v1200
    %v1860 = vunpack.c.h.b16 %v1200
    %v1861 = vunpack.c.l.b16 %v1201
    %v1862 = vunpack.c.h.b16 %v1201
    %v1863 = vunpack.c.l.b16 %v1202
    %v1864 = vunpack.c.h.b16 %v1202
    %v1865 = vunpack.c.l.b16 %v1203
    %v1866 = vunpack.c.h.b16 %v1203
    %v1867 = vunpack.c.l.b16 %v1204
    %v1868 = vunpack.c.h.b16 %v1204
    %v1869 = vunpack.c.l.b16 %v1205
    %v1870 = vunpack.c.h.b16 %v1205
    %v1871 = vunpack.c.l.b16 %v1206
    %v1872 = vunpack.c.h.b16 %v1206
    %v1873 = vunpack.c.l.b16 %v1207
    %v1874 = vunpack.c.h.b16 %v1207
    %v1875 = vunpack.c.l.b16 %v1208
    %v1876 = vunpack.c.h.b16 %v1208
    %v1877 = vunpack.c.l.b16 %v1209
    %v1878 = vunpack.c.h.b16 %v1209
    %v1879 = vunpack.c.l.b16 %v1210
    %v1880 = vunpack.c.h.b16 %v1210
    %v1881 = vunpack.c.l.b16 %v1211
    %v1882 = vunpack.c.h.b16 %v1211
    %v1883 = vunpack.c.l.b16 %v1212
    %v1884 = vunpack.c.h.b16 %v1212
    %v1885 = vunpack.c.l.b16 %v1213
    %v1886 = vunpack.c.h.b16 %v1213
    %v1887 = vunpack.c.l.b16 %v1214
    %v1888 = vunpack.c.h.b16 %v1214
    %v1889 = vunpack.c.l.b16 %v1215
    %v1890 = vunpack.c.h.b16 %v1215
    %v1891 = vunpack.c.l.b16 %v1216
    %v1892 = vunpack.c.h.b16 %v1216
    %v1893 = vunpack.c.l.b16 %v1217
    %v1894 = vunpack.c.h.b16 %v1217
    %v1895 = vunpack.c.l.b16 %v1218
    %v1896 = vunpack.c.h.b16 %v1218
    %v1897 = vunpack.c.l.b16 %v1219
    %v1898 = vunpack.c.h.b16 %v1219
    %v1899 = vunpack.c.l.b16 %v1220
    %v1900 = vunpack.c.h.b16 %v1220
    %v1901 = vunpack.c.l.b16 %v1221
    %v1902 = vunpack.c.h.b16 %v1221
    %v1903 = vunpack.c.l.b16 %v1222
    %v1904 = vunpack.c.h.b16 %v1222
    %v1905 = vunpack.c.l.b16 %v1223
    %v1906 = vunpack.c.h.b16 %v1223
    %v1907 = vunpack.c.l.b16 %v1224
    %v1908 = vunpack.c.h.b16 %v1224
    %v1909 = vunpack.c.l.b16 %v1225
    %v1910 = vunpack.c.h.b16 %v1225
    %v1911 = vunpack.c.l.b16 %v1226
    %v1912 = vunpack.c.h.b16 %v1226
    %v1913 = vunpack.c.l.b16 %v1227
    %v1914 = vunpack.c.h.b16 %v1227
    %v1915 = vunpack.c.l.b16 %v1228
    %v1916 = vunpack.c.h.b16 %v1228
    %v1917 = vunpack.c.l.b16 %v1229
    %v1918 = vunpack.c.h.b16 %v1229
    %v1919 = vunpack.c.l.b16 %v1230
    %v1920 = vunpack.c.h.b16 %v1230
    %v1921 = vunpack.c.l.b16 %v1231
    %v1922 = vunpack.c.h.b16 %v1231
    %v1923 = vunpack.c.l.b16 %v1232
    %v1924 = vunpack.c.h.b16 %v1232
    %v1925 = vunpack.c.l.b16 %v1233
    %v1926 = vunpack.c.h.b16 %v1233
    %v1927 = vunpack.c.l.b16 %v1234
    %v1928 = vunpack.c.h.b16 %v1234
    %v1929 = vunpack.c.l.b16 %v1235
    %v1930 = vunpack.c.h.b16 %v1235
    %v1931 = vunpack.c.l.b16 %v1236
    %v1932 = vunpack.c.h.b16 %v1236
    %v1933 = vunpack.c.l.b16 %v1237
    %v1934 = vunpack.c.h.b16 %v1237
    %v1935 = vunpack.c.l.b16 %v1238
    %v1936 = vunpack.c.h.b16 %v1238
    %v1937 = vunpack.c.l.b16 %v1239
    %v1938 = vunpack.c.h.b16 %v1239
    %v1939 = vunpack.c.l.b16 %v1240
    %v1940 = vunpack.c.h.b16 %v1240
    %v1941 = vunpack.c.l.b16 %v1241
    %v1942 = vunpack.c.h.b16 %v1241
    %v1943 = vunpack.c.l.b16 %v1242
    %v1944 = vunpack.c.h.b16 %v1242
    %v1945 = vunpack.c.l.b16 %v1243
    %v1946 = vunpack.c.h.b16 %v1243
    %v1947 = vunpack.c.l.b16 %v1244
    %v1948 = vunpack.c.h.b16 %v1244
    %v1949 = vunpack.c.l.b16 %v1245
    %v1950 = vunpack.c.h.b16 %v1245
    %v1951 = vunpack.c.l.b16 %v1246
    %v1952 = vunpack.c.h.b16 %v1246
    %v1953 = vunpack.c.l.b16 %v1247
    %v1954 = vunpack.c.h.b16 %v1247
    %v1955 = vunpack.c.l.b16 %v1248
    %v1956 = vunpack.c.h.b16 %v1248
    %v1957 = vunpack.c.l.b16 %v1249
    %v1958 = vunpack.c.h.b16 %v1249
    %v1959 = vunpack.c.l.b16 %v1250
    %v1960 = vunpack.c.h.b16 %v1250
    %v1961 = vunpack.c.l.b16 %v1251
    %v1962 = vunpack.c.h.b16 %v1251
    %v1963 = vunpack.c.l.b16 %v1252
    %v1964 = vunpack.c.h.b16 %v1252
    %v1965 = vunpack.c.l.b16 %v1253
    %v1966 = vunpack.c.h.b16 %v1253
    %v1967 = vunpack.c.l.b16 %v1254
    %v1968 = vunpack.c.h.b16 %v1254
    %v1969 = vunpack.c.l.b16 %v1255
    %v1970 = vunpack.c.h.b16 %v1255
    %v1971 = vunpack.c.l.b16 %v1256
    %v1972 = vunpack.c.h.b16 %v1256
    %v1973 = vunpack.c.l.b16 %v1257
    %v1974 = vunpack.c.h.b16 %v1257
    %v1975 = vunpack.c.l.b16 %v1258
    %v1976 = vunpack.c.h.b16 %v1258
    %v1977 = vunpack.c.l.b16 %v1259
    %v1978 = vunpack.c.h.b16 %v1259
    %v1979 = vunpack.c.l.b16 %v1260
    %v1980 = vunpack.c.h.b16 %v1260
    %v1981 = vunpack.c.l.b16 %v1261
    %v1982 = vunpack.c.h.b16 %v1261
    %v1983 = vunpack.c.l.b16 %v1262
    %v1984 = vunpack.c.h.b16 %v1262
    %v1985 = vunpack.c.l.b16 %v1263
    %v1986 = vunpack.c.h.b16 %v1263
    %v1987 = vunpack.c.l.b16 %v1264
    %v1988 = vunpack.c.h.b16 %v1264
    %v1989 = vunpack.c.l.b16 %v1265
    %v1990 = vunpack.c.h.b16 %v1265
    %v1991 = vunpack.c.l.b16 %v1266
    %v1992 = vunpack.c.h.b16 %v1266
    %v1993 = vunpack.c.l.b16 %v1267
    %v1994 = vunpack.c.h.b16 %v1267
    %v1995 = vunpack.c.l.b16 %v1268
    %v1996 = vunpack.c.h.b16 %v1268
    %v1997 = vunpack.c.l.b16 %v1269
    %v1998 = vunpack.c.h.b16 %v1269
    %v1999 = vunpack.c.l.b16 %v1270
    %v2000 = vunpack.c.h.b16 %v1270
    %v2001 = vunpack.c.l.b16 %v1271
    %v2002 = vunpack.c.h.b16 %v1271
    %v2003 = vunpack.c.l.b16 %v1272
    %v2004 = vunpack.c.h.b16 %v1272
    %v2005 = vunpack.c.l.b16 %v1273
    %v2006 = vunpack.c.h.b16 %v1273
    %v2007 = vunpack.c.l.b16 %v1274
    %v2008 = vunpack.c.h.b16 %v1274
    %v2009 = vunpack.c.l.b16 %v1275
    %v2010 = vunpack.c.h.b16 %v1275
    %v2011 = vunpack.c.l.b16 %v1276
    %v2012 = vunpack.c.h.b16 %v1276
    %v2013 = vunpack.c.l.b16 %v1277
    %v2014 = vunpack.c.h.b16 %v1277
    %v2015 = vunpack.c.l.b16 %v1278
    %v2016 = vunpack.c.h.b16 %v1278
    %v2017 = vunpack.c.l.b16 %v1279
    %v2018 = vunpack.c.h.b16 %v1279
    %v2019 = vunpack.c.l.b16 %v1280
    %v2020 = vunpack.c.h.b16 %v1280
    %v2021 = vunpack.c.l.b16 %v1281
    %v2022 = vunpack.c.h.b16 %v1281
    %v2023 = vunpack.c.l.b16 %v1282
    %v2024 = vunpack.c.h.b16 %v1282
    %v2025 = vunpack.c.l.b16 %v1283
    %v2026 = vunpack.c.h.b16 %v1283
    %v2027 = vunpack.c.l.b16 %v1284
    %v2028 = vunpack.c.h.b16 %v1284
    %v2029 = vunpack.c.l.b16 %v1285
    %v2030 = vunpack.c.h.b16 %v1285
    %v2031 = vunpack.c.l.b16 %v1286
    %v2032 = vunpack.c.h.b16 %v1286
    %v2033 = vunpack.c.l.b16 %v1287
    %v2034 = vunpack.c.h.b16 %v1287
    %v2035 = vunpack.c.l.b16 %v1288
    %v2036 = vunpack.c.h.b16 %v1288
    %v2037 = vunpack.c.l.b16 %v1289
    %v2038 = vunpack.c.h.b16 %v1289
    %v2039 = vunpack.c.l.b16 %v1290
    %v2040 = vunpack.c.h.b16 %v1290
    %v2041 = vunpack.c.l.b16 %v1291
    %v2042 = vunpack.c.h.b16 %v1291
    %v2043 = vunpack.c.l.b16 %v1292
    %v2044 = vunpack.c.h.b16 %v1292
    %v2045 = vunpack.c.l.b16 %v1293
    %v2046 = vunpack.c.h.b16 %v1293
    %v2047 = vunpack.c.l.b16 %v1294
    %v2048 = vunpack.c.h.b16 %v1294
    %v2049 = vunpack.c.l.b16 %v1295
    %v2050 = vunpack.c.h.b16 %v1295
    %v2051 = vunpack.c.l.b16 %v1296
    %v2052 = vunpack.c.h.b16 %v1296
    %v2053 = vunpack.c.l.b16 %v1297
    %v2054 = vunpack.c.h.b16 %v1297
    %v2055 = vunpack.c.l.b16 %v1298
    %v2056 = vunpack.c.h.b16 %v1298
    %v2057 = vunpack.c.l.b16 %v1299
    %v2058 = vunpack.c.h.b16 %v1299
    %v2059 = vunpack.c.l.b16 %v1300
    %v2060 = vunpack.c.h.b16 %v1300
    %v2061 = vunpack.c.l.b16 %v1301
    %v2062 = vunpack.c.h.b16 %v1301
    %v2063 = vunpack.c.l.b16 %v1302
    %v2064 = vunpack.c.h.b16 %v1302
    %v2065 = vunpack.c.l.b16 %v1303
    %v2066 = vunpack.c.h.b16 %v1303
    %v2067 = vunpack.c.l.b16 %v1304
    %v2068 = vunpack.c.h.b16 %v1304
    %v2069 = vunpack.c.l.b16 %v1305
    %v2070 = vunpack.c.h.b16 %v1305
    %v2071 = vunpack.c.l.b16 %v1306
    %v2072 = vunpack.c.h.b16 %v1306
    %v2073 = vunpack.c.l.b16 %v1307
    %v2074 = vunpack.c.h.b16 %v1307
    %v2075 = vunpack.c.l.b16 %v1308
    %v2076 = vunpack.c.h.b16 %v1308
    %v2077 = vunpack.c.l.b16 %v1309
    %v2078 = vunpack.c.h.b16 %v1309
    %v2079 = vunpack.c.l.b16 %v1310
    %v2080 = vunpack.c.h.b16 %v1310
    %v2081 = vunpack.c.l.b16 %v1311
    %v2082 = vunpack.c.h.b16 %v1311
    %v2083 = vunpack.c.l.b16 %v1312
    %v2084 = vunpack.c.h.b16 %v1312
    %v2085 = vunpack.c.l.b16 %v1313
    %v2086 = vunpack.c.h.b16 %v1313
    %v2087 = vunpack.c.l.b16 %v1314
    %v2088 = vunpack.c.h.b16 %v1314
    %v2089 = vunpack.c.l.b16 %v1315
    %v2090 = vunpack.c.h.b16 %v1315
    %v2091 = vunpack.c.l.b16 %v1316
    %v2092 = vunpack.c.h.b16 %v1316
    %v2093 = vunpack.c.l.b16 %v1317
    %v2094 = vunpack.c.h.b16 %v1317
    %v2095 = vunpack.c.l.b16 %v1318
    %v2096 = vunpack.c.h.b16 %v1318
    %v2097 = vunpack.c.l.b16 %v1319
    %v2098 = vunpack.c.h.b16 %v1319
    %v2099 = vunpack.c.l.b16 %v1320
    %v2100 = vunpack.c.h.b16 %v1320
    %v2101 = vunpack.c.l.b16 %v1321
    %v2102 = vunpack.c.h.b16 %v1321
    %v2103 = vunpack.c.l.b16 %v1322
    %v2104 = vunpack.c.h.b16 %v1322
    %v2105 = vunpack.c.l.b16 %v1323
    %v2106 = vunpack.c.h.b16 %v1323
    %v2107 = vunpack.c.l.b16 %v1324
    %v2108 = vunpack.c.h.b16 %v1324
    %v2109 = vunpack.c.l.b16 %v1325
    %v2110 = vunpack.c.h.b16 %v1325
    %v2111 = vunpack.c.l.b16 %v1326
    %v2112 = vunpack.c.h.b16 %v1326
    %v2113 = vunpack.c.l.b16 %v1327
    %v2114 = vunpack.c.h.b16 %v1327
    %v2115 = vunpack.c.l.b16 %v1328
    %v2116 = vunpack.c.h.b16 %v1328
    %v2117 = vunpack.c.l.b16 %v1329
    %v2118 = vunpack.c.h.b16 %v1329
    %v2119 = vunpack.c.l.b16 %v1330
    %v2120 = vunpack.c.h.b16 %v1330
    %v2121 = vpack.c.b16 %v1613, %v1609
    %v2122 = vpack.c.b16 %v1614, %v1610
    %v2123 = vpack.c.b16 %v1615, %v1611
    %v2124 = vpack.c.b16 %v1616, %v1612
    %v2125 = vpack.c.b16 %v1621, %v1617
    %v2126 = vpack.c.b16 %v1622, %v1618
    %v2127 = vpack.c.b16 %v1623, %v1619
    %v2128 = vpack.c.b16 %v1624, %v1620
    %v2129 = vpack.c.b16 %v1629, %v1625
    %v2130 = vpack.c.b16 %v1630, %v1626
    %v2131 = vpack.c.b16 %v1631, %v1627
    %v2132 = vpack.c.b16 %v1632, %v1628
    %v2133 = vpack.c.b16 %v1637, %v1633
    %v2134 = vpack.c.b16 %v1638, %v1634
    %v2135 = vpack.c.b16 %v1639, %v1635
    %v2136 = vpack.c.b16 %v1640, %v1636
    %v2137 = vpack.c.b16 %v1645, %v1641
    %v2138 = vpack.c.b16 %v1646, %v1642
    %v2139 = vpack.c.b16 %v1647, %v1643
    %v2140 = vpack.c.b16 %v1648, %v1644
    %v2141 = vpack.c.b16 %v1653, %v1649
    %v2142 = vpack.c.b16 %v1654, %v1650
    %v2143 = vpack.c.b16 %v1655, %v1651
    %v2144 = vpack.c.b16 %v1656, %v1652
    %v2145 = vpack.c.b16 %v1661, %v1657
    %v2146 = vpack.c.b16 %v1662, %v1658
    %v2147 = vpack.c.b16 %v1663, %v1659
    %v2148 = vpack.c.b16 %v1664, %v1660
    %v2149 = vpack.c.b16 %v1669, %v1665
    %v2150 = vpack.c.b16 %v1670, %v1666
    %v2151 = vpack.c.b16 %v1671, %v1667
    %v2152 = vpack.c.b16 %v1672, %v1668
    %v2153 = vpack.c.b16 %v1677, %v1673
    %v2154 = vpack.c.b16 %v1678, %v1674
    %v2155 = vpack.c.b16 %v1679, %v1675
    %v2156 = vpack.c.b16 %v1680, %v1676
    %v2157 = vpack.c.b16 %v1685, %v1681
    %v2158 = vpack.c.b16 %v1686, %v1682
    %v2159 = vpack.c.b16 %v1687, %v1683
    %v2160 = vpack.c.b16 %v1688, %v1684
    %v2161 = vpack.c.b16 %v1693, %v1689
    %v2162 = vpack.c.b16 %v1694, %v1690
    %v2163 = vpack.c.b16 %v1695, %v1691
    %v2164 = vpack.c.b16 %v1696, %v1692
    %v2165 = vpack.c.b16 %v1701, %v1697
    %v2166 = vpack.c.b16 %v1702, %v1698
    %v2167 = vpack.c.b16 %v1703, %v1699
    %v2168 = vpack.c.b16 %v1704, %v1700
    %v2169 = vpack.c.b16 %v1709, %v1705
    %v2170 = vpack.c.b16 %v1710, %v1706
    %v2171 = vpack.c.b16 %v1711, %v1707
    %v2172 = vpack.c.b16 %v1712, %v1708
    %v2173 = vpack.c.b16 %v1717, %v1713
    %v2174 = vpack.c.b16 %v1718, %v1714
    %v2175 = vpack.c.b16 %v1719, %v1715
    %v2176 = vpack.c.b16 %v1720, %v1716
    %v2177 = vpack.c.b16 %v1725, %v1721
    %v2178 = vpack.c.b16 %v1726, %v1722
    %v2179 = vpack.c.b16 %v1727, %v1723
    %v2180 = vpack.c.b16 %v1728, %v1724
    %v2181 = vpack.c.b16 %v1733, %v1729
    %v2182 = vpack.c.b16 %v1734, %v1730
    %v2183 = vpack.c.b16 %v1735, %v1731
    %v2184 = vpack.c.b16 %v1736, %v1732
    %v2185 = vpack.c.b16 %v1741, %v1737
    %v2186 = vpack.c.b16 %v1742, %v1738
    %v2187 = vpack.c.b16 %v1743, %v1739
    %v2188 = vpack.c.b16 %v1744, %v1740
    %v2189 = vpack.c.b16 %v1749, %v1745
    %v2190 = vpack.c.b16 %v1750, %v1746
    %v2191 = vpack.c.b16 %v1751, %v1747
    %v2192 = vpack.c.b16 %v1752, %v1748
    %v2193 = vpack.c.b16 %v1757, %v1753
    %v2194 = vpack.c.b16 %v1758, %v1754
    %v2195 = vpack.c.b16 %v1759, %v1755
    %v2196 = vpack.c.b16 %v1760, %v1756
    %v2197 = vpack.c.b16 %v1765, %v1761
    %v2198 = vpack.c.b16 %v1766, %v1762
    %v2199 = vpack.c.b16 %v1767, %v1763
    %v2200 = vpack.c.b16 %v1768, %v1764
    %v2201 = vpack.c.b16 %v1773, %v1769
    %v2202 = vpack.c.b16 %v1774, %v1770
    %v2203 = vpack.c.b16 %v1775, %v1771
    %v2204 = vpack.c.b16 %v1776, %v1772
    %v2205 = vpack.c.b16 %v1781, %v1777
    %v2206 = vpack.c.b16 %v1782, %v1778
    %v2207 = vpack.c.b16 %v1783, %v1779
    %v2208 = vpack.c.b16 %v1784, %v1780
    %v2209 = vpack.c.b16 %v1789, %v1785
    %v2210 = vpack.c.b16 %v1790, %v1786
    %v2211 = vpack.c.b16 %v1791, %v1787
    %v2212 = vpack.c.b16 %v1792, %v1788
    %v2213 = vpack.c.b16 %v1797, %v1793
    %v2214 = vpack.c.b16 %v1798, %v1794
    %v2215 = vpack.c.b16 %v1799, %v1795
    %v2216 = vpack.c.b16 %v1800, %v1796
    %v2217 = vpack.c.b16 %v1805, %v1801
    %v2218 = vpack.c.b16 %v1806, %v1802
    %v2219 = vpack.c.b16 %v1807, %v1803
    %v2220 = vpack.c.b16 %v1808, %v1804
    %v2221 = vpack.c.b16 %v1813, %v1809
    %v2222 = vpack.c.b16 %v1814, %v1810
    %v2223 = vpack.c.b16 %v1815, %v1811
    %v2224 = vpack.c.b16 %v1816, %v1812
    %v2225 = vpack.c.b16 %v1821, %v1817
    %v2226 = vpack.c.b16 %v1822, %v1818
    %v2227 = vpack.c.b16 %v1823, %v1819
    %v2228 = vpack.c.b16 %v1824, %v1820
    %v2229 = vpack.c.b16 %v1829, %v1825
    %v2230 = vpack.c.b16 %v1830, %v1826
    %v2231 = vpack.c.b16 %v1831, %v1827
    %v2232 = vpack.c.b16 %v1832, %v1828
    %v2233 = vpack.c.b16 %v1837, %v1833
    %v2234 = vpack.c.b16 %v1838, %v1834
    %v2235 = vpack.c.b16 %v1839, %v1835
    %v2236 = vpack.c.b16 %v1840, %v1836
    %v2237 = vpack.c.b16 %v1845, %v1841
    %v2238 = vpack.c.b16 %v1846, %v1842
    %v2239 = vpack.c.b16 %v1847, %v1843
    %v2240 = vpack.c.b16 %v1848, %v1844
    %v2241 = vpack.c.b16 %v1853, %v1849
    %v2242 = vpack.c.b16 %v1854, %v1850
    %v2243 = vpack.c.b16 %v1855, %v1851
    %v2244 = vpack.c.b16 %v1856, %v1852
    %v2245 = vpack.c.b16 %v1861, %v1857
    %v2246 = vpack.c.b16 %v1862, %v1858
    %v2247 = vpack.c.b16 %v1863, %v1859
    %v2248 = vpack.c.b16 %v1864, %v1860
    %v2249 = vpack.c.b16 %v1869, %v1865
    %v2250 = vpack.c.b16 %v1870, %v1866
    %v2251 = vpack.c.b16 %v1871, %v1867
    %v2252 = vpack.c.b16 %v1872, %v1868
    %v2253 = vpack.c.b16 %v1877, %v1873
    %v2254 = vpack.c.b16 %v1878, %v1874
    %v2255 = vpack.c.b16 %v1879, %v1875
    %v2256 = vpack.c.b16 %v1880, %v1876
    %v2257 = vpack.c.b16 %v1885, %v1881
    %v2258 = vpack.c.b16 %v1886, %v1882
    %v2259 = vpack.c.b16 %v1887, %v1883
    %v2260 = vpack.c.b16 %v1888, %v1884
    %v2261 = vpack.c.b16 %v1893, %v1889
    %v2262 = vpack.c.b16 %v1894, %v1890
    %v2263 = vpack.c.b16 %v1895, %v1891
    %v2264 = vpack.c.b16 %v1896, %v1892
    %v2265 = vpack.c.b16 %v1901, %v1897
    %v2266 = vpack.c.b16 %v1902, %v1898
    %v2267 = vpack.c.b16 %v1903, %v1899
    %v2268 = vpack.c.b16 %v1904, %v1900
    %v2269 = vpack.c.b16 %v1909, %v1905
    %v2270 = vpack.c.b16 %v1910, %v1906
    %v2271 = vpack.c.b16 %v1911, %v1907
    %v2272 = vpack.c.b16 %v1912, %v1908
    %v2273 = vpack.c.b16 %v1917, %v1913
    %v2274 = vpack.c.b16 %v1918, %v1914
    %v2275 = vpack.c.b16 %v1919, %v1915
    %v2276 = vpack.c.b16 %v1920, %v1916
    %v2277 = vpack.c.b16 %v1925, %v1921
    %v2278 = vpack.c.b16 %v1926, %v1922
    %v2279 = vpack.c.b16 %v1927, %v1923
    %v2280 = vpack.c.b16 %v1928, %v1924
    %v2281 = vpack.c.b16 %v1933, %v1929
    %v2282 = vpack.c.b16 %v1934, %v1930
    %v2283 = vpack.c.b16 %v1935, %v1931
    %v2284 = vpack.c.b16 %v1936, %v1932
    %v2285 = vpack.c.b16 %v1941, %v1937
    %v2286 = vpack.c.b16 %v1942, %v1938
    %v2287 = vpack.c.b16 %v1943, %v1939
    %v2288 = vpack.c.b16 %v1944, %v1940
    %v2289 = vpack.c.b16 %v1949, %v1945
    %v2290 = vpack.c.b16 %v1950, %v1946
    %v2291 = vpack.c.b16 %v1951, %v1947
    %v2292 = vpack.c.b16 %v1952, %v1948
    %v2293 = vpack.c.b16 %v1957, %v1953
    %v2294 = vpack.c.b16 %v1958, %v1954
    %v2295 = vpack.c.b16 %v1959, %v1955
    %v2296 = vpack.c.b16 %v1960, %v1956
    %v2297 = vpack.c.b16 %v1965, %v1961
    %v2298 = vpack.c.b16 %v1966, %v1962
    %v2299 = vpack.c.b16 %v1967, %v1963
    %v2300 = vpack.c.b16 %v1968, %v1964
    %v2301 = vpack.c.b16 %v1973, %v1969
    %v2302 = vpack.c.b16 %v1974, %v1970
    %v2303 = vpack.c.b16 %v1975, %v1971
    %v2304 = vpack.c.b16 %v1976, %v1972
    %v2305 = vpack.c.b16 %v1981, %v1977
    %v2306 = vpack.c.b16 %v1982, %v1978
    %v2307 = vpack.c.b16 %v1983, %v1979
    %v2308 = vpack.c.b16 %v1984, %v1980
    %v2309 = vpack.c.b16 %v1989, %v1985
    %v2310 = vpack.c.b16 %v1990, %v1986
    %v2311 = vpack.c.b16 %v1991, %v1987
    %v2312 = vpack.c.b16 %v1992, %v1988
    %v2313 = vpack.c.b16 %v1997, %v1993
    %v2314 = vpack.c.b16 %v1998, %v1994
    %v2315 = vpack.c.b16 %v1999, %v1995
    %v2316 = vpack.c.b16 %v2000, %v1996
    %v2317 = vpack.c.b16 %v2005, %v2001
    %v2318 = vpack.c.b16 %v2006, %v2002
    %v2319 = vpack.c.b16 %v2007, %v2003
    %v2320 = vpack.c.b16 %v2008, %v2004
    %v2321 = vpack.c.b16 %v2013, %v2009
    %v2322 = vpack.c.b16 %v2014, %v2010
    %v2323 = vpack.c.b16 %v2015, %v2011
    %v2324 = vpack.c.b16 %v2016, %v2012
    %v2325 = vpack.c.b16 %v2021, %v2017
    %v2326 = vpack.c.b16 %v2022, %v2018
    %v2327 = vpack.c.b16 %v2023, %v2019
    %v2328 = vpack.c.b16 %v2024, %v2020
    %v2329 = vpack.c.b16 %v2029, %v2025
    %v2330 = vpack.c.b16 %v2030, %v2026
    %v2331 = vpack.c.b16 %v2031, %v2027
    %v2332 = vpack.c.b16 %v2032, %v2028
    %v2333 = vpack.c.b16 %v2037, %v2033
    %v2334 = vpack.c.b16 %v2038, %v2034
    %v2335 = vpack.c.b16 %v2039, %v2035
    %v2336 = vpack.c.b16 %v2040, %v2036
    %v2337 = vpack.c.b16 %v2045, %v2041
    %v2338 = vpack.c.b16 %v2046, %v2042
    %v2339 = vpack.c.b16 %v2047, %v2043
    %v2340 = vpack.c.b16 %v2048, %v2044
    %v2341 = vpack.c.b16 %v2053, %v2049
    %v2342 = vpack.c.b16 %v2054, %v2050
    %v2343 = vpack.c.b16 %v2055, %v2051
    %v2344 = vpack.c.b16 %v2056, %v2052
    %v2345 = vpack.c.b16 %v2061, %v2057
    %v2346 = vpack.c.b16 %v2062, %v2058
    %v2347 = vpack.c.b16 %v2063, %v2059
    %v2348 = vpack.c.b16 %v2064, %v2060
    %v2349 = vpack.c.b16 %v2069, %v2065
    %v2350 = vpack.c.b16 %v2070, %v2066
    %v2351 = vpack.c.b16 %v2071, %v2067
    %v2352 = vpack.c.b16 %v2072, %v2068
    %v2353 = vpack.c.b16 %v2077, %v2073
    %v2354 = vpack.c.b16 %v2078, %v2074
    %v2355 = vpack.c.b16 %v2079, %v2075
    %v2356 = vpack.c.b16 %v2080, %v2076
    %v2357 = vpack.c.b16 %v2085, %v2081
    %v2358 = vpack.c.b16 %v2086, %v2082
    %v2359 = vpack.c.b16 %v2087, %v2083
    %v2360 = vpack.c.b16 %v2088, %v2084
    %v2361 = vpack.c.b16 %v2093, %v2089
    %v2362 = vpack.c.b16 %v2094, %v2090
    %v2363 = vpack.c.b16 %v2095, %v2091
    %v2364 = vpack.c.b16 %v2096, %v2092
    %v2365 = vpack.c.b16 %v2101, %v2097
    %v2366 = vpack.c.b16 %v2102, %v2098
    %v2367 = vpack.c.b16 %v2103, %v2099
    %v2368 = vpack.c.b16 %v2104, %v2100
    %v2369 = vpack.c.b16 %v2109, %v2105
    %v2370 = vpack.c.b16 %v2110, %v2106
    %v2371 = vpack.c.b16 %v2111, %v2107
    %v2372 = vpack.c.b16 %v2112, %v2108
    %v2373 = vpack.c.b16 %v2117, %v2113
    %v2374 = vpack.c.b16 %v2118, %v2114
    %v2375 = vpack.c.b16 %v2119, %v2115
    %v2376 = vpack.c.b16 %v2120, %v2116
    %2633 = vmatprep.subr.bf16.mxu0 %v2122
    %2634 = vmatpush1.bf16.msra.mxu0 %v2121
    %2635 = vmatprep.subr.bf16.mxu0 %v2126
    %2636 = vmatpush1.bf16.msra.mxu0 %v2125
    %2637 = vmatprep.subr.bf16.mxu0 %v2130
    %2638 = vmatpush1.bf16.msra.mxu0 %v2129
    %2639 = vmatprep.subr.bf16.mxu0 %v2134
    %2640 = vmatpush1.bf16.msra.mxu0 %v2133
    %2641 = vmatprep.subr.bf16.mxu0 %v2138
    %2642 = vmatpush1.bf16.msra.mxu0 %v2137
    %2643 = vmatprep.subr.bf16.mxu0 %v2142
    %2644 = vmatpush1.bf16.msra.mxu0 %v2141
    %2645 = vmatprep.subr.bf16.mxu0 %v2146
    %2646 = vmatpush1.bf16.msra.mxu0 %v2145
    %2647 = vmatprep.subr.bf16.mxu0 %v2150
    %2648 = vmatpush1.bf16.msra.mxu0 %v2149
    %2649 = vmatprep.subr.bf16.mxu0 %v2154
    %2650 = vmatpush1.bf16.msra.mxu0 %v2153
    %2651 = vmatprep.subr.bf16.mxu0 %v2158
    %2652 = vmatpush1.bf16.msra.mxu0 %v2157
    %2653 = vmatprep.subr.bf16.mxu0 %v2162
    %2654 = vmatpush1.bf16.msra.mxu0 %v2161
    %2655 = vmatprep.subr.bf16.mxu0 %v2166
    %2656 = vmatpush1.bf16.msra.mxu0 %v2165
    %2657 = vmatprep.subr.bf16.mxu0 %v2170
    %2658 = vmatpush1.bf16.msra.mxu0 %v2169
    %2659 = vmatprep.subr.bf16.mxu0 %v2174
    %2660 = vmatpush1.bf16.msra.mxu0 %v2173
    %2661 = vmatprep.subr.bf16.mxu0 %v2178
    %2662 = vmatpush1.bf16.msra.mxu0 %v2177
    %2663 = vmatprep.subr.bf16.mxu0 %v2182
    %2664 = vmatpush1.bf16.msra.mxu0 %v2181
    %2665 = vmatprep.mubr.bf16.mxu0 %v1068
    %2666 = vmatmul.mubr.bf16.gmra.mrb[0].mxu0 %v1067
    %v2667 = vpop.f32.mrb[0].mxu0
    %v2668 = vadd.f32 %v1336, %v2667
    %v2669 = vpop.f32.mrb[0].mxu0
    %v2670 = vadd.f32 %v1340, %v2669
    %v2671 = vpop.f32.mrb[0].mxu0
    %v2672 = vpop.f32.mrb[0].mxu0
    %2673 = vdwg.mxu0
    %2674 = vmatprep.subr.bf16.mxu0 %v2186
    %2675 = vmatpush1.bf16.msra.mxu0 %v2185
    %2676 = vmatprep.subr.bf16.mxu0 %v2190
    %2677 = vmatpush1.bf16.msra.mxu0 %v2189
    %2678 = vmatprep.subr.bf16.mxu0 %v2194
    %2679 = vmatpush1.bf16.msra.mxu0 %v2193
    %2680 = vmatprep.subr.bf16.mxu0 %v2198
    %2681 = vmatpush1.bf16.msra.mxu0 %v2197
    %2682 = vmatprep.subr.bf16.mxu0 %v2202
    %2683 = vmatpush1.bf16.msra.mxu0 %v2201
    %2684 = vmatprep.subr.bf16.mxu0 %v2206
    %2685 = vmatpush1.bf16.msra.mxu0 %v2205
    %2686 = vmatprep.subr.bf16.mxu0 %v2210
    %2687 = vmatpush1.bf16.msra.mxu0 %v2209
    %2688 = vmatprep.subr.bf16.mxu0 %v2214
    %2689 = vmatpush1.bf16.msra.mxu0 %v2213
    %2690 = vmatprep.subr.bf16.mxu0 %v2218
    %2691 = vmatpush1.bf16.msra.mxu0 %v2217
    %2692 = vmatprep.subr.bf16.mxu0 %v2222
    %2693 = vmatpush1.bf16.msra.mxu0 %v2221
    %2694 = vmatprep.subr.bf16.mxu0 %v2226
    %2695 = vmatpush1.bf16.msra.mxu0 %v2225
    %2696 = vmatprep.subr.bf16.mxu0 %v2230
    %2697 = vmatpush1.bf16.msra.mxu0 %v2229
    %2698 = vmatprep.subr.bf16.mxu0 %v2234
    %2699 = vmatpush1.bf16.msra.mxu0 %v2233
    %2700 = vmatprep.subr.bf16.mxu0 %v2238
    %2701 = vmatpush1.bf16.msra.mxu0 %v2237
    %2702 = vmatprep.subr.bf16.mxu0 %v2242
    %2703 = vmatpush1.bf16.msra.mxu0 %v2241
    %2704 = vmatprep.subr.bf16.mxu0 %v2246
    %2705 = vmatpush1.bf16.msra.mxu0 %v2245
    %2706 = vmatprep.mubr.bf16.mxu0 %v1070
    %2707 = vmatmul.mubr.bf16.gmra.mrb[0].mxu0 %v1069
    %v2708 = vpop.f32.mrb[0].mxu0
    %v2709 = vadd.f32 %v2668, %v2708
    %v2710 = vpop.f32.mrb[0].mxu0
    %v2711 = vadd.f32 %v2670, %v2710
    %v2712 = vpop.f32.mrb[0].mxu0
    %v2713 = vpop.f32.mrb[0].mxu0
    %2714 = vdwg.mxu0
    %2715 = vmatprep.subr.bf16.mxu0 %v2250
    %2716 = vmatpush1.bf16.msra.mxu0 %v2249
    %2717 = vmatprep.subr.bf16.mxu0 %v2254
    %2718 = vmatpush1.bf16.msra.mxu0 %v2253
    %2719 = vmatprep.subr.bf16.mxu0 %v2258
    %2720 = vmatpush1.bf16.msra.mxu0 %v2257
    %2721 = vmatprep.subr.bf16.mxu0 %v2262
    %2722 = vmatpush1.bf16.msra.mxu0 %v2261
    %2723 = vmatprep.subr.bf16.mxu0 %v2266
    %2724 = vmatpush1.bf16.msra.mxu0 %v2265
    %2725 = vmatprep.subr.bf16.mxu0 %v2270
    %2726 = vmatpush1.bf16.msra.mxu0 %v2269
    %2727 = vmatprep.subr.bf16.mxu0 %v2274
    %2728 = vmatpush1.bf16.msra.mxu0 %v2273
    %2729 = vmatprep.subr.bf16.mxu0 %v2278
    %2730 = vmatpush1.bf16.msra.mxu0 %v2277
    %2731 = vmatprep.subr.bf16.mxu0 %v2282
    %2732 = vmatpush1.bf16.msra.mxu0 %v2281
    %2733 = vmatprep.subr.bf16.mxu0 %v2286
    %2734 = vmatpush1.bf16.msra.mxu0 %v2285
    %2735 = vmatprep.subr.bf16.mxu0 %v2290
    %2736 = vmatpush1.bf16.msra.mxu0 %v2289
    %2737 = vmatprep.subr.bf16.mxu0 %v2294
    %2738 = vmatpush1.bf16.msra.mxu0 %v2293
    %2739 = vmatprep.subr.bf16.mxu0 %v2298
    %2740 = vmatpush1.bf16.msra.mxu0 %v2297
    %2741 = vmatprep.subr.bf16.mxu0 %v2302
    %2742 = vmatpush1.bf16.msra.mxu0 %v2301
    %2743 = vmatprep.subr.bf16.mxu0 %v2306
    %2744 = vmatpush1.bf16.msra.mxu0 %v2305
    %2745 = vmatprep.subr.bf16.mxu0 %v2310
    %2746 = vmatpush1.bf16.msra.mxu0 %v2309
    %2747 = vmatprep.mubr.bf16.mxu0 %v1072
    %2748 = vmatmul.mubr.bf16.gmra.mrb[0].mxu0 %v1071
    %v2749 = vpop.f32.mrb[0].mxu0
    %v2750 = vadd.f32 %v2709, %v2749
    %v2751 = vpop.f32.mrb[0].mxu0
    %v2752 = vadd.f32 %v2711, %v2751
    %v2753 = vpop.f32.mrb[0].mxu0
    %v2754 = vpop.f32.mrb[0].mxu0
    %2755 = vdwg.mxu0
    %2756 = vmatprep.subr.bf16.mxu0 %v2314
    %2757 = vmatpush1.bf16.msra.mxu0 %v2313
    %2758 = vmatprep.subr.bf16.mxu0 %v2318
    %2759 = vmatpush1.bf16.msra.mxu0 %v2317
    %2760 = vmatprep.subr.bf16.mxu0 %v2322
    %2761 = vmatpush1.bf16.msra.mxu0 %v2321
    %2762 = vmatprep.subr.bf16.mxu0 %v2326
    %2763 = vmatpush1.bf16.msra.mxu0 %v2325
    %2764 = vmatprep.subr.bf16.mxu0 %v2330
    %2765 = vmatpush1.bf16.msra.mxu0 %v2329
    %2766 = vmatprep.subr.bf16.mxu0 %v2334
    %2767 = vmatpush1.bf16.msra.mxu0 %v2333
    %2768 = vmatprep.subr.bf16.mxu0 %v2338
    %2769 = vmatpush1.bf16.msra.mxu0 %v2337
    %2770 = vmatprep.subr.bf16.mxu0 %v2342
    %2771 = vmatpush1.bf16.msra.mxu0 %v2341
    %2772 = vmatprep.subr.bf16.mxu0 %v2346
    %2773 = vmatpush1.bf16.msra.mxu0 %v2345
    %2774 = vmatprep.subr.bf16.mxu0 %v2350
    %2775 = vmatpush1.bf16.msra.mxu0 %v2349
    %2776 = vmatprep.subr.bf16.mxu0 %v2354
    %2777 = vmatpush1.bf16.msra.mxu0 %v2353
    %2778 = vmatprep.subr.bf16.mxu0 %v2358
    %2779 = vmatpush1.bf16.msra.mxu0 %v2357
    %2780 = vmatprep.subr.bf16.mxu0 %v2362
    %2781 = vmatpush1.bf16.msra.mxu0 %v2361
    %2782 = vmatprep.subr.bf16.mxu0 %v2366
    %2783 = vmatpush1.bf16.msra.mxu0 %v2365
    %2784 = vmatprep.subr.bf16.mxu0 %v2370
    %2785 = vmatpush1.bf16.msra.mxu0 %v2369
    %2786 = vmatprep.subr.bf16.mxu0 %v2374
    %2787 = vmatpush1.bf16.msra.mxu0 %v2373
    %2788 = vmatprep.mubr.bf16.mxu0 %v1074
    %2789 = vmatmul.mubr.bf16.gmra.mrb[0].mxu0 %v1073
    %v2790 = vpop.f32.mrb[0].mxu0
    %v2791 = vadd.f32 %v2750, %v2790
    %v2792 = vpop.f32.mrb[0].mxu0
    %v2793 = vadd.f32 %v2752, %v2792
    %v2794 = vpop.f32.mrb[0].mxu0
    %v2795 = vpop.f32.mrb[0].mxu0
    %2796 = vdwg.mxu0
    %2797 = vmatprep.subr.bf16.mxu0 %v2124
    %2798 = vmatpush1.bf16.msra.mxu0 %v2123
    %2799 = vmatprep.subr.bf16.mxu0 %v2128
    %2800 = vmatpush1.bf16.msra.mxu0 %v2127
    %2801 = vmatprep.subr.bf16.mxu0 %v2132
    %2802 = vmatpush1.bf16.msra.mxu0 %v2131
    %2803 = vmatprep.subr.bf16.mxu0 %v2136
    %2804 = vmatpush1.bf16.msra.mxu0 %v2135
    %2805 = vmatprep.subr.bf16.mxu0 %v2140
    %2806 = vmatpush1.bf16.msra.mxu0 %v2139
    %2807 = vmatprep.subr.bf16.mxu0 %v2144
    %2808 = vmatpush1.bf16.msra.mxu0 %v2143
    %2809 = vmatprep.subr.bf16.mxu0 %v2148
    %2810 = vmatpush1.bf16.msra.mxu0 %v2147
    %2811 = vmatprep.subr.bf16.mxu0 %v2152
    %2812 = vmatpush1.bf16.msra.mxu0 %v2151
    %2813 = vmatprep.subr.bf16.mxu0 %v2156
    %2814 = vmatpush1.bf16.msra.mxu0 %v2155
    %2815 = vmatprep.subr.bf16.mxu0 %v2160
    %2816 = vmatpush1.bf16.msra.mxu0 %v2159
    %2817 = vmatprep.subr.bf16.mxu0 %v2164
    %2818 = vmatpush1.bf16.msra.mxu0 %v2163
    %2819 = vmatprep.subr.bf16.mxu0 %v2168
    %2820 = vmatpush1.bf16.msra.mxu0 %v2167
    %2821 = vmatprep.subr.bf16.mxu0 %v2172
    %2822 = vmatpush1.bf16.msra.mxu0 %v2171
    %2823 = vmatprep.subr.bf16.mxu0 %v2176
    %2824 = vmatpush1.bf16.msra.mxu0 %v2175
    %2825 = vmatprep.subr.bf16.mxu0 %v2180
    %2826 = vmatpush1.bf16.msra.mxu0 %v2179
    %2827 = vmatprep.subr.bf16.mxu0 %v2184
    %2828 = vmatpush1.bf16.msra.mxu0 %v2183
    %2829 = vmatprep.mubr.bf16.mxu0 %v1068
    %2830 = vmatmul.mubr.bf16.gmra.mrb[0].mxu0 %v1067
    %v2831 = vpop.f32.mrb[0].mxu0
    %v2832 = vadd.f32 %v1344, %v2831
    %v2833 = vpop.f32.mrb[0].mxu0
    %v2834 = vadd.f32 %v1348, %v2833
    %v2835 = vpop.f32.mrb[0].mxu0
    %v2836 = vpop.f32.mrb[0].mxu0
    %2837 = vdwg.mxu0
    %2838 = vmatprep.subr.bf16.mxu0 %v2188
    %2839 = vmatpush1.bf16.msra.mxu0 %v2187
    %2840 = vmatprep.subr.bf16.mxu0 %v2192
    %2841 = vmatpush1.bf16.msra.mxu0 %v2191
    %2842 = vmatprep.subr.bf16.mxu0 %v2196
    %2843 = vmatpush1.bf16.msra.mxu0 %v2195
    %2844 = vmatprep.subr.bf16.mxu0 %v2200
    %2845 = vmatpush1.bf16.msra.mxu0 %v2199
    %2846 = vmatprep.subr.bf16.mxu0 %v2204
    %2847 = vmatpush1.bf16.msra.mxu0 %v2203
    %2848 = vmatprep.subr.bf16.mxu0 %v2208
    %2849 = vmatpush1.bf16.msra.mxu0 %v2207
    %2850 = vmatprep.subr.bf16.mxu0 %v2212
    %2851 = vmatpush1.bf16.msra.mxu0 %v2211
    %2852 = vmatprep.subr.bf16.mxu0 %v2216
    %2853 = vmatpush1.bf16.msra.mxu0 %v2215
    %2854 = vmatprep.subr.bf16.mxu0 %v2220
    %2855 = vmatpush1.bf16.msra.mxu0 %v2219
    %2856 = vmatprep.subr.bf16.mxu0 %v2224
    %2857 = vmatpush1.bf16.msra.mxu0 %v2223
    %2858 = vmatprep.subr.bf16.mxu0 %v2228
    %2859 = vmatpush1.bf16.msra.mxu0 %v2227
    %2860 = vmatprep.subr.bf16.mxu0 %v2232
    %2861 = vmatpush1.bf16.msra.mxu0 %v2231
    %2862 = vmatprep.subr.bf16.mxu0 %v2236
    %2863 = vmatpush1.bf16.msra.mxu0 %v2235
    %2864 = vmatprep.subr.bf16.mxu0 %v2240
    %2865 = vmatpush1.bf16.msra.mxu0 %v2239
    %2866 = vmatprep.subr.bf16.mxu0 %v2244
    %2867 = vmatpush1.bf16.msra.mxu0 %v2243
    %2868 = vmatprep.subr.bf16.mxu0 %v2248
    %2869 = vmatpush1.bf16.msra.mxu0 %v2247
    %2870 = vmatprep.mubr.bf16.mxu0 %v1070
    %2871 = vmatmul.mubr.bf16.gmra.mrb[0].mxu0 %v1069
    %v2872 = vpop.f32.mrb[0].mxu0
    %v2873 = vadd.f32 %v2832, %v2872
    %v2874 = vpop.f32.mrb[0].mxu0
    %v2875 = vadd.f32 %v2834, %v2874
    %v2876 = vpop.f32.mrb[0].mxu0
    %v2877 = vpop.f32.mrb[0].mxu0
    %2878 = vdwg.mxu0
    %2879 = vmatprep.subr.bf16.mxu0 %v2252
    %2880 = vmatpush1.bf16.msra.mxu0 %v2251
    %2881 = vmatprep.subr.bf16.mxu0 %v2256
    %2882 = vmatpush1.bf16.msra.mxu0 %v2255
    %2883 = vmatprep.subr.bf16.mxu0 %v2260
    %2884 = vmatpush1.bf16.msra.mxu0 %v2259
    %2885 = vmatprep.subr.bf16.mxu0 %v2264
    %2886 = vmatpush1.bf16.msra.mxu0 %v2263
    %2887 = vmatprep.subr.bf16.mxu0 %v2268
    %2888 = vmatpush1.bf16.msra.mxu0 %v2267
    %2889 = vmatprep.subr.bf16.mxu0 %v2272
    %2890 = vmatpush1.bf16.msra.mxu0 %v2271
    %2891 = vmatprep.subr.bf16.mxu0 %v2276
    %2892 = vmatpush1.bf16.msra.mxu0 %v2275
    %2893 = vmatprep.subr.bf16.mxu0 %v2280
    %2894 = vmatpush1.bf16.msra.mxu0 %v2279
    %2895 = vmatprep.subr.bf16.mxu0 %v2284
    %2896 = vmatpush1.bf16.msra.mxu0 %v2283
    %2897 = vmatprep.subr.bf16.mxu0 %v2288
    %2898 = vmatpush1.bf16.msra.mxu0 %v2287
    %2899 = vmatprep.subr.bf16.mxu0 %v2292
    %2900 = vmatpush1.bf16.msra.mxu0 %v2291
    %2901 = vmatprep.subr.bf16.mxu0 %v2296
    %2902 = vmatpush1.bf16.msra.mxu0 %v2295
    %2903 = vmatprep.subr.bf16.mxu0 %v2300
    %2904 = vmatpush1.bf16.msra.mxu0 %v2299
    %2905 = vmatprep.subr.bf16.mxu0 %v2304
    %2906 = vmatpush1.bf16.msra.mxu0 %v2303
    %2907 = vmatprep.subr.bf16.mxu0 %v2308
    %2908 = vmatpush1.bf16.msra.mxu0 %v2307
    %2909 = vmatprep.subr.bf16.mxu0 %v2312
    %2910 = vmatpush1.bf16.msra.mxu0 %v2311
    %2911 = vmatprep.mubr.bf16.mxu0 %v1072
    %2912 = vmatmul.mubr.bf16.gmra.mrb[0].mxu0 %v1071
    %v2913 = vpop.f32.mrb[0].mxu0
    %v2914 = vadd.f32 %v2873, %v2913
    %v2915 = vpop.f32.mrb[0].mxu0
    %v2916 = vadd.f32 %v2875, %v2915
    %v2917 = vpop.f32.mrb[0].mxu0
    %v2918 = vpop.f32.mrb[0].mxu0
    %2919 = vdwg.mxu0
    %2920 = vmatprep.subr.bf16.mxu0 %v2316
    %2921 = vmatpush1.bf16.msra.mxu0 %v2315
    %2922 = vmatprep.subr.bf16.mxu0 %v2320
    %2923 = vmatpush1.bf16.msra.mxu0 %v2319
    %2924 = vmatprep.subr.bf16.mxu0 %v2324
    %2925 = vmatpush1.bf16.msra.mxu0 %v2323
    %2926 = vmatprep.subr.bf16.mxu0 %v2328
    %2927 = vmatpush1.bf16.msra.mxu0 %v2327
    %2928 = vmatprep.subr.bf16.mxu0 %v2332
    %2929 = vmatpush1.bf16.msra.mxu0 %v2331
    %2930 = vmatprep.subr.bf16.mxu0 %v2336
    %2931 = vmatpush1.bf16.msra.mxu0 %v2335
    %2932 = vmatprep.subr.bf16.mxu0 %v2340
    %2933 = vmatpush1.bf16.msra.mxu0 %v2339
    %2934 = vmatprep.subr.bf16.mxu0 %v2344
    %2935 = vmatpush1.bf16.msra.mxu0 %v2343
    %2936 = vmatprep.subr.bf16.mxu0 %v2348
    %2937 = vmatpush1.bf16.msra.mxu0 %v2347
    %2938 = vmatprep.subr.bf16.mxu0 %v2352
    %2939 = vmatpush1.bf16.msra.mxu0 %v2351
    %2940 = vmatprep.subr.bf16.mxu0 %v2356
    %2941 = vmatpush1.bf16.msra.mxu0 %v2355
    %2942 = vmatprep.subr.bf16.mxu0 %v2360
    %2943 = vmatpush1.bf16.msra.mxu0 %v2359
    %2944 = vmatprep.subr.bf16.mxu0 %v2364
    %2945 = vmatpush1.bf16.msra.mxu0 %v2363
    %2946 = vmatprep.subr.bf16.mxu0 %v2368
    %2947 = vmatpush1.bf16.msra.mxu0 %v2367
    %2948 = vmatprep.subr.bf16.mxu0 %v2372
    %2949 = vmatpush1.bf16.msra.mxu0 %v2371
    %2950 = vmatprep.subr.bf16.mxu0 %v2376
    %2951 = vmatpush1.bf16.msra.mxu0 %v2375
    %2952 = vmatprep.mubr.bf16.mxu0 %v1074
    %2953 = vmatmul.mubr.bf16.gmra.mrb[0].mxu0 %v1073
    %v2954 = vpop.f32.mrb[0].mxu0
    %v2955 = vadd.f32 %v2914, %v2954
    %v2956 = vpop.f32.mrb[0].mxu0
    %v2957 = vadd.f32 %v2916, %v2956
    %v2958 = vpop.f32.mrb[0].mxu0
    %v2959 = vpop.f32.mrb[0].mxu0
    %2960 = vdwg.mxu0
    %v2961 = vmax.f32 %v2791, 0.0
    %v2962 = vmax.f32 %v2793, 0.0
    %v2963 = vmax.f32 %v2955, 0.0
    %v2964 = vmax.f32 %v2957, 0.0
    %v2965 = vpack.c.bf16 %v2961, %v2961
    %v2966 = vpack.c.bf16 %v2962, %v2962
    %v2967 = vpack.c.bf16 %v2963, %v2963
    %v2968 = vpack.c.bf16 %v2964, %v2964
    %v2969 = vld [vmem:[%s8] sm:$0xf]
    %v2970 = vld [vmem:[%s8 + $0x4] sm:$0xf]
    %v2971 = vld [vmem:[%s8 + $0x8] sm:$0xf]
    %v2972 = vld [vmem:[%s8 + $0xc] sm:$0xf]
    %v2973 = vld [vmem:[%s8 + $0x10] sm:$0xf]
    %v2974 = vld [vmem:[%s8 + $0x14] sm:$0xf]
    %v2975 = vld [vmem:[%s8 + $0x18] sm:$0xf]
    %v2976 = vld [vmem:[%s8 + $0x1c] sm:$0xf]
    %v2977 = vld [vmem:[%s8 + $0x20] sm:$0xf]
    %v2978 = vld [vmem:[%s8 + $0x24] sm:$0xf]
    %v2979 = vld [vmem:[%s8 + $0x28] sm:$0xf]
    %v2980 = vld [vmem:[%s8 + $0x2c] sm:$0xf]
    %v2981 = vld [vmem:[%s8 + $0x30] sm:$0xf]
    %v2982 = vld [vmem:[%s8 + $0x34] sm:$0xf]
    %v2983 = vld [vmem:[%s8 + $0x38] sm:$0xf]
    %v2984 = vld [vmem:[%s8 + $0x3c] sm:$0xf]
    %v2985 = vld [vmem:[%s8 + $0x40] sm:$0xf]
    %v2986 = vld [vmem:[%s8 + $0x44] sm:$0xf]
    %v2987 = vld [vmem:[%s8 + $0x48] sm:$0xf]
    %v2988 = vld [vmem:[%s8 + $0x4c] sm:$0xf]
    %v2989 = vld [vmem:[%s8 + $0x50] sm:$0xf]
    %v2990 = vld [vmem:[%s8 + $0x54] sm:$0xf]
    %v2991 = vld [vmem:[%s8 + $0x58] sm:$0xf]
    %v2992 = vld [vmem:[%s8 + $0x5c] sm:$0xf]
    %v2993 = vld [vmem:[%s8 + $0x60] sm:$0xf]
    %v2994 = vld [vmem:[%s8 + $0x64] sm:$0xf]
    %v2995 = vld [vmem:[%s8 + $0x68] sm:$0xf]
    %v2996 = vld [vmem:[%s8 + $0x6c] sm:$0xf]
    %v2997 = vld [vmem:[%s8 + $0x70] sm:$0xf]
    %v2998 = vld [vmem:[%s8 + $0x74] sm:$0xf]
    %v2999 = vld [vmem:[%s8 + $0x78] sm:$0xf]
    %v3000 = vld [vmem:[%s8 + $0x7c] sm:$0xf]
    %v3001 = vld [vmem:[%s8 + $0x80] sm:$0xf]
    %v3002 = vld [vmem:[%s8 + $0x84] sm:$0xf]
    %v3003 = vld [vmem:[%s8 + $0x88] sm:$0xf]
    %v3004 = vld [vmem:[%s8 + $0x8c] sm:$0xf]
    %v3005 = vld [vmem:[%s8 + $0x90] sm:$0xf]
    %v3006 = vld [vmem:[%s8 + $0x94] sm:$0xf]
    %v3007 = vld [vmem:[%s8 + $0x98] sm:$0xf]
    %v3008 = vld [vmem:[%s8 + $0x9c] sm:$0xf]
    %v3009 = vld [vmem:[%s8 + $0xa0] sm:$0xf]
    %v3010 = vld [vmem:[%s8 + $0xa4] sm:$0xf]
    %v3011 = vld [vmem:[%s8 + $0xa8] sm:$0xf]
    %v3012 = vld [vmem:[%s8 + $0xac] sm:$0xf]
    %v3013 = vld [vmem:[%s8 + $0xb0] sm:$0xf]
    %v3014 = vld [vmem:[%s8 + $0xb4] sm:$0xf]
    %v3015 = vld [vmem:[%s8 + $0xb8] sm:$0xf]
    %v3016 = vld [vmem:[%s8 + $0xbc] sm:$0xf]
    %v3017 = vld [vmem:[%s8 + $0xc0] sm:$0xf]
    %v3018 = vld [vmem:[%s8 + $0xc4] sm:$0xf]
    %v3019 = vld [vmem:[%s8 + $0xc8] sm:$0xf]
    %v3020 = vld [vmem:[%s8 + $0xcc] sm:$0xf]
    %v3021 = vld [vmem:[%s8 + $0xd0] sm:$0xf]
    %v3022 = vld [vmem:[%s8 + $0xd4] sm:$0xf]
    %v3023 = vld [vmem:[%s8 + $0xd8] sm:$0xf]
    %v3024 = vld [vmem:[%s8 + $0xdc] sm:$0xf]
    %v3025 = vld [vmem:[%s8 + $0xe0] sm:$0xf]
    %v3026 = vld [vmem:[%s8 + $0xe4] sm:$0xf]
    %v3027 = vld [vmem:[%s8 + $0xe8] sm:$0xf]
    %v3028 = vld [vmem:[%s8 + $0xec] sm:$0xf]
    %v3029 = vld [vmem:[%s8 + $0xf0] sm:$0xf]
    %v3030 = vld [vmem:[%s8 + $0xf4] sm:$0xf]
    %v3031 = vld [vmem:[%s8 + $0xf8] sm:$0xf]
    %v3032 = vld [vmem:[%s8 + $0xfc] sm:$0xf]
    %v3033 = vld [vmem:[%s9] sm:$0x1]
    %v3035 = vlaneseq
    %v3036 = vshrl.u32 %v3035, 7
    %v3037 = vsub.s32 0, %v3036
    %v3038 = vrot.slane %v3033, %v3037
    %v3104 = vunpack.c.l.b16 %v2969
    %v3105 = vunpack.c.l.b16 %v2970
    %v3106 = vunpack.c.l.b16 %v2971
    %v3107 = vunpack.c.l.b16 %v2972
    %v3108 = vunpack.c.l.b16 %v2973
    %v3109 = vunpack.c.l.b16 %v2974
    %v3110 = vunpack.c.l.b16 %v2975
    %v3111 = vunpack.c.l.b16 %v2976
    %v3112 = vunpack.c.l.b16 %v2977
    %v3113 = vunpack.c.l.b16 %v2978
    %v3114 = vunpack.c.l.b16 %v2979
    %v3115 = vunpack.c.l.b16 %v2980
    %v3116 = vunpack.c.l.b16 %v2981
    %v3117 = vunpack.c.l.b16 %v2982
    %v3118 = vunpack.c.l.b16 %v2983
    %v3119 = vunpack.c.l.b16 %v2984
    %v3120 = vunpack.c.l.b16 %v2985
    %v3121 = vunpack.c.l.b16 %v2986
    %v3122 = vunpack.c.l.b16 %v2987
    %v3123 = vunpack.c.l.b16 %v2988
    %v3124 = vunpack.c.l.b16 %v2989
    %v3125 = vunpack.c.l.b16 %v2990
    %v3126 = vunpack.c.l.b16 %v2991
    %v3127 = vunpack.c.l.b16 %v2992
    %v3128 = vunpack.c.l.b16 %v2993
    %v3129 = vunpack.c.l.b16 %v2994
    %v3130 = vunpack.c.l.b16 %v2995
    %v3131 = vunpack.c.l.b16 %v2996
    %v3132 = vunpack.c.l.b16 %v2997
    %v3133 = vunpack.c.l.b16 %v2998
    %v3134 = vunpack.c.l.b16 %v2999
    %v3135 = vunpack.c.l.b16 %v3000
    %v3136 = vunpack.c.l.b16 %v3001
    %v3137 = vunpack.c.l.b16 %v3002
    %v3138 = vunpack.c.l.b16 %v3003
    %v3139 = vunpack.c.l.b16 %v3004
    %v3140 = vunpack.c.l.b16 %v3005
    %v3141 = vunpack.c.l.b16 %v3006
    %v3142 = vunpack.c.l.b16 %v3007
    %v3143 = vunpack.c.l.b16 %v3008
    %v3144 = vunpack.c.l.b16 %v3009
    %v3145 = vunpack.c.l.b16 %v3010
    %v3146 = vunpack.c.l.b16 %v3011
    %v3147 = vunpack.c.l.b16 %v3012
    %v3148 = vunpack.c.l.b16 %v3013
    %v3149 = vunpack.c.l.b16 %v3014
    %v3150 = vunpack.c.l.b16 %v3015
    %v3151 = vunpack.c.l.b16 %v3016
    %v3152 = vunpack.c.l.b16 %v3017
    %v3153 = vunpack.c.l.b16 %v3018
    %v3154 = vunpack.c.l.b16 %v3019
    %v3155 = vunpack.c.l.b16 %v3020
    %v3156 = vunpack.c.l.b16 %v3021
    %v3157 = vunpack.c.l.b16 %v3022
    %v3158 = vunpack.c.l.b16 %v3023
    %v3159 = vunpack.c.l.b16 %v3024
    %v3160 = vunpack.c.l.b16 %v3025
    %v3161 = vunpack.c.l.b16 %v3026
    %v3162 = vunpack.c.l.b16 %v3027
    %v3163 = vunpack.c.l.b16 %v3028
    %v3164 = vunpack.c.l.b16 %v3029
    %v3165 = vunpack.c.l.b16 %v3030
    %v3166 = vunpack.c.l.b16 %v3031
    %v3167 = vunpack.c.l.b16 %v3032
    %v3168 = vpack.c.b16 %v3105, %v3104
    %v3169 = vpack.c.b16 %v3107, %v3106
    %v3170 = vpack.c.b16 %v3109, %v3108
    %v3171 = vpack.c.b16 %v3111, %v3110
    %v3172 = vpack.c.b16 %v3113, %v3112
    %v3173 = vpack.c.b16 %v3115, %v3114
    %v3174 = vpack.c.b16 %v3117, %v3116
    %v3175 = vpack.c.b16 %v3119, %v3118
    %v3176 = vpack.c.b16 %v3121, %v3120
    %v3177 = vpack.c.b16 %v3123, %v3122
    %v3178 = vpack.c.b16 %v3125, %v3124
    %v3179 = vpack.c.b16 %v3127, %v3126
    %v3180 = vpack.c.b16 %v3129, %v3128
    %v3181 = vpack.c.b16 %v3131, %v3130
    %v3182 = vpack.c.b16 %v3133, %v3132
    %v3183 = vpack.c.b16 %v3135, %v3134
    %v3184 = vpack.c.b16 %v3137, %v3136
    %v3185 = vpack.c.b16 %v3139, %v3138
    %v3186 = vpack.c.b16 %v3141, %v3140
    %v3187 = vpack.c.b16 %v3143, %v3142
    %v3188 = vpack.c.b16 %v3145, %v3144
    %v3189 = vpack.c.b16 %v3147, %v3146
    %v3190 = vpack.c.b16 %v3149, %v3148
    %v3191 = vpack.c.b16 %v3151, %v3150
    %v3192 = vpack.c.b16 %v3153, %v3152
    %v3193 = vpack.c.b16 %v3155, %v3154
    %v3194 = vpack.c.b16 %v3157, %v3156
    %v3195 = vpack.c.b16 %v3159, %v3158
    %v3196 = vpack.c.b16 %v3161, %v3160
    %v3197 = vpack.c.b16 %v3163, %v3162
    %v3198 = vpack.c.b16 %v3165, %v3164
    %v3199 = vpack.c.b16 %v3167, %v3166
    %3232 = vmatprep.subr.bf16.mxu0 0
    %3233 = vmatpush1.bf16.msra.mxu0 %v3168
    %3234 = vmatprep.subr.bf16.mxu0 0
    %3235 = vmatpush1.bf16.msra.mxu0 %v3169
    %3236 = vmatprep.subr.bf16.mxu0 0
    %3237 = vmatpush1.bf16.msra.mxu0 %v3170
    %3238 = vmatprep.subr.bf16.mxu0 0
    %3239 = vmatpush1.bf16.msra.mxu0 %v3171
    %3240 = vmatprep.subr.bf16.mxu0 0
    %3241 = vmatpush1.bf16.msra.mxu0 %v3172
    %3242 = vmatprep.subr.bf16.mxu0 0
    %3243 = vmatpush1.bf16.msra.mxu0 %v3173
    %3244 = vmatprep.subr.bf16.mxu0 0
    %3245 = vmatpush1.bf16.msra.mxu0 %v3174
    %3246 = vmatprep.subr.bf16.mxu0 0
    %3247 = vmatpush1.bf16.msra.mxu0 %v3175
    %3248 = vmatprep.subr.bf16.mxu0 0
    %3249 = vmatpush1.bf16.msra.mxu0 %v3176
    %3250 = vmatprep.subr.bf16.mxu0 0
    %3251 = vmatpush1.bf16.msra.mxu0 %v3177
    %3252 = vmatprep.subr.bf16.mxu0 0
    %3253 = vmatpush1.bf16.msra.mxu0 %v3178
    %3254 = vmatprep.subr.bf16.mxu0 0
    %3255 = vmatpush1.bf16.msra.mxu0 %v3179
    %3256 = vmatprep.subr.bf16.mxu0 0
    %3257 = vmatpush1.bf16.msra.mxu0 %v3180
    %3258 = vmatprep.subr.bf16.mxu0 0
    %3259 = vmatpush1.bf16.msra.mxu0 %v3181
    %3260 = vmatprep.subr.bf16.mxu0 0
    %3261 = vmatpush1.bf16.msra.mxu0 %v3182
    %3262 = vmatprep.subr.bf16.mxu0 0
    %3263 = vmatpush1.bf16.msra.mxu0 %v3183
    %3264 = vmatprep.mubr.bf16.mxu0 %v2966
    %3265 = vmatmul.mubr.bf16.gmra.mrb[0].mxu0 %v2965
    %v3266 = vpop.f32.mrb[0].mxu0
    %v3267 = vadd.f32 %v3038, %v3266
    %v3268 = vpop.f32.mrb[0].mxu0
    %v3269 = vpop.f32.mrb[0].mxu0
    %v3270 = vpop.f32.mrb[0].mxu0
    %3271 = vdwg.mxu0
    %3272 = vmatprep.subr.bf16.mxu0 0
    %3273 = vmatpush1.bf16.msra.mxu0 %v3184
    %3274 = vmatprep.subr.bf16.mxu0 0
    %3275 = vmatpush1.bf16.msra.mxu0 %v3185
    %3276 = vmatprep.subr.bf16.mxu0 0
    %3277 = vmatpush1.bf16.msra.mxu0 %v3186
    %3278 = vmatprep.subr.bf16.mxu0 0
    %3279 = vmatpush1.bf16.msra.mxu0 %v3187
    %3280 = vmatprep.subr.bf16.mxu0 0
    %3281 = vmatpush1.bf16.msra.mxu0 %v3188
    %3282 = vmatprep.subr.bf16.mxu0 0
    %3283 = vmatpush1.bf16.msra.mxu0 %v3189
    %3284 = vmatprep.subr.bf16.mxu0 0
    %3285 = vmatpush1.bf16.msra.mxu0 %v3190
    %3286 = vmatprep.subr.bf16.mxu0 0
    %3287 = vmatpush1.bf16.msra.mxu0 %v3191
    %3288 = vmatprep.subr.bf16.mxu0 0
    %3289 = vmatpush1.bf16.msra.mxu0 %v3192
    %3290 = vmatprep.subr.bf16.mxu0 0
    %3291 = vmatpush1.bf16.msra.mxu0 %v3193
    %3292 = vmatprep.subr.bf16.mxu0 0
    %3293 = vmatpush1.bf16.msra.mxu0 %v3194
    %3294 = vmatprep.subr.bf16.mxu0 0
    %3295 = vmatpush1.bf16.msra.mxu0 %v3195
    %3296 = vmatprep.subr.bf16.mxu0 0
    %3297 = vmatpush1.bf16.msra.mxu0 %v3196
    %3298 = vmatprep.subr.bf16.mxu0 0
    %3299 = vmatpush1.bf16.msra.mxu0 %v3197
    %3300 = vmatprep.subr.bf16.mxu0 0
    %3301 = vmatpush1.bf16.msra.mxu0 %v3198
    %3302 = vmatprep.subr.bf16.mxu0 0
    %3303 = vmatpush1.bf16.msra.mxu0 %v3199
    %3304 = vmatprep.mubr.bf16.mxu0 %v2968
    %3305 = vmatmul.mubr.bf16.gmra.mrb[0].mxu0 %v2967
    %v3306 = vpop.f32.mrb[0].mxu0
    %v3307 = vadd.f32 %v3267, %v3306
    %v3308 = vpop.f32.mrb[0].mxu0
    %v3309 = vpop.f32.mrb[0].mxu0
    %v3310 = vpop.f32.mrb[0].mxu0
    %3311 = vdwg.mxu0
    %v3312 = vmax.f32 %v3307, 0.0
    %v3313 = vld [vmem:[%s10] sm:$0xff]
    %v3314 = vld [vmem:[%s10 + $0x8] sm:$0xff]
    %v3315 = vld [vmem:[%s10 + $0x10] sm:$0xff]
    %v3316 = vld [vmem:[%s10 + $0x18] sm:$0xff]
    %v3317 = vld [vmem:[%s10 + $0x20] sm:$0xff]
    %v3318 = vld [vmem:[%s10 + $0x28] sm:$0xff]
    %v3319 = vld [vmem:[%s10 + $0x30] sm:$0xff]
    %v3320 = vld [vmem:[%s10 + $0x38] sm:$0xff]
    %v3321 = vld [vmem:[%s10 + $0x40] sm:$0xff]
    %v3322 = vld [vmem:[%s10 + $0x48] sm:$0xff]
    %v3323 = vld [vmem:[%s10 + $0x50] sm:$0xff]
    %v3324 = vld [vmem:[%s10 + $0x58] sm:$0xff]
    %v3325 = vld [vmem:[%s10 + $0x60] sm:$0xff]
    %v3326 = vld [vmem:[%s10 + $0x68] sm:$0xff]
    %v3327 = vld [vmem:[%s10 + $0x70] sm:$0xff]
    %v3328 = vld [vmem:[%s10 + $0x78] sm:$0xff]
    %v3329 = vld [vmem:[%s11] sm:$0x1]
    %v3331 = vlaneseq
    %v3332 = vshrl.u32 %v3331, 7
    %v3333 = vsub.s32 0, %v3332
    %v3334 = vrot.slane %v3329, %v3333
    %3336 = vmatprep.subr.mxu0 0.0
    %3337 = vmatpush1.msra.mxu0 %v3313
    %3338 = vmatprep.subr.mxu0 0.0
    %3339 = vmatpush1.msra.mxu0 %v3314
    %3340 = vmatprep.subr.mxu0 0.0
    %3341 = vmatpush1.msra.mxu0 %v3315
    %3342 = vmatprep.subr.mxu0 0.0
    %3343 = vmatpush1.msra.mxu0 %v3316
    %3344 = vmatprep.subr.mxu0 0.0
    %3345 = vmatpush1.msra.mxu0 %v3317
    %3346 = vmatprep.subr.mxu0 0.0
    %3347 = vmatpush1.msra.mxu0 %v3318
    %3348 = vmatprep.subr.mxu0 0.0
    %3349 = vmatpush1.msra.mxu0 %v3319
    %3350 = vmatprep.subr.mxu0 0.0
    %3351 = vmatpush1.msra.mxu0 %v3320
    %3352 = vmatprep.subr.mxu0 0.0
    %3353 = vmatpush1.msra.mxu0 %v3321
    %3354 = vmatprep.subr.mxu0 0.0
    %3355 = vmatpush1.msra.mxu0 %v3322
    %3356 = vmatprep.subr.mxu0 0.0
    %3357 = vmatpush1.msra.mxu0 %v3323
    %3358 = vmatprep.subr.mxu0 0.0
    %3359 = vmatpush1.msra.mxu0 %v3324
    %3360 = vmatprep.subr.mxu0 0.0
    %3361 = vmatpush1.msra.mxu0 %v3325
    %3362 = vmatprep.subr.mxu0 0.0
    %3363 = vmatpush1.msra.mxu0 %v3326
    %3364 = vmatprep.subr.mxu0 0.0
    %3365 = vmatpush1.msra.mxu0 %v3327
    %3366 = vmatprep.subr.mxu0 0.0
    %3367 = vmatpush1.msra.mxu0 %v3328
    %3368 = vmatprep.subr.mxu0 0.0
    %3369 = vmatpush1.msra.mxu0 0.0
    %3370 = vmatprep.subr.mxu0 0.0
    %3371 = vmatpush1.msra.mxu0 0.0
    %3372 = vmatprep.subr.mxu0 0.0
    %3373 = vmatpush1.msra.mxu0 0.0
    %3374 = vmatprep.subr.mxu0 0.0
    %3375 = vmatpush1.msra.mxu0 0.0
    %3376 = vmatprep.subr.mxu0 0.0
    %3377 = vmatpush1.msra.mxu0 0.0
    %3378 = vmatprep.subr.mxu0 0.0
    %3379 = vmatpush1.msra.mxu0 0.0
    %3380 = vmatprep.subr.mxu0 0.0
    %3381 = vmatpush1.msra.mxu0 0.0
    %3382 = vmatprep.subr.mxu0 0.0
    %3383 = vmatpush1.msra.mxu0 0.0
    %3384 = vmatprep.subr.mxu0 0.0
    %3385 = vmatpush1.msra.mxu0 0.0
    %3386 = vmatprep.subr.mxu0 0.0
    %3387 = vmatpush1.msra.mxu0 0.0
    %3388 = vmatprep.subr.mxu0 0.0
    %3389 = vmatpush1.msra.mxu0 0.0
    %3390 = vmatprep.subr.mxu0 0.0
    %3391 = vmatpush1.msra.mxu0 0.0
    %3392 = vmatprep.subr.mxu0 0.0
    %3393 = vmatpush1.msra.mxu0 0.0
    %3394 = vmatprep.subr.mxu0 0.0
    %3395 = vmatpush1.msra.mxu0 0.0
    %3396 = vmatprep.subr.mxu0 0.0
    %3397 = vmatpush1.msra.mxu0 0.0
    %3398 = vmatprep.subr.mxu0 0.0
    %3399 = vmatpush1.msra.mxu0 0.0
    %3400 = vmatprep.mubr.f32.mxu0 0.0
    %3401 = vmatmul.mubr.f32.gmra.mrb[0].mxu0 %v3312
    %v3402 = vpop.f32.mrb[0].mxu0
    %v3403 = vadd.f32 %v3334, %v3402
    %v3404 = vpop.f32.mrb[0].mxu0
    %3405 = vdwg.mxu0
    %3407 = vset.pattern.permute.xlu0 0
    %3408 = vperm.xlu0 %3407, %v3403
    %v3409 = vpop.permute.xlu0 %3408
    %v3411 = vadd.f32 %v3409, %v3403
    %3412 = vrot.lane.b32.xlu0 %v3403, 127
    %v3413 = vpop.permute.xlu0 %3412
    %vm3415 = vcmask 41984
    %v3416 = vsel %vm3415, %v3413, 0.0
    %3417 = vadd.xlane.f32.xlu0 %v3416
    %v3418 = vpop.xlane.xlu0 %3417
    %v3419 = vrcp.pop 6.0
    %v3420 = vmul.f32 %v3418, %v3419
    %v3421 = vsub.f32 %v3411, %v3420
    %3423 = vrot.lane.b32.xlu0 %v3421, 127
    %v3424 = vpop.permute.xlu0 %3423
    %3426 = vst.msk [vmem:[#allocation9] sm:$0x3] %vm3415, %v3424
    // Predicated region
    $region54: #{net_forward.1} parent=1 // pred_check
      _
    $region55: #{net_forward.1} parent=1 // pred_check_branch
      %3428 = sbr.rel (0) target = $region57
    $region56: #{net_forward.1} parent=1 // pred_region
      %s3430 = ssub.s32 32, 32
      %3431 = vsyncadd [#allocation8], %s3430
      %s3433 = sshll.u32 [#allocation9], 4
      %s3434 = int_to_ptr.vmem [resolvable:$true] %s3433
      %3436 = dma.vmem_to_hbm [thread:$0]  %s3434, 32, %s12, [#allocation8]
    $region57: #{net_forward.1} parent=1 // pred_fallthru
      _
    // Predicated region
    $region58: #{net_forward.1} parent=1 // pred_check
      _
    $region59: #{net_forward.1} parent=1 // pred_check_branch
      %3438 = sbr.rel (0) target = $region61
    $region60: #{net_forward.1} parent=1 // pred_region
      %3439 = dma.done [#allocation8], 32
    $region61: #{net_forward.1} parent=1 // pred_fallthru
      _
    %3440 = vsyncpa [#allocation7], 1
    %3441 = vsyncpa [#allocation8], 1

</llo_original>
